<compile_context>
chip_gen: v7x
topology: tpu7x:2x2x1
jax: 0.10.0
libtpu: 0.0.40
codegen_flags: <defaults>
</compile_context>

<pallas_src>
import functools

import jax
import jax.numpy as jnp
from jax.experimental import pallas as pl
from jax.experimental.pallas import tpu as pltpu

BN_EPS = 1e-5
RATES = (6, 12, 18)


# ----------------------------------------------------------------------------
# Pallas kernels
# ----------------------------------------------------------------------------
def _conv_kernel(x_ref, w_ref, o_ref, s_ref, q_ref):
    """3x3 conv tile as a single K=9*Cin MXU matmul + BN-stat epilogue.

    x_ref : (1, 1, mt, 9*Cin) bf16   im2col'd input rows (all 9 taps stacked).
    w_ref : (1, 9*Cin, Cout)  bf16   per-branch weight.
    o_ref : (1, 1, mt, Cout)  bf16   conv output tile.
    s_ref : (1, 1, 1, Cout)   f32    per-(branch,image) channel sum.
    q_ref : (1, 1, 1, Cout)   f32    per-(branch,image) channel sum-of-squares.
    """
    acc = jnp.dot(x_ref[0, 0], w_ref[0], preferred_element_type=jnp.float32)
    o_ref[0, 0] = acc.astype(o_ref.dtype)
    ps = jnp.sum(acc, axis=0, keepdims=True)
    pq = jnp.sum(acc * acc, axis=0, keepdims=True)

    @pl.when(pl.program_id(2) == 0)
    def _():
        s_ref[0, 0] = ps
        q_ref[0, 0] = pq

    @pl.when(pl.program_id(2) != 0)
    def _():
        s_ref[0, 0] = s_ref[0, 0] + ps
        q_ref[0, 0] = q_ref[0, 0] + pq


def _scale_shift_relu_kernel(x_ref, s_ref, b_ref, o_ref):
    """Fused BatchNorm-apply + ReLU: relu(x * scale + shift), f32 math."""
    x = x_ref[...].astype(jnp.float32)
    o_ref[...] = jnp.maximum(x * s_ref[...] + b_ref[...], 0.0)


# ----------------------------------------------------------------------------
# Pallas wrappers
# ----------------------------------------------------------------------------
def conv3x3_fused(x9, w, *, m_tile=None, out_dtype=jnp.bfloat16):
    """Batched 3x3 conv via im2col matmul, fused across branches and images.

    x9: (B, N, M, K) bf16 with K = 9*Cin;  w: (B, K, Cout) bf16.
    Returns:
      y : (B, N, M, Cout) out_dtype
      s : (B, N, Cout) f32   per-(branch, image) channel sum of the f32 output
      q : (B, N, Cout) f32   per-(branch, image) channel sum of squares
    """
    B, N, M, K = x9.shape
    Cout = w.shape[-1]
    if m_tile is None:
        m_tile = M
    assert M % m_tile == 0 and (m_tile % 8 == 0 or m_tile == M)
    Mt = M // m_tile
    itemsize = jnp.dtype(out_dtype).itemsize
    cost = pl.CostEstimate(
        flops=2 * B * N * M * K * Cout,
        transcendentals=0,
        bytes_accessed=int(x9.size * 2 + w.size * 2
                           + B * N * M * Cout * itemsize
                           + 2 * B * N * Cout * 4))
    y, s, q = pl.pallas_call(
        _conv_kernel,
        out_shape=(jax.ShapeDtypeStruct((B, N, M, Cout), out_dtype),
                   jax.ShapeDtypeStruct((B, N, 1, Cout), jnp.float32),
                   jax.ShapeDtypeStruct((B, N, 1, Cout), jnp.float32)),
        grid_spec=pltpu.PrefetchScalarGridSpec(
            num_scalar_prefetch=0,
            grid=(B, N, Mt),
            in_specs=[
                pl.BlockSpec((1, 1, m_tile, K), lambda b, n, m: (b, n, m, 0)),
                pl.BlockSpec((1, K, Cout), lambda b, n, m: (b, 0, 0)),
            ],
            out_specs=[
                pl.BlockSpec((1, 1, m_tile, Cout), lambda b, n, m: (b, n, m, 0)),
                pl.BlockSpec((1, 1, 1, Cout), lambda b, n, m: (b, n, 0, 0)),
                pl.BlockSpec((1, 1, 1, Cout), lambda b, n, m: (b, n, 0, 0)),
            ]),
        compiler_params=pltpu.CompilerParams(
            dimension_semantics=("parallel", "parallel", "arbitrary")),
        cost_estimate=cost,
    )(x9, w)
    return y, s[:, :, 0, :], q[:, :, 0, :]


def scale_shift_relu(x2d, scale, shift):
    """relu(x * scale + shift) per channel.  x2d: (M, C) -> (M, C) f32.

    Lane-dense path: when C divides 128 the data is presented as
    (M*C/128, 128) rows with scale/shift tiled to 128 lanes, so every store is
    a full-width unmasked vst.
    """
    M, C = x2d.shape
    lane_dense = (128 % C == 0) and ((M * C) % 128 == 0)
    if lane_dense:
        r = 128 // C
        xl = x2d.reshape((M * C) // 128, 128)
        s = jnp.tile(scale, r).reshape(1, 128).astype(jnp.float32)
        b = jnp.tile(shift, r).reshape(1, 128).astype(jnp.float32)
    else:
        xl = x2d
        s = scale.reshape(1, C).astype(jnp.float32)
        b = shift.reshape(1, C).astype(jnp.float32)
    R, L = xl.shape
    block = R if R <= 2048 else 512
    pad_r = (-R) % block
    if pad_r:
        xl = jnp.pad(xl, ((0, pad_r), (0, 0)))
    Rp = R + pad_r
    cost = pl.CostEstimate(
        flops=2 * Rp * L, transcendentals=0,
        bytes_accessed=int(Rp * L * (xl.dtype.itemsize + 4) + 2 * L * 4))
    out = pl.pallas_call(
        _scale_shift_relu_kernel,
        out_shape=jax.ShapeDtypeStruct((Rp, L), jnp.float32),
        grid_spec=pltpu.PrefetchScalarGridSpec(
            num_scalar_prefetch=0,
            grid=(Rp // block,),
            in_specs=[pl.BlockSpec((block, L), lambda i: (i, 0)),
                      pl.BlockSpec((1, L), lambda i: (0, 0)),
                      pl.BlockSpec((1, L), lambda i: (0, 0))],
            out_specs=pl.BlockSpec((block, L), lambda i: (i, 0))),
        compiler_params=pltpu.CompilerParams(
            dimension_semantics=("parallel",)),
        cost_estimate=cost,
    )(xl, s, b)
    out = out[:R]
    return out.reshape(M, C) if lane_dense else out


# ----------------------------------------------------------------------------
# JAX glue
# ----------------------------------------------------------------------------
def im2col9(x, d):
    """(..., H, W, C) -> (..., H*W, 9*C): stack all 9 (dilated) conv taps.

    Tap order (kh, kw, cin) matches _prep_w3x3.  XLA fuses any elementwise
    producer of `x` (BN-apply, ReLU, residual sum) into this pass.
    """
    *lead, H, W, C = x.shape
    pad = [(0, 0)] * len(lead) + [(d, d), (d, d), (0, 0)]
    xp = jnp.pad(x, pad)
    taps = [xp[..., a * d:a * d + H, c * d:c * d + W, :]
            for a in range(3) for c in range(3)]
    xs = jnp.concatenate(taps, axis=-1)
    return xs.reshape(*lead, H * W, 9 * C)


def bn_scale_shift(ssum, sqsum, count, gamma, beta):
    """Training-mode BN fold: y*scale+shift == gamma*(y-mean)*rsqrt(var+eps)+beta."""
    mean = ssum / count
    var = jnp.maximum(sqsum / count - mean * mean, 0.0)   # biased var (torch norm)
    scale = gamma * jax.lax.rsqrt(var + BN_EPS)
    shift = beta - mean * scale
    return scale, shift


# ----------------------------------------------------------------------------
# Parameters (pre-reshaped / pre-cast once)
# ----------------------------------------------------------------------------
def _prep_w3x3(w_oihw):
    """torch (Cout, Cin, 3, 3) -> (9*Cin, Cout) bf16, tap order (kh, kw, cin)."""
    cout, cin = w_oihw.shape[:2]
    return jnp.transpose(w_oihw, (2, 3, 1, 0)).reshape(9 * cin, cout).astype(
        jnp.bfloat16)


class _KeyGen:
    def __init__(self, key):
        self._key = key

    def __call__(self):
        self._key, k = jax.random.split(self._key)
        return k


def make_params(key, in_ch, out_ch, rates=RATES):
    kg = _KeyGen(key)
    nb = len(rates)
    c = in_ch
    cr = max(c // 4, 1)

    def w3x3(cin, cout):
        std = (2.0 / (cin * 9)) ** 0.5
        return _prep_w3x3(
            std * jax.random.normal(kg(), (cout, cin, 3, 3), jnp.float32))

    def fc(cin, cout):
        std = (2.0 / cin) ** 0.5
        return std * jax.random.normal(kg(), (cin, cout), jnp.float32)

    ones = lambda *s: jnp.ones(s, jnp.float32)
    zeros = lambda *s: jnp.zeros(s, jnp.float32)

    # NOTE: conv biases omitted — a conv bias is absorbed exactly by the
    # batch-statistics BatchNorm that follows every conv in this module.
    return {
        'rates': tuple(int(r) for r in rates),
        'convD_w': jnp.stack([w3x3(c, c) for _ in range(nb)]),   # (nb, 9c, c)
        'bnb_g': ones(nb, c), 'bnb_b': zeros(nb, c),
        'conv1_w': jnp.stack([w3x3(c, c) for _ in range(nb)]),
        'bn1_g': ones(nb, c), 'bn1_b': zeros(nb, c),
        'conv2_w': jnp.stack([w3x3(c, c) for _ in range(nb)]),
        'bn2_g': ones(nb, c), 'bn2_b': zeros(nb, c),
        'fc1_w': jnp.stack([fc(c, cr) for _ in range(nb)]),
        'fc1_b': zeros(nb, cr),
        'fc2_w': jnp.stack([fc(cr, c) for _ in range(nb)]),
        'fc2_b': zeros(nb, c),
        'out_w': w3x3(c, out_ch)[None],                          # (1, 9c, out)
        'out_bn_g': ones(out_ch), 'out_bn_b': zeros(out_ch),
    }


# ----------------------------------------------------------------------------
# Forward pass
# ----------------------------------------------------------------------------
def atten_aspp_forward(params, x_nchw):
    """Atten_ASPP forward.  x: (N, C, H, W) f32 -> (N, out_ch, H, W) f32.

    BatchNorm uses per-call batch statistics (torch training-mode default).
    The PreActBlock `shortcut` is computed-but-unused in the reference forward
    and therefore omitted.
    """
    N, C, H, W = x_nchw.shape
    HW = H * W
    nb = len(params['rates'])
    x = jnp.transpose(x_nchw, (0, 2, 3, 1))                      # NHWC, once
    x16 = x.astype(jnp.bfloat16)

    # ---- all three dilated branch convs in ONE pallas_call -----------------
    x9 = jnp.stack([im2col9(x16, d) for d in params['rates']])   # (nb,N,HW,9C)
    y1, s1, q1 = conv3x3_fused(x9, params['convD_w'])            # y1 bf16

    # branch BN + ReLU — stats come free from the conv epilogue
    sc, sh = bn_scale_shift(s1.sum(1), q1.sum(1), N * HW,
                            params['bnb_g'], params['bnb_b'])    # (nb, C)
    a1 = jnp.maximum(y1.astype(jnp.float32) * sc[:, None, None, :]
                     + sh[:, None, None, :], 0.0)

    # PreActBlock bn1: stats over post-ReLU activations (one cheap jnp pass)
    sc1, sh1 = bn_scale_shift(jnp.sum(a1, axis=(1, 2)),
                              jnp.sum(a1 * a1, axis=(1, 2)), N * HW,
                              params['bn1_g'], params['bn1_b'])
    c1_in = jnp.maximum(a1 * sc1[:, None, None, :] + sh1[:, None, None, :], 0.0)
    c1_in9 = im2col9(c1_in.astype(jnp.bfloat16).reshape(nb, N, H, W, C), 1)

    # PreActBlock conv1 (all branches, one call)
    z1, s2, q2 = conv3x3_fused(c1_in9, params['conv1_w'])

    # bn2 + ReLU fused into conv2's im2col glue
    sc2, sh2 = bn_scale_shift(s2.sum(1), q2.sum(1), N * HW,
                              params['bn2_g'], params['bn2_b'])
    c2_in = jnp.maximum(z1.astype(jnp.float32) * sc2[:, None, None, :]
                        + sh2[:, None, None, :], 0.0)
    c2_in9 = im2col9(c2_in.astype(jnp.bfloat16).reshape(nb, N, H, W, C), 1)

    # PreActBlock conv2 (all branches, one call); its channel-sum output IS the
    # squeeze-excite global average pool (square images, as in the reference).
    z2, s3, _ = conv3x3_fused(c2_in9, params['conv2_w'])

    # squeeze-excite gates: tiny M (batch rows only) -> plain jnp
    pool = s3 / HW                                               # (nb, N, C)
    h = jnp.maximum(jnp.einsum('bnc,bcr->bnr', pool, params['fc1_w'])
                    + params['fc1_b'][:, None, :], 0.0)
    g = jax.nn.sigmoid(jnp.einsum('bnr,brc->bnc', h, params['fc2_w'])
                       + params['fc2_b'][:, None, :])            # (nb, N, C)

    # SE gating + branch sum + residual + ReLU, fused by XLA into out-conv glue
    y = jnp.maximum(jnp.sum(z2.astype(jnp.float32) * g[:, :, None, :], axis=0)
                    + x.reshape(N, HW, C), 0.0)
    y9 = im2col9(y.astype(jnp.bfloat16).reshape(N, H, W, C), 1)[None]

    # out_conv: M-tiled so the grid has >2 steps (keeps both v7x cores busy)
    m_tile = HW // 2 if HW % 16 == 0 else HW
    o, so, qo = conv3x3_fused(y9, params['out_w'], m_tile=m_tile)
    Cout = o.shape[-1]

    # final BN + ReLU: lane-dense fused elementwise kernel (module output)
    sco, sho = bn_scale_shift(so.sum((0, 1)), qo.sum((0, 1)), N * HW,
                              params['out_bn_g'], params['out_bn_b'])
    out = scale_shift_relu(o.reshape(N * HW, Cout), sco, sho)
    out = out.reshape(N, H, W, Cout)
    return jnp.transpose(out, (0, 3, 1, 2))                      # NCHW at exit


# ----------------------------------------------------------------------------
if __name__ == "__main__":
    key = jax.random.PRNGKey(0)
    kp, kx = jax.random.split(key)

    IN_CH = 32
    OUT_CH = 32
    params = make_params(kp, IN_CH, OUT_CH)

    x = jax.random.normal(kx, (2, IN_CH, 16, 16), jnp.float32)   # NCHW like torch

    fwd = jax.jit(lambda inp: atten_aspp_forward(params, inp))
    out = jax.block_until_ready(fwd(x))

    assert out.shape == (2, OUT_CH, 16, 16), out.shape
    assert out.dtype == jnp.float32
    assert bool(jnp.all(jnp.isfinite(out)))
    print("KERNEL_OK")
</pallas_src>

<mosaic_0001>
module attributes {stable_mosaic.version = 11 : i64} {
  func.func @_conv_kernel(%arg0: i32, %arg1: i32, %arg2: i32, %arg3: memref<1x1x256x288xbf16, #tpu.memory_space<vmem>>, %arg4: memref<1x288x32xbf16, #tpu.memory_space<vmem>>, %arg5: memref<1x1x256x32xbf16, #tpu.memory_space<vmem>>, %arg6: memref<1x1x1x32xf32, #tpu.memory_space<vmem>>, %arg7: memref<1x1x1x32xf32, #tpu.memory_space<vmem>>) attributes {dimension_semantics = [#tpu.dimension_semantics<parallel>, #tpu.dimension_semantics<parallel>, #tpu.dimension_semantics<arbitrary>], iteration_bounds = array<i64: 3, 2, 1>, scalar_prefetch = 0 : i64, scratch_operands = 0 : i64, tpu.core_type = #tpu.core_type<tc>, window_params = [{transform_indices = @transform_0, window_bounds = array<i64: 1, 1, 256, 288>}, {transform_indices = @transform_1, window_bounds = array<i64: 1, 288, 32>}, {transform_indices = @transform_2, window_bounds = array<i64: 1, 1, 256, 32>}, {transform_indices = @transform_3, window_bounds = array<i64: 1, 1, 1, 32>}, {transform_indices = @transform_4, window_bounds = array<i64: 1, 1, 1, 32>}]} {
    %c0 = arith.constant 0 : index
    %c0_0 = arith.constant 0 : index
    %c0_1 = arith.constant 0 : index
    %c0_2 = arith.constant 0 : index
    %0 = vector.load %arg3[%c0, %c0_0, %c0_1, %c0_2] : memref<1x1x256x288xbf16, #tpu.memory_space<vmem>>, vector<1x1x256x288xbf16>
    %1 = vector.shape_cast %0 : vector<1x1x256x288xbf16> to vector<256x288xbf16>
    %c0_3 = arith.constant 0 : index
    %c0_4 = arith.constant 0 : index
    %c0_5 = arith.constant 0 : index
    %2 = vector.load %arg4[%c0_3, %c0_4, %c0_5] : memref<1x288x32xbf16, #tpu.memory_space<vmem>>, vector<1x288x32xbf16>
    %3 = vector.shape_cast %2 : vector<1x288x32xbf16> to vector<288x32xbf16>
    %cst = arith.constant dense<0.000000e+00> : vector<256x32xf32>
    %4 = tpu.matmul %1, %3, %cst {dimension_numbers = #tpu.dot_dimension_numbers<[1], [0], [0], [1], [0, 0, 1, 1], [], []>} : vector<256x288xbf16>, vector<288x32xbf16>, vector<256x32xf32> -> vector<256x32xf32>
    %5 = arith.truncf %4 : vector<256x32xf32> to vector<256x32xbf16>
    %c0_6 = arith.constant 0 : index
    %c0_7 = arith.constant 0 : index
    %c0_8 = arith.constant 0 : index
    %c0_9 = arith.constant 0 : index
    %6 = vector.load %arg5[%c0_6, %c0_7, %c0_8, %c0_9] : memref<1x1x256x32xbf16, #tpu.memory_space<vmem>>, vector<1x1x256x32xbf16>
    %7 = vector.shape_cast %6 : vector<1x1x256x32xbf16> to vector<256x32xbf16>
    %8 = vector.shape_cast %5 : vector<256x32xbf16> to vector<1x1x256x32xbf16>
    tpu.vector_store %arg5[%c0_6, %c0_7, %c0_8, %c0_9], %8 {strides = array<i32>} : memref<1x1x256x32xbf16, #tpu.memory_space<vmem>>, vector<1x1x256x32xbf16>,
    %cst_10 = arith.constant dense<0.000000e+00> : vector<32xf32>
    %9 = vector.multi_reduction <add>, %4, %cst_10 [0] : vector<256x32xf32> to vector<32xf32>
    %10 = vector.shape_cast %9 : vector<32xf32> to vector<1x32xf32>
    %11 = arith.mulf %4, %4 : vector<256x32xf32>
    %cst_11 = arith.constant dense<0.000000e+00> : vector<32xf32>
    %12 = vector.multi_reduction <add>, %11, %cst_11 [0] : vector<256x32xf32> to vector<32xf32>
    %13 = vector.shape_cast %12 : vector<32xf32> to vector<1x32xf32>
    %c0_i32 = arith.constant 0 : i32
    %14 = arith.cmpi eq, %arg2, %c0_i32 : i32
    %15 = arith.extui %14 : i1 to i32
    %c0_i32_12 = arith.constant 0 : i32
    %16 = arith.cmpi ne, %15, %c0_i32_12 : i32
    scf.if %16 {
      %c0_15 = arith.constant 0 : index
      %c0_16 = arith.constant 0 : index
      %c0_17 = arith.constant 0 : index
      %c0_18 = arith.constant 0 : index
      %20 = vector.load %arg6[%c0_15, %c0_16, %c0_17, %c0_18] : memref<1x1x1x32xf32, #tpu.memory_space<vmem>>, vector<1x1x1x32xf32>
      %21 = vector.shape_cast %20 : vector<1x1x1x32xf32> to vector<1x32xf32>
      %22 = vector.shape_cast %10 : vector<1x32xf32> to vector<1x1x1x32xf32>
      tpu.vector_store %arg6[%c0_15, %c0_16, %c0_17, %c0_18], %22 {strides = array<i32>} : memref<1x1x1x32xf32, #tpu.memory_space<vmem>>, vector<1x1x1x32xf32>,
      %c0_19 = arith.constant 0 : index
      %c0_20 = arith.constant 0 : index
      %c0_21 = arith.constant 0 : index
      %c0_22 = arith.constant 0 : index
      %23 = vector.load %arg7[%c0_19, %c0_20, %c0_21, %c0_22] : memref<1x1x1x32xf32, #tpu.memory_space<vmem>>, vector<1x1x1x32xf32>
      %24 = vector.shape_cast %23 : vector<1x1x1x32xf32> to vector<1x32xf32>
      %25 = vector.shape_cast %13 : vector<1x32xf32> to vector<1x1x1x32xf32>
      tpu.vector_store %arg7[%c0_19, %c0_20, %c0_21, %c0_22], %25 {strides = array<i32>} : memref<1x1x1x32xf32, #tpu.memory_space<vmem>>, vector<1x1x1x32xf32>,
    } else {
    }
    %c0_i32_13 = arith.constant 0 : i32
    %17 = arith.cmpi ne, %arg2, %c0_i32_13 : i32
    %18 = arith.extui %17 : i1 to i32
    %c0_i32_14 = arith.constant 0 : i32
    %19 = arith.cmpi ne, %18, %c0_i32_14 : i32
    scf.if %19 {
      %c0_15 = arith.constant 0 : index
      %c0_16 = arith.constant 0 : index
      %c0_17 = arith.constant 0 : index
      %c0_18 = arith.constant 0 : index
      %20 = vector.load %arg6[%c0_15, %c0_16, %c0_17, %c0_18] : memref<1x1x1x32xf32, #tpu.memory_space<vmem>>, vector<1x1x1x32xf32>
      %21 = vector.shape_cast %20 : vector<1x1x1x32xf32> to vector<1x32xf32>
      %22 = arith.addf %21, %10 : vector<1x32xf32>
      %c0_19 = arith.constant 0 : index
      %c0_20 = arith.constant 0 : index
      %c0_21 = arith.constant 0 : index
      %c0_22 = arith.constant 0 : index
      %23 = vector.load %arg6[%c0_19, %c0_20, %c0_21, %c0_22] : memref<1x1x1x32xf32, #tpu.memory_space<vmem>>, vector<1x1x1x32xf32>
      %24 = vector.shape_cast %23 : vector<1x1x1x32xf32> to vector<1x32xf32>
      %25 = vector.shape_cast %22 : vector<1x32xf32> to vector<1x1x1x32xf32>
      tpu.vector_store %arg6[%c0_19, %c0_20, %c0_21, %c0_22], %25 {strides = array<i32>} : memref<1x1x1x32xf32, #tpu.memory_space<vmem>>, vector<1x1x1x32xf32>,
      %c0_23 = arith.constant 0 : index
      %c0_24 = arith.constant 0 : index
      %c0_25 = arith.constant 0 : index
      %c0_26 = arith.constant 0 : index
      %26 = vector.load %arg7[%c0_23, %c0_24, %c0_25, %c0_26] : memref<1x1x1x32xf32, #tpu.memory_space<vmem>>, vector<1x1x1x32xf32>
      %27 = vector.shape_cast %26 : vector<1x1x1x32xf32> to vector<1x32xf32>
      %28 = arith.addf %27, %13 : vector<1x32xf32>
      %c0_27 = arith.constant 0 : index
      %c0_28 = arith.constant 0 : index
      %c0_29 = arith.constant 0 : index
      %c0_30 = arith.constant 0 : index
      %29 = vector.load %arg7[%c0_27, %c0_28, %c0_29, %c0_30] : memref<1x1x1x32xf32, #tpu.memory_space<vmem>>, vector<1x1x1x32xf32>
      %30 = vector.shape_cast %29 : vector<1x1x1x32xf32> to vector<1x32xf32>
      %31 = vector.shape_cast %28 : vector<1x32xf32> to vector<1x1x1x32xf32>
      tpu.vector_store %arg7[%c0_27, %c0_28, %c0_29, %c0_30], %31 {strides = array<i32>} : memref<1x1x1x32xf32, #tpu.memory_space<vmem>>, vector<1x1x1x32xf32>,
    } else {
    }
    return
  }
  func.func @transform_0(%arg0: i32, %arg1: i32, %arg2: i32) -> (i32, i32, i32, i32) {
    %c0_i32 = arith.constant 0 : i32
    %c0_i32_0 = arith.constant 0 : i32
    return %arg0, %arg1, %arg2, %c0_i32 : i32, i32, i32, i32
  }
  func.func @transform_1(%arg0: i32, %arg1: i32, %arg2: i32) -> (i32, i32, i32) {
    %c0_i32 = arith.constant 0 : i32
    %c0_i32_0 = arith.constant 0 : i32
    %c0_i32_1 = arith.constant 0 : i32
    return %arg0, %c0_i32, %c0_i32_0 : i32, i32, i32
  }
  func.func @transform_2(%arg0: i32, %arg1: i32, %arg2: i32) -> (i32, i32, i32, i32) {
    %c0_i32 = arith.constant 0 : i32
    %c0_i32_0 = arith.constant 0 : i32
    return %arg0, %arg1, %arg2, %c0_i32 : i32, i32, i32, i32
  }
  func.func @transform_3(%arg0: i32, %arg1: i32, %arg2: i32) -> (i32, i32, i32, i32) {
    %c0_i32 = arith.constant 0 : i32
    %c0_i32_0 = arith.constant 0 : i32
    %c0_i32_1 = arith.constant 0 : i32
    return %arg0, %arg1, %c0_i32, %c0_i32_0 : i32, i32, i32, i32
  }
  func.func @transform_4(%arg0: i32, %arg1: i32, %arg2: i32) -> (i32, i32, i32, i32) {
    %c0_i32 = arith.constant 0 : i32
    %c0_i32_0 = arith.constant 0 : i32
    %c0_i32_1 = arith.constant 0 : i32
    return %arg0, %arg1, %c0_i32, %c0_i32_0 : i32, i32, i32, i32
  }
}

module attributes {stable_mosaic.version = 11 : i64} {
  func.func @_conv_kernel(%arg0: i32, %arg1: i32, %arg2: i32, %arg3: memref<1x1x256x288xbf16, #tpu.memory_space<vmem>>, %arg4: memref<1x288x32xbf16, #tpu.memory_space<vmem>>, %arg5: memref<1x1x256x32xbf16, #tpu.memory_space<vmem>>, %arg6: memref<1x1x1x32xf32, #tpu.memory_space<vmem>>, %arg7: memref<1x1x1x32xf32, #tpu.memory_space<vmem>>) attributes {dimension_semantics = [#tpu.dimension_semantics<parallel>, #tpu.dimension_semantics<parallel>, #tpu.dimension_semantics<arbitrary>], iteration_bounds = array<i64: 3, 2, 1>, scalar_prefetch = 0 : i64, scratch_operands = 0 : i64, tpu.core_type = #tpu.core_type<tc>, window_params = [{transform_indices = @transform_0, window_bounds = array<i64: 1, 1, 256, 288>}, {transform_indices = @transform_1, window_bounds = array<i64: 1, 288, 32>}, {transform_indices = @transform_2, window_bounds = array<i64: 1, 1, 256, 32>}, {transform_indices = @transform_3, window_bounds = array<i64: 1, 1, 1, 32>}, {transform_indices = @transform_4, window_bounds = array<i64: 1, 1, 1, 32>}]} {
    %c0 = arith.constant 0 : index
    %c0_0 = arith.constant 0 : index
    %c0_1 = arith.constant 0 : index
    %c0_2 = arith.constant 0 : index
    %0 = vector.load %arg3[%c0, %c0_0, %c0_1, %c0_2] : memref<1x1x256x288xbf16, #tpu.memory_space<vmem>>, vector<1x1x256x288xbf16>
    %1 = vector.shape_cast %0 : vector<1x1x256x288xbf16> to vector<256x288xbf16>
    %c0_3 = arith.constant 0 : index
    %c0_4 = arith.constant 0 : index
    %c0_5 = arith.constant 0 : index
    %2 = vector.load %arg4[%c0_3, %c0_4, %c0_5] : memref<1x288x32xbf16, #tpu.memory_space<vmem>>, vector<1x288x32xbf16>
    %3 = vector.shape_cast %2 : vector<1x288x32xbf16> to vector<288x32xbf16>
    %cst = arith.constant dense<0.000000e+00> : vector<256x32xf32>
    %4 = tpu.matmul %1, %3, %cst {dimension_numbers = #tpu.dot_dimension_numbers<[1], [0], [0], [1], [0, 0, 1, 1], [], []>} : vector<256x288xbf16>, vector<288x32xbf16>, vector<256x32xf32> -> vector<256x32xf32>
    %5 = arith.truncf %4 : vector<256x32xf32> to vector<256x32xbf16>
    %c0_6 = arith.constant 0 : index
    %c0_7 = arith.constant 0 : index
    %c0_8 = arith.constant 0 : index
    %c0_9 = arith.constant 0 : index
    %6 = vector.load %arg5[%c0_6, %c0_7, %c0_8, %c0_9] : memref<1x1x256x32xbf16, #tpu.memory_space<vmem>>, vector<1x1x256x32xbf16>
    %7 = vector.shape_cast %6 : vector<1x1x256x32xbf16> to vector<256x32xbf16>
    %8 = vector.shape_cast %5 : vector<256x32xbf16> to vector<1x1x256x32xbf16>
    tpu.vector_store %arg5[%c0_6, %c0_7, %c0_8, %c0_9], %8 {strides = array<i32>} : memref<1x1x256x32xbf16, #tpu.memory_space<vmem>>, vector<1x1x256x32xbf16>,
    %cst_10 = arith.constant dense<0.000000e+00> : vector<32xf32>
    %9 = vector.multi_reduction <add>, %4, %cst_10 [0] : vector<256x32xf32> to vector<32xf32>
    %10 = vector.shape_cast %9 : vector<32xf32> to vector<1x32xf32>
    %11 = arith.mulf %4, %4 : vector<256x32xf32>
    %cst_11 = arith.constant dense<0.000000e+00> : vector<32xf32>
    %12 = vector.multi_reduction <add>, %11, %cst_11 [0] : vector<256x32xf32> to vector<32xf32>
    %13 = vector.shape_cast %12 : vector<32xf32> to vector<1x32xf32>
    %c0_i32 = arith.constant 0 : i32
    %14 = arith.cmpi eq, %arg2, %c0_i32 : i32
    %15 = arith.extui %14 : i1 to i32
    %c0_i32_12 = arith.constant 0 : i32
    %16 = arith.cmpi ne, %15, %c0_i32_12 : i32
    scf.if %16 {
      %c0_15 = arith.constant 0 : index
      %c0_16 = arith.constant 0 : index
      %c0_17 = arith.constant 0 : index
      %c0_18 = arith.constant 0 : index
      %20 = vector.load %arg6[%c0_15, %c0_16, %c0_17, %c0_18] : memref<1x1x1x32xf32, #tpu.memory_space<vmem>>, vector<1x1x1x32xf32>
      %21 = vector.shape_cast %20 : vector<1x1x1x32xf32> to vector<1x32xf32>
      %22 = vector.shape_cast %10 : vector<1x32xf32> to vector<1x1x1x32xf32>
      tpu.vector_store %arg6[%c0_15, %c0_16, %c0_17, %c0_18], %22 {strides = array<i32>} : memref<1x1x1x32xf32, #tpu.memory_space<vmem>>, vector<1x1x1x32xf32>,
      %c0_19 = arith.constant 0 : index
      %c0_20 = arith.constant 0 : index
      %c0_21 = arith.constant 0 : index
      %c0_22 = arith.constant 0 : index
      %23 = vector.load %arg7[%c0_19, %c0_20, %c0_21, %c0_22] : memref<1x1x1x32xf32, #tpu.memory_space<vmem>>, vector<1x1x1x32xf32>
      %24 = vector.shape_cast %23 : vector<1x1x1x32xf32> to vector<1x32xf32>
      %25 = vector.shape_cast %13 : vector<1x32xf32> to vector<1x1x1x32xf32>
      tpu.vector_store %arg7[%c0_19, %c0_20, %c0_21, %c0_22], %25 {strides = array<i32>} : memref<1x1x1x32xf32, #tpu.memory_space<vmem>>, vector<1x1x1x32xf32>,
    } else {
    }
    %c0_i32_13 = arith.constant 0 : i32
    %17 = arith.cmpi ne, %arg2, %c0_i32_13 : i32
    %18 = arith.extui %17 : i1 to i32
    %c0_i32_14 = arith.constant 0 : i32
    %19 = arith.cmpi ne, %18, %c0_i32_14 : i32
    scf.if %19 {
      %c0_15 = arith.constant 0 : index
      %c0_16 = arith.constant 0 : index
      %c0_17 = arith.constant 0 : index
      %c0_18 = arith.constant 0 : index
      %20 = vector.load %arg6[%c0_15, %c0_16, %c0_17, %c0_18] : memref<1x1x1x32xf32, #tpu.memory_space<vmem>>, vector<1x1x1x32xf32>
      %21 = vector.shape_cast %20 : vector<1x1x1x32xf32> to vector<1x32xf32>
      %22 = arith.addf %21, %10 : vector<1x32xf32>
      %c0_19 = arith.constant 0 : index
      %c0_20 = arith.constant 0 : index
      %c0_21 = arith.constant 0 : index
      %c0_22 = arith.constant 0 : index
      %23 = vector.load %arg6[%c0_19, %c0_20, %c0_21, %c0_22] : memref<1x1x1x32xf32, #tpu.memory_space<vmem>>, vector<1x1x1x32xf32>
      %24 = vector.shape_cast %23 : vector<1x1x1x32xf32> to vector<1x32xf32>
      %25 = vector.shape_cast %22 : vector<1x32xf32> to vector<1x1x1x32xf32>
      tpu.vector_store %arg6[%c0_19, %c0_20, %c0_21, %c0_22], %25 {strides = array<i32>} : memref<1x1x1x32xf32, #tpu.memory_space<vmem>>, vector<1x1x1x32xf32>,
      %c0_23 = arith.constant 0 : index
      %c0_24 = arith.constant 0 : index
      %c0_25 = arith.constant 0 : index
      %c0_26 = arith.constant 0 : index
      %26 = vector.load %arg7[%c0_23, %c0_24, %c0_25, %c0_26] : memref<1x1x1x32xf32, #tpu.memory_space<vmem>>, vector<1x1x1x32xf32>
      %27 = vector.shape_cast %26 : vector<1x1x1x32xf32> to vector<1x32xf32>
      %28 = arith.addf %27, %13 : vector<1x32xf32>
      %c0_27 = arith.constant 0 : index
      %c0_28 = arith.constant 0 : index
      %c0_29 = arith.constant 0 : index
      %c0_30 = arith.constant 0 : index
      %29 = vector.load %arg7[%c0_27, %c0_28, %c0_29, %c0_30] : memref<1x1x1x32xf32, #tpu.memory_space<vmem>>, vector<1x1x1x32xf32>
      %30 = vector.shape_cast %29 : vector<1x1x1x32xf32> to vector<1x32xf32>
      %31 = vector.shape_cast %28 : vector<1x32xf32> to vector<1x1x1x32xf32>
      tpu.vector_store %arg7[%c0_27, %c0_28, %c0_29, %c0_30], %31 {strides = array<i32>} : memref<1x1x1x32xf32, #tpu.memory_space<vmem>>, vector<1x1x1x32xf32>,
    } else {
    }
    return
  }
  func.func @transform_0(%arg0: i32, %arg1: i32, %arg2: i32) -> (i32, i32, i32, i32) {
    %c0_i32 = arith.constant 0 : i32
    %c0_i32_0 = arith.constant 0 : i32
    return %arg0, %arg1, %arg2, %c0_i32 : i32, i32, i32, i32
  }
  func.func @transform_1(%arg0: i32, %arg1: i32, %arg2: i32) -> (i32, i32, i32) {
    %c0_i32 = arith.constant 0 : i32
    %c0_i32_0 = arith.constant 0 : i32
    %c0_i32_1 = arith.constant 0 : i32
    return %arg0, %c0_i32, %c0_i32_0 : i32, i32, i32
  }
  func.func @transform_2(%arg0: i32, %arg1: i32, %arg2: i32) -> (i32, i32, i32, i32) {
    %c0_i32 = arith.constant 0 : i32
    %c0_i32_0 = arith.constant 0 : i32
    return %arg0, %arg1, %arg2, %c0_i32 : i32, i32, i32, i32
  }
  func.func @transform_3(%arg0: i32, %arg1: i32, %arg2: i32) -> (i32, i32, i32, i32) {
    %c0_i32 = arith.constant 0 : i32
    %c0_i32_0 = arith.constant 0 : i32
    %c0_i32_1 = arith.constant 0 : i32
    return %arg0, %arg1, %c0_i32, %c0_i32_0 : i32, i32, i32, i32
  }
  func.func @transform_4(%arg0: i32, %arg1: i32, %arg2: i32) -> (i32, i32, i32, i32) {
    %c0_i32 = arith.constant 0 : i32
    %c0_i32_0 = arith.constant 0 : i32
    %c0_i32_1 = arith.constant 0 : i32
    return %arg0, %arg1, %c0_i32, %c0_i32_0 : i32, i32, i32, i32
  }
}

module attributes {stable_mosaic.version = 11 : i64} {
  func.func @_conv_kernel(%arg0: i32, %arg1: i32, %arg2: i32, %arg3: memref<1x1x128x288xbf16, #tpu.memory_space<vmem>>, %arg4: memref<1x288x32xbf16, #tpu.memory_space<vmem>>, %arg5: memref<1x1x128x32xbf16, #tpu.memory_space<vmem>>, %arg6: memref<1x1x1x32xf32, #tpu.memory_space<vmem>>, %arg7: memref<1x1x1x32xf32, #tpu.memory_space<vmem>>) attributes {dimension_semantics = [#tpu.dimension_semantics<parallel>, #tpu.dimension_semantics<parallel>, #tpu.dimension_semantics<arbitrary>], iteration_bounds = array<i64: 1, 2, 2>, scalar_prefetch = 0 : i64, scratch_operands = 0 : i64, tpu.core_type = #tpu.core_type<tc>, window_params = [{transform_indices = @transform_0, window_bounds = array<i64: 1, 1, 128, 288>}, {transform_indices = @transform_1, window_bounds = array<i64: 1, 288, 32>}, {transform_indices = @transform_2, window_bounds = array<i64: 1, 1, 128, 32>}, {transform_indices = @transform_3, window_bounds = array<i64: 1, 1, 1, 32>}, {transform_indices = @transform_4, window_bounds = array<i64: 1, 1, 1, 32>}]} {
    %c0 = arith.constant 0 : index
    %c0_0 = arith.constant 0 : index
    %c0_1 = arith.constant 0 : index
    %c0_2 = arith.constant 0 : index
    %0 = vector.load %arg3[%c0, %c0_0, %c0_1, %c0_2] : memref<1x1x128x288xbf16, #tpu.memory_space<vmem>>, vector<1x1x128x288xbf16>
    %1 = vector.shape_cast %0 : vector<1x1x128x288xbf16> to vector<128x288xbf16>
    %c0_3 = arith.constant 0 : index
    %c0_4 = arith.constant 0 : index
    %c0_5 = arith.constant 0 : index
    %2 = vector.load %arg4[%c0_3, %c0_4, %c0_5] : memref<1x288x32xbf16, #tpu.memory_space<vmem>>, vector<1x288x32xbf16>
    %3 = vector.shape_cast %2 : vector<1x288x32xbf16> to vector<288x32xbf16>
    %cst = arith.constant dense<0.000000e+00> : vector<128x32xf32>
    %4 = tpu.matmul %1, %3, %cst {dimension_numbers = #tpu.dot_dimension_numbers<[1], [0], [0], [1], [0, 0, 1, 1], [], []>} : vector<128x288xbf16>, vector<288x32xbf16>, vector<128x32xf32> -> vector<128x32xf32>
    %5 = arith.truncf %4 : vector<128x32xf32> to vector<128x32xbf16>
    %c0_6 = arith.constant 0 : index
    %c0_7 = arith.constant 0 : index
    %c0_8 = arith.constant 0 : index
    %c0_9 = arith.constant 0 : index
    %6 = vector.load %arg5[%c0_6, %c0_7, %c0_8, %c0_9] : memref<1x1x128x32xbf16, #tpu.memory_space<vmem>>, vector<1x1x128x32xbf16>
    %7 = vector.shape_cast %6 : vector<1x1x128x32xbf16> to vector<128x32xbf16>
    %8 = vector.shape_cast %5 : vector<128x32xbf16> to vector<1x1x128x32xbf16>
    tpu.vector_store %arg5[%c0_6, %c0_7, %c0_8, %c0_9], %8 {strides = array<i32>} : memref<1x1x128x32xbf16, #tpu.memory_space<vmem>>, vector<1x1x128x32xbf16>,
    %cst_10 = arith.constant dense<0.000000e+00> : vector<32xf32>
    %9 = vector.multi_reduction <add>, %4, %cst_10 [0] : vector<128x32xf32> to vector<32xf32>
    %10 = vector.shape_cast %9 : vector<32xf32> to vector<1x32xf32>
    %11 = arith.mulf %4, %4 : vector<128x32xf32>
    %cst_11 = arith.constant dense<0.000000e+00> : vector<32xf32>
    %12 = vector.multi_reduction <add>, %11, %cst_11 [0] : vector<128x32xf32> to vector<32xf32>
    %13 = vector.shape_cast %12 : vector<32xf32> to vector<1x32xf32>
    %c0_i32 = arith.constant 0 : i32
    %14 = arith.cmpi eq, %arg2, %c0_i32 : i32
    %15 = arith.extui %14 : i1 to i32
    %c0_i32_12 = arith.constant 0 : i32
    %16 = arith.cmpi ne, %15, %c0_i32_12 : i32
    scf.if %16 {
      %c0_15 = arith.constant 0 : index
      %c0_16 = arith.constant 0 : index
      %c0_17 = arith.constant 0 : index
      %c0_18 = arith.constant 0 : index
      %20 = vector.load %arg6[%c0_15, %c0_16, %c0_17, %c0_18] : memref<1x1x1x32xf32, #tpu.memory_space<vmem>>, vector<1x1x1x32xf32>
      %21 = vector.shape_cast %20 : vector<1x1x1x32xf32> to vector<1x32xf32>
      %22 = vector.shape_cast %10 : vector<1x32xf32> to vector<1x1x1x32xf32>
      tpu.vector_store %arg6[%c0_15, %c0_16, %c0_17, %c0_18], %22 {strides = array<i32>} : memref<1x1x1x32xf32, #tpu.memory_space<vmem>>, vector<1x1x1x32xf32>,
      %c0_19 = arith.constant 0 : index
      %c0_20 = arith.constant 0 : index
      %c0_21 = arith.constant 0 : index
      %c0_22 = arith.constant 0 : index
      %23 = vector.load %arg7[%c0_19, %c0_20, %c0_21, %c0_22] : memref<1x1x1x32xf32, #tpu.memory_space<vmem>>, vector<1x1x1x32xf32>
      %24 = vector.shape_cast %23 : vector<1x1x1x32xf32> to vector<1x32xf32>
      %25 = vector.shape_cast %13 : vector<1x32xf32> to vector<1x1x1x32xf32>
      tpu.vector_store %arg7[%c0_19, %c0_20, %c0_21, %c0_22], %25 {strides = array<i32>} : memref<1x1x1x32xf32, #tpu.memory_space<vmem>>, vector<1x1x1x32xf32>,
    } else {
    }
    %c0_i32_13 = arith.constant 0 : i32
    %17 = arith.cmpi ne, %arg2, %c0_i32_13 : i32
    %18 = arith.extui %17 : i1 to i32
    %c0_i32_14 = arith.constant 0 : i32
    %19 = arith.cmpi ne, %18, %c0_i32_14 : i32
    scf.if %19 {
      %c0_15 = arith.constant 0 : index
      %c0_16 = arith.constant 0 : index
      %c0_17 = arith.constant 0 : index
      %c0_18 = arith.constant 0 : index
      %20 = vector.load %arg6[%c0_15, %c0_16, %c0_17, %c0_18] : memref<1x1x1x32xf32, #tpu.memory_space<vmem>>, vector<1x1x1x32xf32>
      %21 = vector.shape_cast %20 : vector<1x1x1x32xf32> to vector<1x32xf32>
      %22 = arith.addf %21, %10 : vector<1x32xf32>
      %c0_19 = arith.constant 0 : index
      %c0_20 = arith.constant 0 : index
      %c0_21 = arith.constant 0 : index
      %c0_22 = arith.constant 0 : index
      %23 = vector.load %arg6[%c0_19, %c0_20, %c0_21, %c0_22] : memref<1x1x1x32xf32, #tpu.memory_space<vmem>>, vector<1x1x1x32xf32>
      %24 = vector.shape_cast %23 : vector<1x1x1x32xf32> to vector<1x32xf32>
      %25 = vector.shape_cast %22 : vector<1x32xf32> to vector<1x1x1x32xf32>
      tpu.vector_store %arg6[%c0_19, %c0_20, %c0_21, %c0_22], %25 {strides = array<i32>} : memref<1x1x1x32xf32, #tpu.memory_space<vmem>>, vector<1x1x1x32xf32>,
      %c0_23 = arith.constant 0 : index
      %c0_24 = arith.constant 0 : index
      %c0_25 = arith.constant 0 : index
      %c0_26 = arith.constant 0 : index
      %26 = vector.load %arg7[%c0_23, %c0_24, %c0_25, %c0_26] : memref<1x1x1x32xf32, #tpu.memory_space<vmem>>, vector<1x1x1x32xf32>
      %27 = vector.shape_cast %26 : vector<1x1x1x32xf32> to vector<1x32xf32>
      %28 = arith.addf %27, %13 : vector<1x32xf32>
      %c0_27 = arith.constant 0 : index
      %c0_28 = arith.constant 0 : index
      %c0_29 = arith.constant 0 : index
      %c0_30 = arith.constant 0 : index
      %29 = vector.load %arg7[%c0_27, %c0_28, %c0_29, %c0_30] : memref<1x1x1x32xf32, #tpu.memory_space<vmem>>, vector<1x1x1x32xf32>
      %30 = vector.shape_cast %29 : vector<1x1x1x32xf32> to vector<1x32xf32>
      %31 = vector.shape_cast %28 : vector<1x32xf32> to vector<1x1x1x32xf32>
      tpu.vector_store %arg7[%c0_27, %c0_28, %c0_29, %c0_30], %31 {strides = array<i32>} : memref<1x1x1x32xf32, #tpu.memory_space<vmem>>, vector<1x1x1x32xf32>,
    } else {
    }
    return
  }
  func.func @transform_0(%arg0: i32, %arg1: i32, %arg2: i32) -> (i32, i32, i32, i32) {
    %c0_i32 = arith.constant 0 : i32
    %c0_i32_0 = arith.constant 0 : i32
    return %arg0, %arg1, %arg2, %c0_i32 : i32, i32, i32, i32
  }
  func.func @transform_1(%arg0: i32, %arg1: i32, %arg2: i32) -> (i32, i32, i32) {
    %c0_i32 = arith.constant 0 : i32
    %c0_i32_0 = arith.constant 0 : i32
    %c0_i32_1 = arith.constant 0 : i32
    return %arg0, %c0_i32, %c0_i32_0 : i32, i32, i32
  }
  func.func @transform_2(%arg0: i32, %arg1: i32, %arg2: i32) -> (i32, i32, i32, i32) {
    %c0_i32 = arith.constant 0 : i32
    %c0_i32_0 = arith.constant 0 : i32
    return %arg0, %arg1, %arg2, %c0_i32 : i32, i32, i32, i32
  }
  func.func @transform_3(%arg0: i32, %arg1: i32, %arg2: i32) -> (i32, i32, i32, i32) {
    %c0_i32 = arith.constant 0 : i32
    %c0_i32_0 = arith.constant 0 : i32
    %c0_i32_1 = arith.constant 0 : i32
    return %arg0, %arg1, %c0_i32, %c0_i32_0 : i32, i32, i32, i32
  }
  func.func @transform_4(%arg0: i32, %arg1: i32, %arg2: i32) -> (i32, i32, i32, i32) {
    %c0_i32 = arith.constant 0 : i32
    %c0_i32_0 = arith.constant 0 : i32
    %c0_i32_1 = arith.constant 0 : i32
    return %arg0, %arg1, %c0_i32, %c0_i32_0 : i32, i32, i32, i32
  }
}

module attributes {stable_mosaic.version = 11 : i64} {
  func.func @_scale_shift_relu_kernel(%arg0: i32, %arg1: memref<128x128xbf16, #tpu.memory_space<vmem>>, %arg2: memref<1x128xf32, #tpu.memory_space<vmem>>, %arg3: memref<1x128xf32, #tpu.memory_space<vmem>>, %arg4: memref<128x128xf32, #tpu.memory_space<vmem>>) attributes {dimension_semantics = [#tpu.dimension_semantics<parallel>], iteration_bounds = array<i64: 1>, scalar_prefetch = 0 : i64, scratch_operands = 0 : i64, tpu.core_type = #tpu.core_type<tc>, window_params = [{transform_indices = @transform_0, window_bounds = array<i64: 128, 128>}, {pipeline_mode = #tpu.pipeline_mode<synchronous>, transform_indices = @transform_1, window_bounds = array<i64: 1, 128>}, {pipeline_mode = #tpu.pipeline_mode<synchronous>, transform_indices = @transform_2, window_bounds = array<i64: 1, 128>}, {transform_indices = @transform_3, window_bounds = array<i64: 128, 128>}]} {
    %c0 = arith.constant 0 : index
    %c0_0 = arith.constant 0 : index
    %0 = vector.load %arg1[%c0, %c0_0] : memref<128x128xbf16, #tpu.memory_space<vmem>>, vector<128x128xbf16>
    %1 = arith.extf %0 : vector<128x128xbf16> to vector<128x128xf32>
    %c0_1 = arith.constant 0 : index
    %c0_2 = arith.constant 0 : index
    %2 = vector.load %arg2[%c0_1, %c0_2] : memref<1x128xf32, #tpu.memory_space<vmem>>, vector<1x128xf32>
    %3 = vector.broadcast %2 : vector<1x128xf32> to vector<128x128xf32>
    %4 = arith.mulf %1, %3 : vector<128x128xf32>
    %c0_3 = arith.constant 0 : index
    %c0_4 = arith.constant 0 : index
    %5 = vector.load %arg3[%c0_3, %c0_4] : memref<1x128xf32, #tpu.memory_space<vmem>>, vector<1x128xf32>
    %6 = vector.broadcast %5 : vector<1x128xf32> to vector<128x128xf32>
    %7 = arith.addf %4, %6 : vector<128x128xf32>
    %cst = arith.constant 0.000000e+00 : f32
    %8 = vector.broadcast %cst : f32 to vector<128x128xf32>
    %9 = arith.maximumf %7, %8 : vector<128x128xf32>
    %c0_5 = arith.constant 0 : index
    %c0_6 = arith.constant 0 : index
    %10 = vector.load %arg4[%c0_5, %c0_6] : memref<128x128xf32, #tpu.memory_space<vmem>>, vector<128x128xf32>
    tpu.vector_store %arg4[%c0_5, %c0_6], %9 {strides = array<i32>} : memref<128x128xf32, #tpu.memory_space<vmem>>, vector<128x128xf32>,
    return
  }
  func.func @transform_0(%arg0: i32) -> (i32, i32) {
    %c0_i32 = arith.constant 0 : i32
    %c0_i32_0 = arith.constant 0 : i32
    return %arg0, %c0_i32 : i32, i32
  }
  func.func @transform_1(%arg0: i32) -> (i32, i32) {
    %c0_i32 = arith.constant 0 : i32
    %c0_i32_0 = arith.constant 0 : i32
    %c0_i32_1 = arith.constant 0 : i32
    return %c0_i32, %c0_i32_0 : i32, i32
  }
  func.func @transform_2(%arg0: i32) -> (i32, i32) {
    %c0_i32 = arith.constant 0 : i32
    %c0_i32_0 = arith.constant 0 : i32
    %c0_i32_1 = arith.constant 0 : i32
    return %c0_i32, %c0_i32_0 : i32, i32
  }
  func.func @transform_3(%arg0: i32) -> (i32, i32) {
    %c0_i32 = arith.constant 0 : i32
    %c0_i32_0 = arith.constant 0 : i32
    return %arg0, %c0_i32 : i32, i32
  }
}

</mosaic_0001>

<llo_original>
// kernel: _lambda_.5
$region0: #{_lambda_.5}
  #allocation0 [shape = 'u32[]', space=smem, size = 0x4, offset = 0x4, fixed_abs, tag = 'smem constant byte address 0x4 - core index']
  #allocation1 [shape = 'u32[144,128]{1,0:T(1,128)}', space=vmem, size = 0x12000, scoped, tag = 'internal scratch']
  %s0 = inlined_call_operand.vmem [shape: bf16[3,2,256,288], index: 0, kind: input, shape index: {}]
  %s1 = inlined_call_operand.vmem [shape: bf16[3,288,32], index: 1, kind: input, shape index: {}]
  %s2 = inlined_call_operand.vmem [shape: bf16[3,2,256,32], index: 2, kind: output, shape index: {0}]
  %s3 = inlined_call_operand.vmem [shape: f32[3,2,1,32], index: 3, kind: output, shape index: {1}]
  %s4 = inlined_call_operand.vmem [shape: f32[3,2,1,32], index: 4, kind: output, shape index: {2}]
  %5 = xla_tuple %s2, %s3, %s4
  %s6 = sld [smem:[#allocation0]]
  $region65: #{_lambda_.5} parent=0
    _
  %s8 = ssub.s32 1, %s6
  %s9 = scalar_select 0, %s8, %s6
  loop: start=0, step=1, limit=8
  $region2: #{_lambda_.5} parent=0 // loop_pre_header
    _
  $region3: #{_lambda_.5} parent=0 // loop_header
    %s11 = sphi 0, %s15
    %p12 = scmp.ge.s32.totalorder %s11, 8
    %s18 = sphi 0, %s37
    %s19 = sphi 0, %s33
    %s20 = sphi 0, %s29
    %s21 = sphi 0, %s18
    %s22 = sphi 0, %s19
    %s23 = sphi 0, %s20
    %s24 = sphi 0, %s21
    %s25 = sphi 0, %s22
    %s26 = sphi 0, %s23
    %s44 = sphi 0, %s46
    %s47 = sphi 0, %s44
    %s48 = sphi 0, %s47
    %s64 = sphi 0, %s48
    %s70 = sphi 0, %s72
    %s73 = sphi 0, %s70
    %s74 = sphi 0, %s73
    %s90 = sphi 0, %s74
    %s100 = sphi 0, %s102
    %s103 = sphi 0, %s100
    %s104 = sphi 0, %s103
    %s120 = sphi 0, %s104
    %s128 = sphi 0, %s130
    %s131 = sphi 0, %s128
    %s132 = sphi 0, %s131
    %s148 = sphi 0, %s132
    %s156 = sphi 0, %s158
    %s159 = sphi 0, %s156
    %s160 = sphi 0, %s159
    %s176 = sphi 0, %s160
  $region4: #{_lambda_.5} parent=0 // loop_header_branch
    %14 = sbr.rel (%p12) target = $region8
  $region5: #{_lambda_.5} parent=0 // loop_body
    %s16 = ssub.s32 %s11, 1
    %s17 = ssub.s32 %s11, 2
    %s27 = sadd.s32 1, %s20
    %p28 = scmp.ge.s32.totalorder %s27, 1
    %s29 = scalar_select %p28, 0, %s27
    %s30 = sadd.s32 1, %s19
    %s31 = scalar_select %p28, %s30, %s19
    %p32 = scmp.ge.s32.totalorder %s31, 2
    %s33 = scalar_select %p32, 0, %s31
    %s34 = sadd.s32 1, %s18
    %s35 = scalar_select %p32, %s34, %s18
    %p36 = scmp.ge.s32.totalorder %s35, 3
    %s37 = scalar_select %p36, 0, %s35
    %s38 = ssub.s32 %s18, %s37
    %s39 = ssub.s32 %s19, %s33
    %s40 = sor.u32 %s38, %s39
    %s41 = ssub.s32 %s20, %s29
    %s42 = sor.u32 %s40, %s41
    %p43 = scmp.eq.s32.totalorder %s42, 0
    %s45 = sadd.s32 %s44, 1
    %s46 = scalar_select %p43, %s44, %s45
    %p49 = pneg %p43
    %p50 = scmp.eq.s32.totalorder %s11, 5
    %p51 = por %p49, %p50
    %p52 = scmp.ne.s32.totalorder %s44, %s47
    %p53 = scmp.eq.s32.totalorder %s11, 0
    %p54 = por %p52, %p53
    %p55 = scmp.ne.s32.totalorder %s44, %s47
    %p56 = scmp.eq.s32.totalorder %s16, 5
    %p57 = por %p55, %p56
    %p58 = scmp.ne.s32.totalorder %s47, %s48
    %p59 = scmp.eq.s32.totalorder %s16, 0
    %p60 = por %p58, %p59
    %p61 = scmp.ne.s32.totalorder %s47, %s48
    %p62 = scmp.eq.s32.totalorder %s17, 5
    %p63 = por %p61, %p62
    %p65 = scmp.ne.s32.totalorder %s48, %s64
    %p66 = scmp.eq.s32.totalorder %s17, 0
    %p67 = por %p65, %p66
    %s68 = ssub.s32 %s18, %s37
    %p69 = scmp.eq.s32.totalorder %s68, 0
    %s71 = sadd.s32 %s70, 1
    %s72 = scalar_select %p69, %s70, %s71
    %p75 = pneg %p69
    %p76 = scmp.eq.s32.totalorder %s11, 5
    %p77 = por %p75, %p76
    %p78 = scmp.ne.s32.totalorder %s70, %s73
    %p79 = scmp.eq.s32.totalorder %s11, 0
    %p80 = por %p78, %p79
    %p81 = scmp.ne.s32.totalorder %s70, %s73
    %p82 = scmp.eq.s32.totalorder %s16, 5
    %p83 = por %p81, %p82
    %p84 = scmp.ne.s32.totalorder %s73, %s74
    %p85 = scmp.eq.s32.totalorder %s16, 0
    %p86 = por %p84, %p85
    %p87 = scmp.ne.s32.totalorder %s73, %s74
    %p88 = scmp.eq.s32.totalorder %s17, 5
    %p89 = por %p87, %p88
    %p91 = scmp.ne.s32.totalorder %s74, %s90
    %p92 = scmp.eq.s32.totalorder %s17, 0
    %p93 = por %p91, %p92
    %s94 = ssub.s32 %s18, %s37
    %s95 = ssub.s32 %s19, %s33
    %s96 = sor.u32 %s94, %s95
    %s97 = ssub.s32 %s20, %s29
    %s98 = sor.u32 %s96, %s97
    %p99 = scmp.eq.s32.totalorder %s98, 0
    %s101 = sadd.s32 %s100, 1
    %s102 = scalar_select %p99, %s100, %s101
    %p105 = pneg %p99
    %p106 = scmp.eq.s32.totalorder %s11, 5
    %p107 = por %p105, %p106
    %p108 = scmp.ne.s32.totalorder %s100, %s103
    %p109 = scmp.eq.s32.totalorder %s11, 0
    %p110 = por %p108, %p109
    %p111 = scmp.ne.s32.totalorder %s100, %s103
    %p112 = scmp.eq.s32.totalorder %s16, 5
    %p113 = por %p111, %p112
    %p114 = scmp.ne.s32.totalorder %s103, %s104
    %p115 = scmp.eq.s32.totalorder %s16, 0
    %p116 = por %p114, %p115
    %p117 = scmp.ne.s32.totalorder %s103, %s104
    %p118 = scmp.eq.s32.totalorder %s17, 5
    %p119 = por %p117, %p118
    %p121 = scmp.ne.s32.totalorder %s104, %s120
    %p122 = scmp.eq.s32.totalorder %s17, 0
    %p123 = por %p121, %p122
    %s124 = ssub.s32 %s18, %s37
    %s125 = ssub.s32 %s19, %s33
    %s126 = sor.u32 %s124, %s125
    %p127 = scmp.eq.s32.totalorder %s126, 0
    %s129 = sadd.s32 %s128, 1
    %s130 = scalar_select %p127, %s128, %s129
    %p133 = pneg %p127
    %p134 = scmp.eq.s32.totalorder %s11, 5
    %p135 = por %p133, %p134
    %p136 = scmp.ne.s32.totalorder %s128, %s131
    %p137 = scmp.eq.s32.totalorder %s11, 0
    %p138 = por %p136, %p137
    %p139 = scmp.ne.s32.totalorder %s128, %s131
    %p140 = scmp.eq.s32.totalorder %s16, 5
    %p141 = por %p139, %p140
    %p142 = scmp.ne.s32.totalorder %s131, %s132
    %p143 = scmp.eq.s32.totalorder %s16, 0
    %p144 = por %p142, %p143
    %p145 = scmp.ne.s32.totalorder %s131, %s132
    %p146 = scmp.eq.s32.totalorder %s17, 5
    %p147 = por %p145, %p146
    %p149 = scmp.ne.s32.totalorder %s132, %s148
    %p150 = scmp.eq.s32.totalorder %s17, 0
    %p151 = por %p149, %p150
    %s152 = ssub.s32 %s18, %s37
    %s153 = ssub.s32 %s19, %s33
    %s154 = sor.u32 %s152, %s153
    %p155 = scmp.eq.s32.totalorder %s154, 0
    %s157 = sadd.s32 %s156, 1
    %s158 = scalar_select %p155, %s156, %s157
    %p161 = pneg %p155
    %p162 = scmp.eq.s32.totalorder %s11, 5
    %p163 = por %p161, %p162
    %p164 = scmp.ne.s32.totalorder %s156, %s159
    %p165 = scmp.eq.s32.totalorder %s11, 0
    %p166 = por %p164, %p165
    %p167 = scmp.ne.s32.totalorder %s156, %s159
    %p168 = scmp.eq.s32.totalorder %s16, 5
    %p169 = por %p167, %p168
    %p170 = scmp.ne.s32.totalorder %s159, %s160
    %p171 = scmp.eq.s32.totalorder %s16, 0
    %p172 = por %p170, %p171
    %p173 = scmp.ne.s32.totalorder %s159, %s160
    %p174 = scmp.eq.s32.totalorder %s17, 5
    %p175 = por %p173, %p174
    %p177 = scmp.ne.s32.totalorder %s160, %s176
    %p178 = scmp.eq.s32.totalorder %s17, 0
    %p179 = por %p177, %p178
    %p180 = scmp.le.s32.totalorder 1, %s11
    %p181 = scmp.lt.s32.totalorder %s11, 7
    %p182 = pnand %p180, %p181
    %p183 = pneg %p182
    // Predicated region
    $region9: #{_lambda_.5} parent=5 // pred_check
      _
    $region10: #{_lambda_.5} parent=5 // pred_check_branch
      %185 = sbr.rel (%p182) target = $region12
    $region11: #{_lambda_.5} parent=5 // pred_region
      %s186 = ssub.s32 %s11, 1
    $region12: #{_lambda_.5} parent=5 // pred_fallthru
      _
    %p187 = scmp.lt.s32.totalorder %s11, 6
    // Predicated region
    $region13: #{_lambda_.5} parent=5 // pred_check
      %p188 = pneg %p187
    $region14: #{_lambda_.5} parent=5 // pred_check_branch
      %190 = sbr.rel (%p188) target = $region16
    $region15: #{_lambda_.5} parent=5 // pred_region
      // Predicated region
      $region17: #{_lambda_.5} parent=15 // pred_check
        %p191 = pneg %p54
      $region18: #{_lambda_.5} parent=15 // pred_check_branch
        %193 = sbr.rel (%p191) target = $region20
      $region19: #{_lambda_.5} parent=15 // pred_region
        %s194 = smul.u32 32, %s20
        %p195 = scmp.lt.s32.totalorder %s18, 2
        %s196 = scalar_select %p195, %s18, 2
        %p197 = scmp.lt.s32.totalorder %s19, 1
        %s198 = scalar_select %p197, %s19, 1
        %p199 = scmp.lt.s32.totalorder %s194, 31
        %s200 = scalar_select %p199, %s194, 31
        %s201 = smul.addr %s200, 3
        %s202 = smul.addr %s198, 96
        %s203 = sadd.s32 %s201, %s202
        %s204 = smul.addr %s196, 192
        %s205 = sadd.s32 %s203, %s204
        %s206 = smul.addr %s205, 4
        %s207 = scalar_lea.vmem %s0, %s206
        %s208 = smul.u32 32, %s20
      $region20: #{_lambda_.5} parent=15 // pred_fallthru
        _
      // Predicated region
      $region21: #{_lambda_.5} parent=15 // pred_check
        %p209 = pneg %p80
      $region22: #{_lambda_.5} parent=15 // pred_check_branch
        %211 = sbr.rel (%p209) target = $region24
      $region23: #{_lambda_.5} parent=15 // pred_region
        %p212 = scmp.lt.s32.totalorder %s18, 2
        %s213 = scalar_select %p212, %s18, 2
        %s214 = smul.addr %s213, 36
        %s215 = smul.addr %s214, 4
        %s216 = scalar_lea.vmem %s1, %s215
      $region24: #{_lambda_.5} parent=15 // pred_fallthru
        _
    $region16: #{_lambda_.5} parent=5 // pred_fallthru
      _
    %p217 = scmp.le.s32.totalorder 1, %s11
    %p218 = scmp.lt.s32.totalorder %s11, 7
    %p219 = pnand %p217, %p218
    %p220 = pneg %p219
    // Predicated region
    $region25: #{_lambda_.5} parent=5 // pred_check
      _
    $region26: #{_lambda_.5} parent=5 // pred_check_branch
      %222 = sbr.rel (%p219) target = $region28
    $region27: #{_lambda_.5} parent=5 // pred_region
      %s223 = ssub.s32 %s11, 1
      %s224 = smul.u32 32, %s23
      %p225 = scmp.lt.s32.totalorder %s21, 2
      %s226 = scalar_select %p225, %s21, 2
      %p227 = scmp.lt.s32.totalorder %s22, 1
      %s228 = scalar_select %p227, %s22, 1
      %p229 = scmp.lt.s32.totalorder %s224, 31
      %s230 = scalar_select %p229, %s224, 31
      %s231 = smul.addr %s230, 3
      %s232 = smul.addr %s228, 96
      %s233 = sadd.s32 %s231, %s232
      %s234 = smul.addr %s226, 192
      %s235 = sadd.s32 %s233, %s234
      %s236 = smul.addr %s235, 4
      %s237 = scalar_lea.vmem %s0, %s236
      %p238 = pneg %p60
      %p239 = pneg %p57
      %p240 = scmp.lt.s32.totalorder %s21, 2
      %s241 = scalar_select %p240, %s21, 2
      %s242 = smul.addr %s241, 36
      %s243 = smul.addr %s242, 4
      %s244 = scalar_lea.vmem %s1, %s243
      %p245 = pneg %p86
      %p246 = pneg %p83
      %p247 = pneg %p116
      %p248 = pneg %p113
      %s249 = smul.u32 32, %s23
      %p250 = scmp.lt.s32.totalorder %s21, 2
      %s251 = scalar_select %p250, %s21, 2
      %p252 = scmp.lt.s32.totalorder %s22, 1
      %s253 = scalar_select %p252, %s22, 1
      %p254 = scmp.lt.s32.totalorder %s249, 31
      %s255 = scalar_select %p254, %s249, 31
      %s256 = smul.addr %s253, 32
      %s257 = sadd.s32 %s255, %s256
      %s258 = smul.addr %s251, 64
      %s259 = sadd.s32 %s257, %s258
      %s260 = smul.addr %s259, 4
      %s261 = scalar_lea.vmem %s2, %s260
      %p262 = pneg %p144
      %p263 = pneg %p141
      %p264 = scmp.lt.s32.totalorder %s21, 2
      %s265 = scalar_select %p264, %s21, 2
      %p266 = scmp.lt.s32.totalorder %s22, 1
      %s267 = scalar_select %p266, %s22, 1
      %s268 = smul.addr %s265, 2
      %s269 = sadd.s32 %s267, %s268
      %s270 = scalar_lea.vmem %s3, %s269
      %p271 = pneg %p172
      %p272 = pneg %p169
      %p273 = scmp.lt.s32.totalorder %s21, 2
      %s274 = scalar_select %p273, %s21, 2
      %p275 = scmp.lt.s32.totalorder %s22, 1
      %s276 = scalar_select %p275, %s22, 1
      %s277 = smul.addr %s274, 2
      %s278 = sadd.s32 %s276, %s277
      %s279 = scalar_lea.vmem %s4, %s278
      %s280 = smul.u32 32, %s23
      %p281 = scmp.lt.s32.totalorder %s21, 2
      %s282 = scalar_select %p281, %s21, 2
      %p283 = scmp.lt.s32.totalorder %s22, 1
      %s284 = scalar_select %p283, %s22, 1
      %p285 = scmp.lt.s32.totalorder %s280, 31
      %s286 = scalar_select %p285, %s280, 31
      %s287 = smul.addr %s286, 3
      %s288 = smul.addr %s284, 96
      %s289 = sadd.s32 %s287, %s288
      %s290 = smul.addr %s282, 192
      %s291 = sadd.s32 %s289, %s290
      %s292 = smul.addr %s291, 4
      %s293 = scalar_lea.vmem %s0, %s292
      %s294 = smul.u32 32, %s23
      %p295 = scmp.lt.s32.totalorder %s21, 2
      %s296 = scalar_select %p295, %s21, 2
      %s297 = smul.addr %s296, 36
      %s298 = smul.addr %s297, 4
      %s299 = scalar_lea.vmem %s1, %s298
      %s300 = smul.u32 32, %s23
      %p301 = scmp.lt.s32.totalorder %s21, 2
      %s302 = scalar_select %p301, %s21, 2
      %p303 = scmp.lt.s32.totalorder %s22, 1
      %s304 = scalar_select %p303, %s22, 1
      %p305 = scmp.lt.s32.totalorder %s300, 31
      %s306 = scalar_select %p305, %s300, 31
      %s307 = smul.addr %s304, 32
      %s308 = sadd.s32 %s306, %s307
      %s309 = smul.addr %s302, 64
      %s310 = sadd.s32 %s308, %s309
      %s311 = smul.addr %s310, 4
      %s312 = scalar_lea.vmem %s2, %s311
      %s313 = smul.u32 32, %s23
      %p314 = scmp.lt.s32.totalorder %s21, 2
      %s315 = scalar_select %p314, %s21, 2
      %p316 = scmp.lt.s32.totalorder %s22, 1
      %s317 = scalar_select %p316, %s22, 1
      %s318 = smul.addr %s315, 2
      %s319 = sadd.s32 %s317, %s318
      %s320 = scalar_lea.vmem %s3, %s319
      %p321 = scmp.lt.s32.totalorder %s21, 2
      %s322 = scalar_select %p321, %s21, 2
      %p323 = scmp.lt.s32.totalorder %s22, 1
      %s324 = scalar_select %p323, %s22, 1
      %s325 = smul.addr %s322, 2
      %s326 = sadd.s32 %s324, %s325
      %s327 = scalar_lea.vmem %s4, %s326
      %v329 = vld [vmem:[%s293] sm:$0xff]
      %v330 = vld [vmem:[%s293 + $0x8] sm:$0xf]
      %v331 = vld [vmem:[%s293 + $0xc] sm:$0xff]
      %v332 = vld [vmem:[%s293 + $0x14] sm:$0xf]
      %v333 = vld [vmem:[%s293 + $0x18] sm:$0xff]
      %v334 = vld [vmem:[%s293 + $0x20] sm:$0xf]
      %v335 = vld [vmem:[%s293 + $0x24] sm:$0xff]
      %v336 = vld [vmem:[%s293 + $0x2c] sm:$0xf]
      %v337 = vld [vmem:[%s293 + $0x30] sm:$0xff]
      %v338 = vld [vmem:[%s293 + $0x38] sm:$0xf]
      %v339 = vld [vmem:[%s293 + $0x3c] sm:$0xff]
      %v340 = vld [vmem:[%s293 + $0x44] sm:$0xf]
      %v341 = vld [vmem:[%s293 + $0x48] sm:$0xff]
      %v342 = vld [vmem:[%s293 + $0x50] sm:$0xf]
      %v343 = vld [vmem:[%s293 + $0x54] sm:$0xff]
      %v344 = vld [vmem:[%s293 + $0x5c] sm:$0xf]
      %v345 = vld [vmem:[%s293 + $0x60] sm:$0xff]
      %v346 = vld [vmem:[%s293 + $0x68] sm:$0xf]
      %v347 = vld [vmem:[%s293 + $0x6c] sm:$0xff]
      %v348 = vld [vmem:[%s293 + $0x74] sm:$0xf]
      %v349 = vld [vmem:[%s293 + $0x78] sm:$0xff]
      %v350 = vld [vmem:[%s293 + $0x80] sm:$0xf]
      %v351 = vld [vmem:[%s293 + $0x84] sm:$0xff]
      %v352 = vld [vmem:[%s293 + $0x8c] sm:$0xf]
      %v353 = vld [vmem:[%s293 + $0x90] sm:$0xff]
      %v354 = vld [vmem:[%s293 + $0x98] sm:$0xf]
      %v355 = vld [vmem:[%s293 + $0x9c] sm:$0xff]
      %v356 = vld [vmem:[%s293 + $0xa4] sm:$0xf]
      %v357 = vld [vmem:[%s293 + $0xa8] sm:$0xff]
      %v358 = vld [vmem:[%s293 + $0xb0] sm:$0xf]
      %v359 = vld [vmem:[%s293 + $0xb4] sm:$0xff]
      %v360 = vld [vmem:[%s293 + $0xbc] sm:$0xf]
      %v361 = vld [vmem:[%s293 + $0xc0] sm:$0xff]
      %v362 = vld [vmem:[%s293 + $0xc8] sm:$0xf]
      %v363 = vld [vmem:[%s293 + $0xcc] sm:$0xff]
      %v364 = vld [vmem:[%s293 + $0xd4] sm:$0xf]
      %v365 = vld [vmem:[%s293 + $0xd8] sm:$0xff]
      %v366 = vld [vmem:[%s293 + $0xe0] sm:$0xf]
      %v367 = vld [vmem:[%s293 + $0xe4] sm:$0xff]
      %v368 = vld [vmem:[%s293 + $0xec] sm:$0xf]
      %v369 = vld [vmem:[%s293 + $0xf0] sm:$0xff]
      %v370 = vld [vmem:[%s293 + $0xf8] sm:$0xf]
      %v371 = vld [vmem:[%s293 + $0xfc] sm:$0xff]
      %v372 = vld [vmem:[%s293 + $0x104] sm:$0xf]
      %v373 = vld [vmem:[%s293 + $0x108] sm:$0xff]
      %v374 = vld [vmem:[%s293 + $0x110] sm:$0xf]
      %v375 = vld [vmem:[%s293 + $0x114] sm:$0xff]
      %v376 = vld [vmem:[%s293 + $0x11c] sm:$0xf]
      %v377 = vld [vmem:[%s293 + $0x120] sm:$0xff]
      %v378 = vld [vmem:[%s293 + $0x128] sm:$0xf]
      %v379 = vld [vmem:[%s293 + $0x12c] sm:$0xff]
      %v380 = vld [vmem:[%s293 + $0x134] sm:$0xf]
      %v381 = vld [vmem:[%s293 + $0x138] sm:$0xff]
      %v382 = vld [vmem:[%s293 + $0x140] sm:$0xf]
      %v383 = vld [vmem:[%s293 + $0x144] sm:$0xff]
      %v384 = vld [vmem:[%s293 + $0x14c] sm:$0xf]
      %v385 = vld [vmem:[%s293 + $0x150] sm:$0xff]
      %v386 = vld [vmem:[%s293 + $0x158] sm:$0xf]
      %v387 = vld [vmem:[%s293 + $0x15c] sm:$0xff]
      %v388 = vld [vmem:[%s293 + $0x164] sm:$0xf]
      %v389 = vld [vmem:[%s293 + $0x168] sm:$0xff]
      %v390 = vld [vmem:[%s293 + $0x170] sm:$0xf]
      %v391 = vld [vmem:[%s293 + $0x174] sm:$0xff]
      %v392 = vld [vmem:[%s293 + $0x17c] sm:$0xf]
      %v393 = vld [vmem:[%s299] sm:$0xf]
      %v394 = vld [vmem:[%s299 + $0x4] sm:$0xf]
      %v395 = vld [vmem:[%s299 + $0x8] sm:$0xf]
      %v396 = vld [vmem:[%s299 + $0xc] sm:$0xf]
      %v397 = vld [vmem:[%s299 + $0x10] sm:$0xf]
      %v398 = vld [vmem:[%s299 + $0x14] sm:$0xf]
      %v399 = vld [vmem:[%s299 + $0x18] sm:$0xf]
      %v400 = vld [vmem:[%s299 + $0x1c] sm:$0xf]
      %v401 = vld [vmem:[%s299 + $0x20] sm:$0xf]
      %v402 = vld [vmem:[%s299 + $0x24] sm:$0xf]
      %v403 = vld [vmem:[%s299 + $0x28] sm:$0xf]
      %v404 = vld [vmem:[%s299 + $0x2c] sm:$0xf]
      %v405 = vld [vmem:[%s299 + $0x30] sm:$0xf]
      %v406 = vld [vmem:[%s299 + $0x34] sm:$0xf]
      %v407 = vld [vmem:[%s299 + $0x38] sm:$0xf]
      %v408 = vld [vmem:[%s299 + $0x3c] sm:$0xf]
      %v409 = vld [vmem:[%s299 + $0x40] sm:$0xf]
      %v410 = vld [vmem:[%s299 + $0x44] sm:$0xf]
      %v411 = vld [vmem:[%s299 + $0x48] sm:$0xf]
      %v412 = vld [vmem:[%s299 + $0x4c] sm:$0xf]
      %v413 = vld [vmem:[%s299 + $0x50] sm:$0xf]
      %v414 = vld [vmem:[%s299 + $0x54] sm:$0xf]
      %v415 = vld [vmem:[%s299 + $0x58] sm:$0xf]
      %v416 = vld [vmem:[%s299 + $0x5c] sm:$0xf]
      %v417 = vld [vmem:[%s299 + $0x60] sm:$0xf]
      %v418 = vld [vmem:[%s299 + $0x64] sm:$0xf]
      %v419 = vld [vmem:[%s299 + $0x68] sm:$0xf]
      %v420 = vld [vmem:[%s299 + $0x6c] sm:$0xf]
      %v421 = vld [vmem:[%s299 + $0x70] sm:$0xf]
      %v422 = vld [vmem:[%s299 + $0x74] sm:$0xf]
      %v423 = vld [vmem:[%s299 + $0x78] sm:$0xf]
      %v424 = vld [vmem:[%s299 + $0x7c] sm:$0xf]
      %v425 = vld [vmem:[%s299 + $0x80] sm:$0xf]
      %v426 = vld [vmem:[%s299 + $0x84] sm:$0xf]
      %v427 = vld [vmem:[%s299 + $0x88] sm:$0xf]
      %v428 = vld [vmem:[%s299 + $0x8c] sm:$0xf]
      %v493 = vunpack.c.l.b16 %v329
      %v494 = vunpack.c.h.b16 %v329
      %v495 = vunpack.c.l.b16 %v330
      %v496 = vunpack.c.l.b16 %v331
      %v497 = vunpack.c.h.b16 %v331
      %v498 = vunpack.c.l.b16 %v332
      %v499 = vunpack.c.l.b16 %v333
      %v500 = vunpack.c.h.b16 %v333
      %v501 = vunpack.c.l.b16 %v334
      %v502 = vunpack.c.l.b16 %v335
      %v503 = vunpack.c.h.b16 %v335
      %v504 = vunpack.c.l.b16 %v336
      %v505 = vunpack.c.l.b16 %v337
      %v506 = vunpack.c.h.b16 %v337
      %v507 = vunpack.c.l.b16 %v338
      %v508 = vunpack.c.l.b16 %v339
      %v509 = vunpack.c.h.b16 %v339
      %v510 = vunpack.c.l.b16 %v340
      %v511 = vunpack.c.l.b16 %v341
      %v512 = vunpack.c.h.b16 %v341
      %v513 = vunpack.c.l.b16 %v342
      %v514 = vunpack.c.l.b16 %v343
      %v515 = vunpack.c.h.b16 %v343
      %v516 = vunpack.c.l.b16 %v344
      %v517 = vunpack.c.l.b16 %v345
      %v518 = vunpack.c.h.b16 %v345
      %v519 = vunpack.c.l.b16 %v346
      %v520 = vunpack.c.l.b16 %v347
      %v521 = vunpack.c.h.b16 %v347
      %v522 = vunpack.c.l.b16 %v348
      %v523 = vunpack.c.l.b16 %v349
      %v524 = vunpack.c.h.b16 %v349
      %v525 = vunpack.c.l.b16 %v350
      %v526 = vunpack.c.l.b16 %v351
      %v527 = vunpack.c.h.b16 %v351
      %v528 = vunpack.c.l.b16 %v352
      %v529 = vunpack.c.l.b16 %v353
      %v530 = vunpack.c.h.b16 %v353
      %v531 = vunpack.c.l.b16 %v354
      %v532 = vunpack.c.l.b16 %v355
      %v533 = vunpack.c.h.b16 %v355
      %v534 = vunpack.c.l.b16 %v356
      %v535 = vunpack.c.l.b16 %v357
      %v536 = vunpack.c.h.b16 %v357
      %v537 = vunpack.c.l.b16 %v358
      %v538 = vunpack.c.l.b16 %v359
      %v539 = vunpack.c.h.b16 %v359
      %v540 = vunpack.c.l.b16 %v360
      %v541 = vunpack.c.l.b16 %v361
      %v542 = vunpack.c.h.b16 %v361
      %v543 = vunpack.c.l.b16 %v362
      %v544 = vunpack.c.l.b16 %v363
      %v545 = vunpack.c.h.b16 %v363
      %v546 = vunpack.c.l.b16 %v364
      %v547 = vunpack.c.l.b16 %v365
      %v548 = vunpack.c.h.b16 %v365
      %v549 = vunpack.c.l.b16 %v366
      %v550 = vunpack.c.l.b16 %v367
      %v551 = vunpack.c.h.b16 %v367
      %v552 = vunpack.c.l.b16 %v368
      %v553 = vunpack.c.l.b16 %v369
      %v554 = vunpack.c.h.b16 %v369
      %v555 = vunpack.c.l.b16 %v370
      %v556 = vunpack.c.l.b16 %v371
      %v557 = vunpack.c.h.b16 %v371
      %v558 = vunpack.c.l.b16 %v372
      %v559 = vunpack.c.l.b16 %v373
      %v560 = vunpack.c.h.b16 %v373
      %v561 = vunpack.c.l.b16 %v374
      %v562 = vunpack.c.l.b16 %v375
      %v563 = vunpack.c.h.b16 %v375
      %v564 = vunpack.c.l.b16 %v376
      %v565 = vunpack.c.l.b16 %v377
      %v566 = vunpack.c.h.b16 %v377
      %v567 = vunpack.c.l.b16 %v378
      %v568 = vunpack.c.l.b16 %v379
      %v569 = vunpack.c.h.b16 %v379
      %v570 = vunpack.c.l.b16 %v380
      %v571 = vunpack.c.l.b16 %v381
      %v572 = vunpack.c.h.b16 %v381
      %v573 = vunpack.c.l.b16 %v382
      %v574 = vunpack.c.l.b16 %v383
      %v575 = vunpack.c.h.b16 %v383
      %v576 = vunpack.c.l.b16 %v384
      %v577 = vunpack.c.l.b16 %v385
      %v578 = vunpack.c.h.b16 %v385
      %v579 = vunpack.c.l.b16 %v386
      %v580 = vunpack.c.l.b16 %v387
      %v581 = vunpack.c.h.b16 %v387
      %v582 = vunpack.c.l.b16 %v388
      %v583 = vunpack.c.l.b16 %v389
      %v584 = vunpack.c.h.b16 %v389
      %v585 = vunpack.c.l.b16 %v390
      %v586 = vunpack.c.l.b16 %v391
      %v587 = vunpack.c.h.b16 %v391
      %v588 = vunpack.c.l.b16 %v392
      %v589 = vpack.c.b16 %v496, %v493
      %v590 = vpack.c.b16 %v497, %v494
      %v591 = vpack.c.b16 %v498, %v495
      %v592 = vpack.c.b16 %v502, %v499
      %v593 = vpack.c.b16 %v503, %v500
      %v594 = vpack.c.b16 %v504, %v501
      %v595 = vpack.c.b16 %v508, %v505
      %v596 = vpack.c.b16 %v509, %v506
      %v597 = vpack.c.b16 %v510, %v507
      %v598 = vpack.c.b16 %v514, %v511
      %v599 = vpack.c.b16 %v515, %v512
      %v600 = vpack.c.b16 %v516, %v513
      %v601 = vpack.c.b16 %v520, %v517
      %v602 = vpack.c.b16 %v521, %v518
      %v603 = vpack.c.b16 %v522, %v519
      %v604 = vpack.c.b16 %v526, %v523
      %v605 = vpack.c.b16 %v527, %v524
      %v606 = vpack.c.b16 %v528, %v525
      %v607 = vpack.c.b16 %v532, %v529
      %v608 = vpack.c.b16 %v533, %v530
      %v609 = vpack.c.b16 %v534, %v531
      %v610 = vpack.c.b16 %v538, %v535
      %v611 = vpack.c.b16 %v539, %v536
      %v612 = vpack.c.b16 %v540, %v537
      %v613 = vpack.c.b16 %v544, %v541
      %v614 = vpack.c.b16 %v545, %v542
      %v615 = vpack.c.b16 %v546, %v543
      %v616 = vpack.c.b16 %v550, %v547
      %v617 = vpack.c.b16 %v551, %v548
      %v618 = vpack.c.b16 %v552, %v549
      %v619 = vpack.c.b16 %v556, %v553
      %v620 = vpack.c.b16 %v557, %v554
      %v621 = vpack.c.b16 %v558, %v555
      %v622 = vpack.c.b16 %v562, %v559
      %v623 = vpack.c.b16 %v563, %v560
      %v624 = vpack.c.b16 %v564, %v561
      %v625 = vpack.c.b16 %v568, %v565
      %v626 = vpack.c.b16 %v569, %v566
      %v627 = vpack.c.b16 %v570, %v567
      %v628 = vpack.c.b16 %v574, %v571
      %v629 = vpack.c.b16 %v575, %v572
      %v630 = vpack.c.b16 %v576, %v573
      %v631 = vpack.c.b16 %v580, %v577
      %v632 = vpack.c.b16 %v581, %v578
      %v633 = vpack.c.b16 %v582, %v579
      %v634 = vpack.c.b16 %v586, %v583
      %v635 = vpack.c.b16 %v587, %v584
      %v636 = vpack.c.b16 %v588, %v585
      %v705 = vunpack.c.l.b16 %v393
      %v706 = vunpack.c.l.b16 %v394
      %v707 = vunpack.c.l.b16 %v395
      %v708 = vunpack.c.l.b16 %v396
      %v709 = vunpack.c.l.b16 %v397
      %v710 = vunpack.c.l.b16 %v398
      %v711 = vunpack.c.l.b16 %v399
      %v712 = vunpack.c.l.b16 %v400
      %v713 = vunpack.c.l.b16 %v401
      %v714 = vunpack.c.l.b16 %v402
      %v715 = vunpack.c.l.b16 %v403
      %v716 = vunpack.c.l.b16 %v404
      %v717 = vunpack.c.l.b16 %v405
      %v718 = vunpack.c.l.b16 %v406
      %v719 = vunpack.c.l.b16 %v407
      %v720 = vunpack.c.l.b16 %v408
      %v721 = vunpack.c.l.b16 %v409
      %v722 = vunpack.c.l.b16 %v410
      %v723 = vunpack.c.l.b16 %v411
      %v724 = vunpack.c.l.b16 %v412
      %v725 = vunpack.c.l.b16 %v413
      %v726 = vunpack.c.l.b16 %v414
      %v727 = vunpack.c.l.b16 %v415
      %v728 = vunpack.c.l.b16 %v416
      %v729 = vunpack.c.l.b16 %v417
      %v730 = vunpack.c.l.b16 %v418
      %v731 = vunpack.c.l.b16 %v419
      %v732 = vunpack.c.l.b16 %v420
      %v733 = vunpack.c.l.b16 %v421
      %v734 = vunpack.c.l.b16 %v422
      %v735 = vunpack.c.l.b16 %v423
      %v736 = vunpack.c.l.b16 %v424
      %v737 = vunpack.c.l.b16 %v425
      %v738 = vunpack.c.l.b16 %v426
      %v739 = vunpack.c.l.b16 %v427
      %v740 = vunpack.c.l.b16 %v428
      %v741 = vpack.c.b16 %v706, %v705
      %v742 = vpack.c.b16 %v708, %v707
      %v743 = vpack.c.b16 %v710, %v709
      %v744 = vpack.c.b16 %v712, %v711
      %v745 = vpack.c.b16 %v714, %v713
      %v746 = vpack.c.b16 %v716, %v715
      %v747 = vpack.c.b16 %v718, %v717
      %v748 = vpack.c.b16 %v720, %v719
      %v749 = vpack.c.b16 %v722, %v721
      %v750 = vpack.c.b16 %v724, %v723
      %v751 = vpack.c.b16 %v726, %v725
      %v752 = vpack.c.b16 %v728, %v727
      %v753 = vpack.c.b16 %v730, %v729
      %v754 = vpack.c.b16 %v732, %v731
      %v755 = vpack.c.b16 %v734, %v733
      %v756 = vpack.c.b16 %v736, %v735
      %v757 = vpack.c.b16 %v738, %v737
      %v758 = vpack.c.b16 %v740, %v739
      %vm777 = vcmask 261120
      %v779 = vsel %vm777, %v591, 0
      %v782 = vsel %vm777, %v594, 0
      %v785 = vsel %vm777, %v597, 0
      %v788 = vsel %vm777, %v600, 0
      %v791 = vsel %vm777, %v603, 0
      %v794 = vsel %vm777, %v606, 0
      %v797 = vsel %vm777, %v609, 0
      %v800 = vsel %vm777, %v612, 0
      %v803 = vsel %vm777, %v615, 0
      %v806 = vsel %vm777, %v618, 0
      %v809 = vsel %vm777, %v621, 0
      %v812 = vsel %vm777, %v624, 0
      %v815 = vsel %vm777, %v627, 0
      %v818 = vsel %vm777, %v630, 0
      %v821 = vsel %vm777, %v633, 0
      %v824 = vsel %vm777, %v636, 0
      %826 = vmatprep.subr.bf16.mxu0 0
      %827 = vmatpush1.bf16.msra.mxu0 %v741
      %828 = vmatprep.subr.bf16.mxu0 0
      %829 = vmatpush1.bf16.msra.mxu0 %v742
      %830 = vmatprep.subr.bf16.mxu0 0
      %831 = vmatpush1.bf16.msra.mxu0 %v743
      %832 = vmatprep.subr.bf16.mxu0 0
      %833 = vmatpush1.bf16.msra.mxu0 %v744
      %834 = vmatprep.subr.bf16.mxu0 0
      %835 = vmatpush1.bf16.msra.mxu0 %v745
      %836 = vmatprep.subr.bf16.mxu0 0
      %837 = vmatpush1.bf16.msra.mxu0 %v746
      %838 = vmatprep.subr.bf16.mxu0 0
      %839 = vmatpush1.bf16.msra.mxu0 %v747
      %840 = vmatprep.subr.bf16.mxu0 0
      %841 = vmatpush1.bf16.msra.mxu0 %v748
      %842 = vmatprep.subr.bf16.mxu0 0
      %843 = vmatpush1.bf16.msra.mxu0 %v749
      %844 = vmatprep.subr.bf16.mxu0 0
      %845 = vmatpush1.bf16.msra.mxu0 %v750
      %846 = vmatprep.subr.bf16.mxu0 0
      %847 = vmatpush1.bf16.msra.mxu0 %v751
      %848 = vmatprep.subr.bf16.mxu0 0
      %849 = vmatpush1.bf16.msra.mxu0 %v752
      %850 = vmatprep.subr.bf16.mxu0 0
      %851 = vmatpush1.bf16.msra.mxu0 %v753
      %852 = vmatprep.subr.bf16.mxu0 0
      %853 = vmatpush1.bf16.msra.mxu0 %v754
      %854 = vmatprep.subr.bf16.mxu0 0
      %855 = vmatpush1.bf16.msra.mxu0 %v755
      %856 = vmatprep.subr.bf16.mxu0 0
      %857 = vmatpush1.bf16.msra.mxu0 %v756
      %858 = vmatprep.mubr.bf16.mxu0 %v590
      %859 = vmatmul.mubr.bf16.gmra.mrb[0].mxu0 %v589
      %v860 = vpop.f32.mrb[0].mxu0
      %v861 = vadd.f32 0.0, %v860
      %v862 = vpop.f32.mrb[0].mxu0
      %v863 = vpop.f32.mrb[0].mxu0
      %v864 = vadd.f32 0.0, %v863
      %v865 = vpop.f32.mrb[0].mxu0
      %866 = vmatprep.mubr.bf16.mxu0 %v593
      %867 = vmatmul.mubr.bf16.gmra.mrb[0].mxu0 %v592
      %v868 = vpop.f32.mrb[0].mxu0
      %v869 = vadd.f32 0.0, %v868
      %v870 = vpop.f32.mrb[0].mxu0
      %v871 = vpop.f32.mrb[0].mxu0
      %v872 = vadd.f32 0.0, %v871
      %v873 = vpop.f32.mrb[0].mxu0
      %874 = vmatprep.mubr.bf16.mxu0 %v596
      %875 = vmatmul.mubr.bf16.gmra.mrb[0].mxu0 %v595
      %v876 = vpop.f32.mrb[0].mxu0
      %v877 = vadd.f32 0.0, %v876
      %v878 = vpop.f32.mrb[0].mxu0
      %v879 = vpop.f32.mrb[0].mxu0
      %v880 = vadd.f32 0.0, %v879
      %v881 = vpop.f32.mrb[0].mxu0
      %882 = vmatprep.mubr.bf16.mxu0 %v599
      %883 = vmatmul.mubr.bf16.gmra.mrb[0].mxu0 %v598
      %v884 = vpop.f32.mrb[0].mxu0
      %v885 = vadd.f32 0.0, %v884
      %v886 = vpop.f32.mrb[0].mxu0
      %v887 = vpop.f32.mrb[0].mxu0
      %v888 = vadd.f32 0.0, %v887
      %v889 = vpop.f32.mrb[0].mxu0
      %890 = vmatprep.mubr.bf16.mxu0 %v602
      %891 = vmatmul.mubr.bf16.gmra.mrb[0].mxu0 %v601
      %v892 = vpop.f32.mrb[0].mxu0
      %v893 = vadd.f32 0.0, %v892
      %v894 = vpop.f32.mrb[0].mxu0
      %v895 = vpop.f32.mrb[0].mxu0
      %v896 = vadd.f32 0.0, %v895
      %v897 = vpop.f32.mrb[0].mxu0
      %898 = vmatprep.mubr.bf16.mxu0 %v605
      %899 = vmatmul.mubr.bf16.gmra.mrb[0].mxu0 %v604
      %v900 = vpop.f32.mrb[0].mxu0
      %v901 = vadd.f32 0.0, %v900
      %v902 = vpop.f32.mrb[0].mxu0
      %v903 = vpop.f32.mrb[0].mxu0
      %v904 = vadd.f32 0.0, %v903
      %v905 = vpop.f32.mrb[0].mxu0
      %906 = vmatprep.mubr.bf16.mxu0 %v608
      %907 = vmatmul.mubr.bf16.gmra.mrb[0].mxu0 %v607
      %v908 = vpop.f32.mrb[0].mxu0
      %v909 = vadd.f32 0.0, %v908
      %v910 = vpop.f32.mrb[0].mxu0
      %v911 = vpop.f32.mrb[0].mxu0
      %v912 = vadd.f32 0.0, %v911
      %v913 = vpop.f32.mrb[0].mxu0
      %914 = vmatprep.mubr.bf16.mxu0 %v611
      %915 = vmatmul.mubr.bf16.gmra.mrb[0].mxu0 %v610
      %v916 = vpop.f32.mrb[0].mxu0
      %v917 = vadd.f32 0.0, %v916
      %v918 = vpop.f32.mrb[0].mxu0
      %v919 = vpop.f32.mrb[0].mxu0
      %v920 = vadd.f32 0.0, %v919
      %v921 = vpop.f32.mrb[0].mxu0
      %922 = vmatprep.mubr.bf16.mxu0 %v614
      %923 = vmatmul.mubr.bf16.gmra.mrb[0].mxu0 %v613
      %v924 = vpop.f32.mrb[0].mxu0
      %v925 = vadd.f32 0.0, %v924
      %v926 = vpop.f32.mrb[0].mxu0
      %v927 = vpop.f32.mrb[0].mxu0
      %v928 = vadd.f32 0.0, %v927
      %v929 = vpop.f32.mrb[0].mxu0
      %930 = vmatprep.mubr.bf16.mxu0 %v617
      %931 = vmatmul.mubr.bf16.gmra.mrb[0].mxu0 %v616
      %v932 = vpop.f32.mrb[0].mxu0
      %v933 = vadd.f32 0.0, %v932
      %v934 = vpop.f32.mrb[0].mxu0
      %v935 = vpop.f32.mrb[0].mxu0
      %v936 = vadd.f32 0.0, %v935
      %v937 = vpop.f32.mrb[0].mxu0
      %938 = vmatprep.mubr.bf16.mxu0 %v620
      %939 = vmatmul.mubr.bf16.gmra.mrb[0].mxu0 %v619
      %v940 = vpop.f32.mrb[0].mxu0
      %v941 = vadd.f32 0.0, %v940
      %v942 = vpop.f32.mrb[0].mxu0
      %v943 = vpop.f32.mrb[0].mxu0
      %v944 = vadd.f32 0.0, %v943
      %v945 = vpop.f32.mrb[0].mxu0
      %946 = vmatprep.mubr.bf16.mxu0 %v623
      %947 = vmatmul.mubr.bf16.gmra.mrb[0].mxu0 %v622
      %v948 = vpop.f32.mrb[0].mxu0
      %v949 = vadd.f32 0.0, %v948
      %v950 = vpop.f32.mrb[0].mxu0
      %v951 = vpop.f32.mrb[0].mxu0
      %v952 = vadd.f32 0.0, %v951
      %v953 = vpop.f32.mrb[0].mxu0
      %954 = vmatprep.mubr.bf16.mxu0 %v626
      %955 = vmatmul.mubr.bf16.gmra.mrb[0].mxu0 %v625
      %v956 = vpop.f32.mrb[0].mxu0
      %v957 = vadd.f32 0.0, %v956
      %v958 = vpop.f32.mrb[0].mxu0
      %v959 = vpop.f32.mrb[0].mxu0
      %v960 = vadd.f32 0.0, %v959
      %v961 = vpop.f32.mrb[0].mxu0
      %962 = vmatprep.mubr.bf16.mxu0 %v629
      %963 = vmatmul.mubr.bf16.gmra.mrb[0].mxu0 %v628
      %v964 = vpop.f32.mrb[0].mxu0
      %v965 = vadd.f32 0.0, %v964
      %v966 = vpop.f32.mrb[0].mxu0
      %v967 = vpop.f32.mrb[0].mxu0
      %v968 = vadd.f32 0.0, %v967
      %v969 = vpop.f32.mrb[0].mxu0
      %970 = vmatprep.mubr.bf16.mxu0 %v632
      %971 = vmatmul.mubr.bf16.gmra.mrb[0].mxu0 %v631
      %v972 = vpop.f32.mrb[0].mxu0
      %v973 = vadd.f32 0.0, %v972
      %v974 = vpop.f32.mrb[0].mxu0
      %v975 = vpop.f32.mrb[0].mxu0
      %v976 = vadd.f32 0.0, %v975
      %v977 = vpop.f32.mrb[0].mxu0
      %978 = vmatprep.mubr.bf16.mxu0 %v635
      %979 = vmatmul.mubr.bf16.gmra.mrb[0].mxu0 %v634
      %v980 = vpop.f32.mrb[0].mxu0
      %v981 = vadd.f32 0.0, %v980
      %v982 = vpop.f32.mrb[0].mxu0
      %v983 = vpop.f32.mrb[0].mxu0
      %v984 = vadd.f32 0.0, %v983
      %v985 = vpop.f32.mrb[0].mxu0
      %986 = vdwg.mxu0
      %987 = vmatprep.subr.bf16.mxu0 0
      %988 = vmatpush1.bf16.msra.mxu0 %v757
      %989 = vmatprep.subr.bf16.mxu0 0
      %990 = vmatpush1.bf16.msra.mxu0 %v758
      %991 = vmatprep.subr.bf16.mxu0 0
      %992 = vmatpush1.bf16.msra.mxu0 0
      %993 = vmatprep.subr.bf16.mxu0 0
      %994 = vmatpush1.bf16.msra.mxu0 0
      %995 = vmatprep.subr.bf16.mxu0 0
      %996 = vmatpush1.bf16.msra.mxu0 0
      %997 = vmatprep.subr.bf16.mxu0 0
      %998 = vmatpush1.bf16.msra.mxu0 0
      %999 = vmatprep.subr.bf16.mxu0 0
      %1000 = vmatpush1.bf16.msra.mxu0 0
      %1001 = vmatprep.subr.bf16.mxu0 0
      %1002 = vmatpush1.bf16.msra.mxu0 0
      %1003 = vmatprep.subr.bf16.mxu0 0
      %1004 = vmatpush1.bf16.msra.mxu0 0
      %1005 = vmatprep.subr.bf16.mxu0 0
      %1006 = vmatpush1.bf16.msra.mxu0 0
      %1007 = vmatprep.subr.bf16.mxu0 0
      %1008 = vmatpush1.bf16.msra.mxu0 0
      %1009 = vmatprep.subr.bf16.mxu0 0
      %1010 = vmatpush1.bf16.msra.mxu0 0
      %1011 = vmatprep.subr.bf16.mxu0 0
      %1012 = vmatpush1.bf16.msra.mxu0 0
      %1013 = vmatprep.subr.bf16.mxu0 0
      %1014 = vmatpush1.bf16.msra.mxu0 0
      %1015 = vmatprep.subr.bf16.mxu0 0
      %1016 = vmatpush1.bf16.msra.mxu0 0
      %1017 = vmatprep.subr.bf16.mxu0 0
      %1018 = vmatpush1.bf16.msra.mxu0 0
      %1019 = vmatprep.mubr.bf16.mxu0 0
      %1020 = vmatmul.mubr.bf16.gmra.mrb[0].mxu0 %v779
      %v1021 = vpop.f32.mrb[0].mxu0
      %v1022 = vadd.f32 %v861, %v1021
      %v1023 = vpop.f32.mrb[0].mxu0
      %v1024 = vpop.f32.mrb[0].mxu0
      %v1025 = vadd.f32 %v864, %v1024
      %v1026 = vpop.f32.mrb[0].mxu0
      %1027 = vmatprep.mubr.bf16.mxu0 0
      %1028 = vmatmul.mubr.bf16.gmra.mrb[0].mxu0 %v782
      %v1029 = vpop.f32.mrb[0].mxu0
      %v1030 = vadd.f32 %v869, %v1029
      %v1031 = vpop.f32.mrb[0].mxu0
      %v1032 = vpop.f32.mrb[0].mxu0
      %v1033 = vadd.f32 %v872, %v1032
      %v1034 = vpop.f32.mrb[0].mxu0
      %1035 = vmatprep.mubr.bf16.mxu0 0
      %1036 = vmatmul.mubr.bf16.gmra.mrb[0].mxu0 %v785
      %v1037 = vpop.f32.mrb[0].mxu0
      %v1038 = vadd.f32 %v877, %v1037
      %v1039 = vpop.f32.mrb[0].mxu0
      %v1040 = vpop.f32.mrb[0].mxu0
      %v1041 = vadd.f32 %v880, %v1040
      %v1042 = vpop.f32.mrb[0].mxu0
      %1043 = vmatprep.mubr.bf16.mxu0 0
      %1044 = vmatmul.mubr.bf16.gmra.mrb[0].mxu0 %v788
      %v1045 = vpop.f32.mrb[0].mxu0
      %v1046 = vadd.f32 %v885, %v1045
      %v1047 = vpop.f32.mrb[0].mxu0
      %v1048 = vpop.f32.mrb[0].mxu0
      %v1049 = vadd.f32 %v888, %v1048
      %v1050 = vpop.f32.mrb[0].mxu0
      %1051 = vmatprep.mubr.bf16.mxu0 0
      %1052 = vmatmul.mubr.bf16.gmra.mrb[0].mxu0 %v791
      %v1053 = vpop.f32.mrb[0].mxu0
      %v1054 = vadd.f32 %v893, %v1053
      %v1055 = vpop.f32.mrb[0].mxu0
      %v1056 = vpop.f32.mrb[0].mxu0
      %v1057 = vadd.f32 %v896, %v1056
      %v1058 = vpop.f32.mrb[0].mxu0
      %1059 = vmatprep.mubr.bf16.mxu0 0
      %1060 = vmatmul.mubr.bf16.gmra.mrb[0].mxu0 %v794
      %v1061 = vpop.f32.mrb[0].mxu0
      %v1062 = vadd.f32 %v901, %v1061
      %v1063 = vpop.f32.mrb[0].mxu0
      %v1064 = vpop.f32.mrb[0].mxu0
      %v1065 = vadd.f32 %v904, %v1064
      %v1066 = vpop.f32.mrb[0].mxu0
      %1067 = vmatprep.mubr.bf16.mxu0 0
      %1068 = vmatmul.mubr.bf16.gmra.mrb[0].mxu0 %v797
      %v1069 = vpop.f32.mrb[0].mxu0
      %v1070 = vadd.f32 %v909, %v1069
      %v1071 = vpop.f32.mrb[0].mxu0
      %v1072 = vpop.f32.mrb[0].mxu0
      %v1073 = vadd.f32 %v912, %v1072
      %v1074 = vpop.f32.mrb[0].mxu0
      %1075 = vmatprep.mubr.bf16.mxu0 0
      %1076 = vmatmul.mubr.bf16.gmra.mrb[0].mxu0 %v800
      %v1077 = vpop.f32.mrb[0].mxu0
      %v1078 = vadd.f32 %v917, %v1077
      %v1079 = vpop.f32.mrb[0].mxu0
      %v1080 = vpop.f32.mrb[0].mxu0
      %v1081 = vadd.f32 %v920, %v1080
      %v1082 = vpop.f32.mrb[0].mxu0
      %1083 = vmatprep.mubr.bf16.mxu0 0
      %1084 = vmatmul.mubr.bf16.gmra.mrb[0].mxu0 %v803
      %v1085 = vpop.f32.mrb[0].mxu0
      %v1086 = vadd.f32 %v925, %v1085
      %v1087 = vpop.f32.mrb[0].mxu0
      %v1088 = vpop.f32.mrb[0].mxu0
      %v1089 = vadd.f32 %v928, %v1088
      %v1090 = vpop.f32.mrb[0].mxu0
      %1091 = vmatprep.mubr.bf16.mxu0 0
      %1092 = vmatmul.mubr.bf16.gmra.mrb[0].mxu0 %v806
      %v1093 = vpop.f32.mrb[0].mxu0
      %v1094 = vadd.f32 %v933, %v1093
      %v1095 = vpop.f32.mrb[0].mxu0
      %v1096 = vpop.f32.mrb[0].mxu0
      %v1097 = vadd.f32 %v936, %v1096
      %v1098 = vpop.f32.mrb[0].mxu0
      %1099 = vmatprep.mubr.bf16.mxu0 0
      %1100 = vmatmul.mubr.bf16.gmra.mrb[0].mxu0 %v809
      %v1101 = vpop.f32.mrb[0].mxu0
      %v1102 = vadd.f32 %v941, %v1101
      %v1103 = vpop.f32.mrb[0].mxu0
      %v1104 = vpop.f32.mrb[0].mxu0
      %v1105 = vadd.f32 %v944, %v1104
      %v1106 = vpop.f32.mrb[0].mxu0
      %1107 = vmatprep.mubr.bf16.mxu0 0
      %1108 = vmatmul.mubr.bf16.gmra.mrb[0].mxu0 %v812
      %v1109 = vpop.f32.mrb[0].mxu0
      %v1110 = vadd.f32 %v949, %v1109
      %v1111 = vpop.f32.mrb[0].mxu0
      %v1112 = vpop.f32.mrb[0].mxu0
      %v1113 = vadd.f32 %v952, %v1112
      %v1114 = vpop.f32.mrb[0].mxu0
      %1115 = vmatprep.mubr.bf16.mxu0 0
      %1116 = vmatmul.mubr.bf16.gmra.mrb[0].mxu0 %v815
      %v1117 = vpop.f32.mrb[0].mxu0
      %v1118 = vadd.f32 %v957, %v1117
      %v1119 = vpop.f32.mrb[0].mxu0
      %v1120 = vpop.f32.mrb[0].mxu0
      %v1121 = vadd.f32 %v960, %v1120
      %v1122 = vpop.f32.mrb[0].mxu0
      %1123 = vmatprep.mubr.bf16.mxu0 0
      %1124 = vmatmul.mubr.bf16.gmra.mrb[0].mxu0 %v818
      %v1125 = vpop.f32.mrb[0].mxu0
      %v1126 = vadd.f32 %v965, %v1125
      %v1127 = vpop.f32.mrb[0].mxu0
      %v1128 = vpop.f32.mrb[0].mxu0
      %v1129 = vadd.f32 %v968, %v1128
      %v1130 = vpop.f32.mrb[0].mxu0
      %1131 = vmatprep.mubr.bf16.mxu0 0
      %1132 = vmatmul.mubr.bf16.gmra.mrb[0].mxu0 %v821
      %v1133 = vpop.f32.mrb[0].mxu0
      %v1134 = vadd.f32 %v973, %v1133
      %v1135 = vpop.f32.mrb[0].mxu0
      %v1136 = vpop.f32.mrb[0].mxu0
      %v1137 = vadd.f32 %v976, %v1136
      %v1138 = vpop.f32.mrb[0].mxu0
      %1139 = vmatprep.mubr.bf16.mxu0 0
      %1140 = vmatmul.mubr.bf16.gmra.mrb[0].mxu0 %v824
      %v1141 = vpop.f32.mrb[0].mxu0
      %v1142 = vadd.f32 %v981, %v1141
      %v1143 = vpop.f32.mrb[0].mxu0
      %v1144 = vpop.f32.mrb[0].mxu0
      %v1145 = vadd.f32 %v984, %v1144
      %v1146 = vpop.f32.mrb[0].mxu0
      %1147 = vdwg.mxu0
      %v1148 = vpack.c.bf16 %v1025, %v1022
      %v1149 = vpack.c.bf16 %v1033, %v1030
      %v1150 = vpack.c.bf16 %v1041, %v1038
      %v1151 = vpack.c.bf16 %v1049, %v1046
      %v1152 = vpack.c.bf16 %v1057, %v1054
      %v1153 = vpack.c.bf16 %v1065, %v1062
      %v1154 = vpack.c.bf16 %v1073, %v1070
      %v1155 = vpack.c.bf16 %v1081, %v1078
      %v1156 = vpack.c.bf16 %v1089, %v1086
      %v1157 = vpack.c.bf16 %v1097, %v1094
      %v1158 = vpack.c.bf16 %v1105, %v1102
      %v1159 = vpack.c.bf16 %v1113, %v1110
      %v1160 = vpack.c.bf16 %v1121, %v1118
      %v1161 = vpack.c.bf16 %v1129, %v1126
      %v1162 = vpack.c.bf16 %v1137, %v1134
      %v1163 = vpack.c.bf16 %v1145, %v1142
      %v1180 = vunpack.c.l.b16 %v1148
      %v1181 = vunpack.c.h.b16 %v1148
      %v1182 = vunpack.c.l.b16 %v1149
      %v1183 = vunpack.c.h.b16 %v1149
      %v1184 = vunpack.c.l.b16 %v1150
      %v1185 = vunpack.c.h.b16 %v1150
      %v1186 = vunpack.c.l.b16 %v1151
      %v1187 = vunpack.c.h.b16 %v1151
      %v1188 = vunpack.c.l.b16 %v1152
      %v1189 = vunpack.c.h.b16 %v1152
      %v1190 = vunpack.c.l.b16 %v1153
      %v1191 = vunpack.c.h.b16 %v1153
      %v1192 = vunpack.c.l.b16 %v1154
      %v1193 = vunpack.c.h.b16 %v1154
      %v1194 = vunpack.c.l.b16 %v1155
      %v1195 = vunpack.c.h.b16 %v1155
      %v1196 = vunpack.c.l.b16 %v1156
      %v1197 = vunpack.c.h.b16 %v1156
      %v1198 = vunpack.c.l.b16 %v1157
      %v1199 = vunpack.c.h.b16 %v1157
      %v1200 = vunpack.c.l.b16 %v1158
      %v1201 = vunpack.c.h.b16 %v1158
      %v1202 = vunpack.c.l.b16 %v1159
      %v1203 = vunpack.c.h.b16 %v1159
      %v1204 = vunpack.c.l.b16 %v1160
      %v1205 = vunpack.c.h.b16 %v1160
      %v1206 = vunpack.c.l.b16 %v1161
      %v1207 = vunpack.c.h.b16 %v1161
      %v1208 = vunpack.c.l.b16 %v1162
      %v1209 = vunpack.c.h.b16 %v1162
      %v1210 = vunpack.c.l.b16 %v1163
      %v1211 = vunpack.c.h.b16 %v1163
      %v1212 = vpack.c.b16 %v1180, %v1180
      %v1213 = vpack.c.b16 %v1181, %v1181
      %v1214 = vpack.c.b16 %v1182, %v1182
      %v1215 = vpack.c.b16 %v1183, %v1183
      %v1216 = vpack.c.b16 %v1184, %v1184
      %v1217 = vpack.c.b16 %v1185, %v1185
      %v1218 = vpack.c.b16 %v1186, %v1186
      %v1219 = vpack.c.b16 %v1187, %v1187
      %v1220 = vpack.c.b16 %v1188, %v1188
      %v1221 = vpack.c.b16 %v1189, %v1189
      %v1222 = vpack.c.b16 %v1190, %v1190
      %v1223 = vpack.c.b16 %v1191, %v1191
      %v1224 = vpack.c.b16 %v1192, %v1192
      %v1225 = vpack.c.b16 %v1193, %v1193
      %v1226 = vpack.c.b16 %v1194, %v1194
      %v1227 = vpack.c.b16 %v1195, %v1195
      %v1228 = vpack.c.b16 %v1196, %v1196
      %v1229 = vpack.c.b16 %v1197, %v1197
      %v1230 = vpack.c.b16 %v1198, %v1198
      %v1231 = vpack.c.b16 %v1199, %v1199
      %v1232 = vpack.c.b16 %v1200, %v1200
      %v1233 = vpack.c.b16 %v1201, %v1201
      %v1234 = vpack.c.b16 %v1202, %v1202
      %v1235 = vpack.c.b16 %v1203, %v1203
      %v1236 = vpack.c.b16 %v1204, %v1204
      %v1237 = vpack.c.b16 %v1205, %v1205
      %v1238 = vpack.c.b16 %v1206, %v1206
      %v1239 = vpack.c.b16 %v1207, %v1207
      %v1240 = vpack.c.b16 %v1208, %v1208
      %v1241 = vpack.c.b16 %v1209, %v1209
      %v1242 = vpack.c.b16 %v1210, %v1210
      %v1243 = vpack.c.b16 %v1211, %v1211
      %vm1276 = vcmask 257024
      %1277 = vst.msk [vmem:[%s312] sm:$0xf] %vm1276, %v1212
      %1278 = vst.msk [vmem:[%s312 + $0x4] sm:$0xf] %vm1276, %v1213
      %1279 = vst.msk [vmem:[%s312 + $0x8] sm:$0xf] %vm1276, %v1214
      %1280 = vst.msk [vmem:[%s312 + $0xc] sm:$0xf] %vm1276, %v1215
      %1281 = vst.msk [vmem:[%s312 + $0x10] sm:$0xf] %vm1276, %v1216
      %1282 = vst.msk [vmem:[%s312 + $0x14] sm:$0xf] %vm1276, %v1217
      %1283 = vst.msk [vmem:[%s312 + $0x18] sm:$0xf] %vm1276, %v1218
      %1284 = vst.msk [vmem:[%s312 + $0x1c] sm:$0xf] %vm1276, %v1219
      %1285 = vst.msk [vmem:[%s312 + $0x20] sm:$0xf] %vm1276, %v1220
      %1286 = vst.msk [vmem:[%s312 + $0x24] sm:$0xf] %vm1276, %v1221
      %1287 = vst.msk [vmem:[%s312 + $0x28] sm:$0xf] %vm1276, %v1222
      %1288 = vst.msk [vmem:[%s312 + $0x2c] sm:$0xf] %vm1276, %v1223
      %1289 = vst.msk [vmem:[%s312 + $0x30] sm:$0xf] %vm1276, %v1224
      %1290 = vst.msk [vmem:[%s312 + $0x34] sm:$0xf] %vm1276, %v1225
      %1291 = vst.msk [vmem:[%s312 + $0x38] sm:$0xf] %vm1276, %v1226
      %1292 = vst.msk [vmem:[%s312 + $0x3c] sm:$0xf] %vm1276, %v1227
      %1293 = vst.msk [vmem:[%s312 + $0x40] sm:$0xf] %vm1276, %v1228
      %1294 = vst.msk [vmem:[%s312 + $0x44] sm:$0xf] %vm1276, %v1229
      %1295 = vst.msk [vmem:[%s312 + $0x48] sm:$0xf] %vm1276, %v1230
      %1296 = vst.msk [vmem:[%s312 + $0x4c] sm:$0xf] %vm1276, %v1231
      %1297 = vst.msk [vmem:[%s312 + $0x50] sm:$0xf] %vm1276, %v1232
      %1298 = vst.msk [vmem:[%s312 + $0x54] sm:$0xf] %vm1276, %v1233
      %1299 = vst.msk [vmem:[%s312 + $0x58] sm:$0xf] %vm1276, %v1234
      %1300 = vst.msk [vmem:[%s312 + $0x5c] sm:$0xf] %vm1276, %v1235
      %1301 = vst.msk [vmem:[%s312 + $0x60] sm:$0xf] %vm1276, %v1236
      %1302 = vst.msk [vmem:[%s312 + $0x64] sm:$0xf] %vm1276, %v1237
      %1303 = vst.msk [vmem:[%s312 + $0x68] sm:$0xf] %vm1276, %v1238
      %1304 = vst.msk [vmem:[%s312 + $0x6c] sm:$0xf] %vm1276, %v1239
      %1305 = vst.msk [vmem:[%s312 + $0x70] sm:$0xf] %vm1276, %v1240
      %1306 = vst.msk [vmem:[%s312 + $0x74] sm:$0xf] %vm1276, %v1241
      %1307 = vst.msk [vmem:[%s312 + $0x78] sm:$0xf] %vm1276, %v1242
      %1308 = vst.msk [vmem:[%s312 + $0x7c] sm:$0xf] %vm1276, %v1243
      %v1309 = vsel %vm777, %v1022, 0.0
      %v1310 = vsel %vm777, %v1025, 0.0
      %v1311 = vadd.f32 %v1309, %v1310
      %v1312 = vsel %vm777, %v1030, 0.0
      %v1313 = vadd.f32 %v1311, %v1312
      %v1314 = vsel %vm777, %v1033, 0.0
      %v1315 = vadd.f32 %v1313, %v1314
      %v1316 = vsel %vm777, %v1038, 0.0
      %v1317 = vadd.f32 %v1315, %v1316
      %v1318 = vsel %vm777, %v1041, 0.0
      %v1319 = vadd.f32 %v1317, %v1318
      %v1320 = vsel %vm777, %v1046, 0.0
      %v1321 = vadd.f32 %v1319, %v1320
      %v1322 = vsel %vm777, %v1049, 0.0
      %v1323 = vadd.f32 %v1321, %v1322
      %v1324 = vsel %vm777, %v1054, 0.0
      %v1325 = vadd.f32 %v1323, %v1324
      %v1326 = vsel %vm777, %v1057, 0.0
      %v1327 = vadd.f32 %v1325, %v1326
      %v1328 = vsel %vm777, %v1062, 0.0
      %v1329 = vadd.f32 %v1327, %v1328
      %v1330 = vsel %vm777, %v1065, 0.0
      %v1331 = vadd.f32 %v1329, %v1330
      %v1332 = vsel %vm777, %v1070, 0.0
      %v1333 = vadd.f32 %v1331, %v1332
      %v1334 = vsel %vm777, %v1073, 0.0
      %v1335 = vadd.f32 %v1333, %v1334
      %v1336 = vsel %vm777, %v1078, 0.0
      %v1337 = vadd.f32 %v1335, %v1336
      %v1338 = vsel %vm777, %v1081, 0.0
      %v1339 = vadd.f32 %v1337, %v1338
      %v1340 = vsel %vm777, %v1086, 0.0
      %v1341 = vadd.f32 %v1339, %v1340
      %v1342 = vsel %vm777, %v1089, 0.0
      %v1343 = vadd.f32 %v1341, %v1342
      %v1344 = vsel %vm777, %v1094, 0.0
      %v1345 = vadd.f32 %v1343, %v1344
      %v1346 = vsel %vm777, %v1097, 0.0
      %v1347 = vadd.f32 %v1345, %v1346
      %v1348 = vsel %vm777, %v1102, 0.0
      %v1349 = vadd.f32 %v1347, %v1348
      %v1350 = vsel %vm777, %v1105, 0.0
      %v1351 = vadd.f32 %v1349, %v1350
      %v1352 = vsel %vm777, %v1110, 0.0
      %v1353 = vadd.f32 %v1351, %v1352
      %v1354 = vsel %vm777, %v1113, 0.0
      %v1355 = vadd.f32 %v1353, %v1354
      %v1356 = vsel %vm777, %v1118, 0.0
      %v1357 = vadd.f32 %v1355, %v1356
      %v1358 = vsel %vm777, %v1121, 0.0
      %v1359 = vadd.f32 %v1357, %v1358
      %v1360 = vsel %vm777, %v1126, 0.0
      %v1361 = vadd.f32 %v1359, %v1360
      %v1362 = vsel %vm777, %v1129, 0.0
      %v1363 = vadd.f32 %v1361, %v1362
      %v1364 = vsel %vm777, %v1134, 0.0
      %v1365 = vadd.f32 %v1363, %v1364
      %v1366 = vsel %vm777, %v1137, 0.0
      %v1367 = vadd.f32 %v1365, %v1366
      %v1368 = vsel %vm777, %v1142, 0.0
      %v1369 = vadd.f32 %v1367, %v1368
      %v1370 = vsel %vm777, %v1145, 0.0
      %v1371 = vadd.f32 %v1369, %v1370
      %v1372 = vrot.slane %v1371, 4
      %v1373 = vadd.f32 %v1371, %v1372
      %v1374 = vrot.slane %v1373, 2
      %v1375 = vadd.f32 %v1373, %v1374
      %v1376 = vrot.slane %v1375, 1
      %v1377 = vadd.f32 %v1375, %v1376
      %v1378 = vmul.f32 %v1022, %v1022
      %v1379 = vmul.f32 %v1025, %v1025
      %v1380 = vmul.f32 %v1030, %v1030
      %v1381 = vmul.f32 %v1033, %v1033
      %v1382 = vmul.f32 %v1038, %v1038
      %v1383 = vmul.f32 %v1041, %v1041
      %v1384 = vmul.f32 %v1046, %v1046
      %v1385 = vmul.f32 %v1049, %v1049
      %v1386 = vmul.f32 %v1054, %v1054
      %v1387 = vmul.f32 %v1057, %v1057
      %v1388 = vmul.f32 %v1062, %v1062
      %v1389 = vmul.f32 %v1065, %v1065
      %v1390 = vmul.f32 %v1070, %v1070
      %v1391 = vmul.f32 %v1073, %v1073
      %v1392 = vmul.f32 %v1078, %v1078
      %v1393 = vmul.f32 %v1081, %v1081
      %v1394 = vmul.f32 %v1086, %v1086
      %v1395 = vmul.f32 %v1089, %v1089
      %v1396 = vmul.f32 %v1094, %v1094
      %v1397 = vmul.f32 %v1097, %v1097
      %v1398 = vmul.f32 %v1102, %v1102
      %v1399 = vmul.f32 %v1105, %v1105
      %v1400 = vmul.f32 %v1110, %v1110
      %v1401 = vmul.f32 %v1113, %v1113
      %v1402 = vmul.f32 %v1118, %v1118
      %v1403 = vmul.f32 %v1121, %v1121
      %v1404 = vmul.f32 %v1126, %v1126
      %v1405 = vmul.f32 %v1129, %v1129
      %v1406 = vmul.f32 %v1134, %v1134
      %v1407 = vmul.f32 %v1137, %v1137
      %v1408 = vmul.f32 %v1142, %v1142
      %v1409 = vmul.f32 %v1145, %v1145
      %v1410 = vsel %vm777, %v1378, 0.0
      %v1411 = vsel %vm777, %v1379, 0.0
      %v1412 = vadd.f32 %v1410, %v1411
      %v1413 = vsel %vm777, %v1380, 0.0
      %v1414 = vadd.f32 %v1412, %v1413
      %v1415 = vsel %vm777, %v1381, 0.0
      %v1416 = vadd.f32 %v1414, %v1415
      %v1417 = vsel %vm777, %v1382, 0.0
      %v1418 = vadd.f32 %v1416, %v1417
      %v1419 = vsel %vm777, %v1383, 0.0
      %v1420 = vadd.f32 %v1418, %v1419
      %v1421 = vsel %vm777, %v1384, 0.0
      %v1422 = vadd.f32 %v1420, %v1421
      %v1423 = vsel %vm777, %v1385, 0.0
      %v1424 = vadd.f32 %v1422, %v1423
      %v1425 = vsel %vm777, %v1386, 0.0
      %v1426 = vadd.f32 %v1424, %v1425
      %v1427 = vsel %vm777, %v1387, 0.0
      %v1428 = vadd.f32 %v1426, %v1427
      %v1429 = vsel %vm777, %v1388, 0.0
      %v1430 = vadd.f32 %v1428, %v1429
      %v1431 = vsel %vm777, %v1389, 0.0
      %v1432 = vadd.f32 %v1430, %v1431
      %v1433 = vsel %vm777, %v1390, 0.0
      %v1434 = vadd.f32 %v1432, %v1433
      %v1435 = vsel %vm777, %v1391, 0.0
      %v1436 = vadd.f32 %v1434, %v1435
      %v1437 = vsel %vm777, %v1392, 0.0
      %v1438 = vadd.f32 %v1436, %v1437
      %v1439 = vsel %vm777, %v1393, 0.0
      %v1440 = vadd.f32 %v1438, %v1439
      %v1441 = vsel %vm777, %v1394, 0.0
      %v1442 = vadd.f32 %v1440, %v1441
      %v1443 = vsel %vm777, %v1395, 0.0
      %v1444 = vadd.f32 %v1442, %v1443
      %v1445 = vsel %vm777, %v1396, 0.0
      %v1446 = vadd.f32 %v1444, %v1445
      %v1447 = vsel %vm777, %v1397, 0.0
      %v1448 = vadd.f32 %v1446, %v1447
      %v1449 = vsel %vm777, %v1398, 0.0
      %v1450 = vadd.f32 %v1448, %v1449
      %v1451 = vsel %vm777, %v1399, 0.0
      %v1452 = vadd.f32 %v1450, %v1451
      %v1453 = vsel %vm777, %v1400, 0.0
      %v1454 = vadd.f32 %v1452, %v1453
      %v1455 = vsel %vm777, %v1401, 0.0
      %v1456 = vadd.f32 %v1454, %v1455
      %v1457 = vsel %vm777, %v1402, 0.0
      %v1458 = vadd.f32 %v1456, %v1457
      %v1459 = vsel %vm777, %v1403, 0.0
      %v1460 = vadd.f32 %v1458, %v1459
      %v1461 = vsel %vm777, %v1404, 0.0
      %v1462 = vadd.f32 %v1460, %v1461
      %v1463 = vsel %vm777, %v1405, 0.0
      %v1464 = vadd.f32 %v1462, %v1463
      %v1465 = vsel %vm777, %v1406, 0.0
      %v1466 = vadd.f32 %v1464, %v1465
      %v1467 = vsel %vm777, %v1407, 0.0
      %v1468 = vadd.f32 %v1466, %v1467
      %v1469 = vsel %vm777, %v1408, 0.0
      %v1470 = vadd.f32 %v1468, %v1469
      %v1471 = vsel %vm777, %v1409, 0.0
      %v1472 = vadd.f32 %v1470, %v1471
      %v1473 = vrot.slane %v1472, 4
      %v1474 = vadd.f32 %v1472, %v1473
      %v1475 = vrot.slane %v1474, 2
      %v1476 = vadd.f32 %v1474, %v1475
      %v1477 = vrot.slane %v1476, 1
      %v1478 = vadd.f32 %v1476, %v1477
      %p1479 = scmp.eq.s32.totalorder %s23, 0
      // Predicated region
      $region29: #{_lambda_.5} parent=27 // pred_check
        %p1480 = pneg %p1479
      $region30: #{_lambda_.5} parent=27 // pred_check_branch
        %1482 = sbr.rel (%p1480) target = $region32
      $region31: #{_lambda_.5} parent=27 // pred_region
        %vm1483 = vcmask 253952
        %1484 = vst.msk [vmem:[%s320] sm:$0x1] %vm1483, %v1377
        %1485 = vst.msk [vmem:[%s327] sm:$0x1] %vm1483, %v1478
      $region32: #{_lambda_.5} parent=27 // pred_fallthru
        _
      %p1486 = scmp.ne.s32.totalorder %s23, 0
      // Predicated region
      $region33: #{_lambda_.5} parent=27 // pred_check
        %p1487 = pneg %p1486
      $region34: #{_lambda_.5} parent=27 // pred_check_branch
        %1489 = sbr.rel (%p1487) target = $region36
      $region35: #{_lambda_.5} parent=27 // pred_region
        %v1490 = vld [vmem:[%s320] sm:$0x1]
        %v1491 = vadd.f32 %v1490, %v1377
        %vm1492 = vcmask 253952
        %1493 = vst.msk [vmem:[%s320] sm:$0x1] %vm1492, %v1491
        %v1494 = vld [vmem:[%s327] sm:$0x1]
        %v1495 = vadd.f32 %v1494, %v1478
        %1496 = vst.msk [vmem:[%s327] sm:$0x1] %vm1492, %v1495
      $region36: #{_lambda_.5} parent=27 // pred_fallthru
        _
      %s1497 = smul.u32 32, %s23
      %p1498 = scmp.lt.s32.totalorder %s21, 2
      %s1499 = scalar_select %p1498, %s21, 2
      %p1500 = scmp.lt.s32.totalorder %s22, 1
      %s1501 = scalar_select %p1500, %s22, 1
      %p1502 = scmp.lt.s32.totalorder %s1497, 31
      %s1503 = scalar_select %p1502, %s1497, 31
      %s1504 = smul.addr %s1501, 32
      %s1505 = sadd.s32 %s1503, %s1504
      %s1506 = smul.addr %s1499, 64
      %s1507 = sadd.s32 %s1505, %s1506
      %s1508 = smul.addr %s1507, 4
      %s1509 = scalar_lea.vmem %s2, %s1508
      %p1510 = scmp.lt.s32.totalorder %s21, 2
      %s1511 = scalar_select %p1510, %s21, 2
      %p1512 = scmp.lt.s32.totalorder %s22, 1
      %s1513 = scalar_select %p1512, %s22, 1
      %s1514 = smul.addr %s1511, 2
      %s1515 = sadd.s32 %s1513, %s1514
      %s1516 = scalar_lea.vmem %s3, %s1515
      %p1517 = scmp.lt.s32.totalorder %s21, 2
      %s1518 = scalar_select %p1517, %s21, 2
      %p1519 = scmp.lt.s32.totalorder %s22, 1
      %s1520 = scalar_select %p1519, %s22, 1
      %s1521 = smul.addr %s1518, 2
      %s1522 = sadd.s32 %s1520, %s1521
      %s1523 = scalar_lea.vmem %s4, %s1522
      // Predicated region
      $region37: #{_lambda_.5} parent=27 // pred_check
        %p1524 = pneg %p113
      $region38: #{_lambda_.5} parent=27 // pred_check_branch
        %1526 = sbr.rel (%p1524) target = $region40
      $region39: #{_lambda_.5} parent=27 // pred_region
        %s1527 = smul.u32 32, %s23
      $region40: #{_lambda_.5} parent=27 // pred_fallthru
        _
      // Predicated region
      $region41: #{_lambda_.5} parent=27 // pred_check
        %p1528 = pneg %p141
      $region42: #{_lambda_.5} parent=27 // pred_check_branch
        %1530 = sbr.rel (%p1528) target = $region44
      $region43: #{_lambda_.5} parent=27 // pred_region
        _
      $region44: #{_lambda_.5} parent=27 // pred_fallthru
        _
      // Predicated region
      $region45: #{_lambda_.5} parent=27 // pred_check
        %p1531 = pneg %p169
      $region46: #{_lambda_.5} parent=27 // pred_check_branch
        %1533 = sbr.rel (%p1531) target = $region48
      $region47: #{_lambda_.5} parent=27 // pred_region
        _
      $region48: #{_lambda_.5} parent=27 // pred_fallthru
        _
    $region28: #{_lambda_.5} parent=5 // pred_fallthru
      _
    %p1534 = scmp.le.s32.totalorder 2, %s11
    // Predicated region
    $region49: #{_lambda_.5} parent=5 // pred_check
      %p1535 = pneg %p1534
    $region50: #{_lambda_.5} parent=5 // pred_check_branch
      %1537 = sbr.rel (%p1535) target = $region52
    $region51: #{_lambda_.5} parent=5 // pred_region
      %s1538 = ssub.s32 %s11, 2
      // Predicated region
      $region53: #{_lambda_.5} parent=51 // pred_check
        %p1539 = pneg %p119
      $region54: #{_lambda_.5} parent=51 // pred_check_branch
        %1541 = sbr.rel (%p1539) target = $region56
      $region55: #{_lambda_.5} parent=51 // pred_region
        %s1542 = smul.u32 32, %s26
        %p1543 = scmp.lt.s32.totalorder %s24, 2
        %s1544 = scalar_select %p1543, %s24, 2
        %p1545 = scmp.lt.s32.totalorder %s25, 1
        %s1546 = scalar_select %p1545, %s25, 1
        %p1547 = scmp.lt.s32.totalorder %s1542, 31
        %s1548 = scalar_select %p1547, %s1542, 31
        %s1549 = smul.addr %s1546, 32
        %s1550 = sadd.s32 %s1548, %s1549
        %s1551 = smul.addr %s1544, 64
        %s1552 = sadd.s32 %s1550, %s1551
        %s1553 = smul.addr %s1552, 4
        %s1554 = scalar_lea.vmem %s2, %s1553
      $region56: #{_lambda_.5} parent=51 // pred_fallthru
        _
      // Predicated region
      $region57: #{_lambda_.5} parent=51 // pred_check
        %p1555 = pneg %p147
      $region58: #{_lambda_.5} parent=51 // pred_check_branch
        %1557 = sbr.rel (%p1555) target = $region60
      $region59: #{_lambda_.5} parent=51 // pred_region
        %p1558 = scmp.lt.s32.totalorder %s24, 2
        %s1559 = scalar_select %p1558, %s24, 2
        %p1560 = scmp.lt.s32.totalorder %s25, 1
        %s1561 = scalar_select %p1560, %s25, 1
        %s1562 = smul.addr %s1559, 2
        %s1563 = sadd.s32 %s1561, %s1562
        %s1564 = scalar_lea.vmem %s3, %s1563
      $region60: #{_lambda_.5} parent=51 // pred_fallthru
        _
      // Predicated region
      $region61: #{_lambda_.5} parent=51 // pred_check
        %p1565 = pneg %p175
      $region62: #{_lambda_.5} parent=51 // pred_check_branch
        %1567 = sbr.rel (%p1565) target = $region64
      $region63: #{_lambda_.5} parent=51 // pred_region
        %p1568 = scmp.lt.s32.totalorder %s24, 2
        %s1569 = scalar_select %p1568, %s24, 2
        %p1570 = scmp.lt.s32.totalorder %s25, 1
        %s1571 = scalar_select %p1570, %s25, 1
        %s1572 = smul.addr %s1569, 2
        %s1573 = sadd.s32 %s1571, %s1572
        %s1574 = scalar_lea.vmem %s4, %s1573
      $region64: #{_lambda_.5} parent=51 // pred_fallthru
        _
    $region52: #{_lambda_.5} parent=5 // pred_fallthru
      _
  $region6: #{_lambda_.5} parent=0 // loop_footer
    %s15 = sadd.s32 1, %s11
  $region7: #{_lambda_.5} parent=0 // loop_footer_branch
    %10 = sbr.rel target = $region3
  $region8: #{_lambda_.5} parent=0 // loop_exit
    _

// kernel: _lambda_.7
$region0: #{_lambda_.7}
  #allocation0 [shape = 'u32[]', space=smem, size = 0x4, offset = 0x4, fixed_abs, tag = 'smem constant byte address 0x4 - core index']
  #allocation1 [shape = 'u32[144,128]{1,0:T(1,128)}', space=vmem, size = 0x12000, scoped, tag = 'internal scratch']
  %s0 = inlined_call_operand.vmem [shape: bf16[3,2,256,288], index: 0, kind: input, shape index: {}]
  %s1 = inlined_call_operand.vmem [shape: bf16[3,288,32], index: 1, kind: input, shape index: {}]
  %s2 = inlined_call_operand.vmem [shape: bf16[3,2,256,32], index: 2, kind: output, shape index: {0}]
  %s3 = inlined_call_operand.vmem [shape: f32[3,2,1,32], index: 3, kind: output, shape index: {1}]
  %s4 = inlined_call_operand.hbm [shape: f32[3,2,1,32], index: 4, kind: output, shape index: {2}]
  %5 = xla_tuple %s2, %s3, %s4
  %s6 = sld [smem:[#allocation0]]
  $region65: #{_lambda_.7} parent=0
    _
  %s8 = ssub.s32 1, %s6
  %s9 = scalar_select 0, %s8, %s6
  $region1: #{_lambda_.7} parent=0
    #allocation2 [shape = 'u8[1024]{0}', space=vmem, size = 0x400, scoped, tag = 'output window, operand 2']
    #allocation3 [shape = 's32[2]{0}', space=sflag, size = 0x8, scoped, tag = 'scoped memory for _lambda_.7']
    %10 = vsyncpa [#allocation3], 0
    %s11 = scalar_lea.sflag [#allocation3], 1
    %12 = vsyncpa %s11, 0
    loop: start=0, step=1, limit=8
    $region2: #{_lambda_.7} parent=1 // loop_pre_header
      _
    $region3: #{_lambda_.7} parent=1 // loop_header
      %s14 = sphi 0, %s18
      %p15 = scmp.ge.s32.totalorder %s14, 8
      %s21 = sphi 0, %s40
      %s22 = sphi 0, %s36
      %s23 = sphi 0, %s32
      %s24 = sphi 0, %s21
      %s25 = sphi 0, %s22
      %s26 = sphi 0, %s23
      %s27 = sphi 0, %s24
      %s28 = sphi 0, %s25
      %s29 = sphi 0, %s26
      %s47 = sphi 0, %s49
      %s50 = sphi 0, %s47
      %s51 = sphi 0, %s50
      %s67 = sphi 0, %s51
      %s73 = sphi 0, %s75
      %s76 = sphi 0, %s73
      %s77 = sphi 0, %s76
      %s93 = sphi 0, %s77
      %s103 = sphi 0, %s105
      %s106 = sphi 0, %s103
      %s107 = sphi 0, %s106
      %s123 = sphi 0, %s107
      %s131 = sphi 0, %s133
      %s134 = sphi 0, %s131
      %s135 = sphi 0, %s134
      %s151 = sphi 0, %s135
      %s159 = sphi 0, %s161
      %s162 = sphi 0, %s159
      %s163 = sphi 0, %s162
      %s179 = sphi 0, %s163
    $region4: #{_lambda_.7} parent=1 // loop_header_branch
      %17 = sbr.rel (%p15) target = $region8
    $region5: #{_lambda_.7} parent=1 // loop_body
      %s19 = ssub.s32 %s14, 1
      %s20 = ssub.s32 %s14, 2
      %s30 = sadd.s32 1, %s23
      %p31 = scmp.ge.s32.totalorder %s30, 1
      %s32 = scalar_select %p31, 0, %s30
      %s33 = sadd.s32 1, %s22
      %s34 = scalar_select %p31, %s33, %s22
      %p35 = scmp.ge.s32.totalorder %s34, 2
      %s36 = scalar_select %p35, 0, %s34
      %s37 = sadd.s32 1, %s21
      %s38 = scalar_select %p35, %s37, %s21
      %p39 = scmp.ge.s32.totalorder %s38, 3
      %s40 = scalar_select %p39, 0, %s38
      %s41 = ssub.s32 %s21, %s40
      %s42 = ssub.s32 %s22, %s36
      %s43 = sor.u32 %s41, %s42
      %s44 = ssub.s32 %s23, %s32
      %s45 = sor.u32 %s43, %s44
      %p46 = scmp.eq.s32.totalorder %s45, 0
      %s48 = sadd.s32 %s47, 1
      %s49 = scalar_select %p46, %s47, %s48
      %p52 = pneg %p46
      %p53 = scmp.eq.s32.totalorder %s14, 5
      %p54 = por %p52, %p53
      %p55 = scmp.ne.s32.totalorder %s47, %s50
      %p56 = scmp.eq.s32.totalorder %s14, 0
      %p57 = por %p55, %p56
      %p58 = scmp.ne.s32.totalorder %s47, %s50
      %p59 = scmp.eq.s32.totalorder %s19, 5
      %p60 = por %p58, %p59
      %p61 = scmp.ne.s32.totalorder %s50, %s51
      %p62 = scmp.eq.s32.totalorder %s19, 0
      %p63 = por %p61, %p62
      %p64 = scmp.ne.s32.totalorder %s50, %s51
      %p65 = scmp.eq.s32.totalorder %s20, 5
      %p66 = por %p64, %p65
      %p68 = scmp.ne.s32.totalorder %s51, %s67
      %p69 = scmp.eq.s32.totalorder %s20, 0
      %p70 = por %p68, %p69
      %s71 = ssub.s32 %s21, %s40
      %p72 = scmp.eq.s32.totalorder %s71, 0
      %s74 = sadd.s32 %s73, 1
      %s75 = scalar_select %p72, %s73, %s74
      %p78 = pneg %p72
      %p79 = scmp.eq.s32.totalorder %s14, 5
      %p80 = por %p78, %p79
      %p81 = scmp.ne.s32.totalorder %s73, %s76
      %p82 = scmp.eq.s32.totalorder %s14, 0
      %p83 = por %p81, %p82
      %p84 = scmp.ne.s32.totalorder %s73, %s76
      %p85 = scmp.eq.s32.totalorder %s19, 5
      %p86 = por %p84, %p85
      %p87 = scmp.ne.s32.totalorder %s76, %s77
      %p88 = scmp.eq.s32.totalorder %s19, 0
      %p89 = por %p87, %p88
      %p90 = scmp.ne.s32.totalorder %s76, %s77
      %p91 = scmp.eq.s32.totalorder %s20, 5
      %p92 = por %p90, %p91
      %p94 = scmp.ne.s32.totalorder %s77, %s93
      %p95 = scmp.eq.s32.totalorder %s20, 0
      %p96 = por %p94, %p95
      %s97 = ssub.s32 %s21, %s40
      %s98 = ssub.s32 %s22, %s36
      %s99 = sor.u32 %s97, %s98
      %s100 = ssub.s32 %s23, %s32
      %s101 = sor.u32 %s99, %s100
      %p102 = scmp.eq.s32.totalorder %s101, 0
      %s104 = sadd.s32 %s103, 1
      %s105 = scalar_select %p102, %s103, %s104
      %p108 = pneg %p102
      %p109 = scmp.eq.s32.totalorder %s14, 5
      %p110 = por %p108, %p109
      %p111 = scmp.ne.s32.totalorder %s103, %s106
      %p112 = scmp.eq.s32.totalorder %s14, 0
      %p113 = por %p111, %p112
      %p114 = scmp.ne.s32.totalorder %s103, %s106
      %p115 = scmp.eq.s32.totalorder %s19, 5
      %p116 = por %p114, %p115
      %p117 = scmp.ne.s32.totalorder %s106, %s107
      %p118 = scmp.eq.s32.totalorder %s19, 0
      %p119 = por %p117, %p118
      %p120 = scmp.ne.s32.totalorder %s106, %s107
      %p121 = scmp.eq.s32.totalorder %s20, 5
      %p122 = por %p120, %p121
      %p124 = scmp.ne.s32.totalorder %s107, %s123
      %p125 = scmp.eq.s32.totalorder %s20, 0
      %p126 = por %p124, %p125
      %s127 = ssub.s32 %s21, %s40
      %s128 = ssub.s32 %s22, %s36
      %s129 = sor.u32 %s127, %s128
      %p130 = scmp.eq.s32.totalorder %s129, 0
      %s132 = sadd.s32 %s131, 1
      %s133 = scalar_select %p130, %s131, %s132
      %p136 = pneg %p130
      %p137 = scmp.eq.s32.totalorder %s14, 5
      %p138 = por %p136, %p137
      %p139 = scmp.ne.s32.totalorder %s131, %s134
      %p140 = scmp.eq.s32.totalorder %s14, 0
      %p141 = por %p139, %p140
      %p142 = scmp.ne.s32.totalorder %s131, %s134
      %p143 = scmp.eq.s32.totalorder %s19, 5
      %p144 = por %p142, %p143
      %p145 = scmp.ne.s32.totalorder %s134, %s135
      %p146 = scmp.eq.s32.totalorder %s19, 0
      %p147 = por %p145, %p146
      %p148 = scmp.ne.s32.totalorder %s134, %s135
      %p149 = scmp.eq.s32.totalorder %s20, 5
      %p150 = por %p148, %p149
      %p152 = scmp.ne.s32.totalorder %s135, %s151
      %p153 = scmp.eq.s32.totalorder %s20, 0
      %p154 = por %p152, %p153
      %s155 = ssub.s32 %s21, %s40
      %s156 = ssub.s32 %s22, %s36
      %s157 = sor.u32 %s155, %s156
      %p158 = scmp.eq.s32.totalorder %s157, 0
      %s160 = sadd.s32 %s159, 1
      %s161 = scalar_select %p158, %s159, %s160
      %p164 = pneg %p158
      %p165 = scmp.eq.s32.totalorder %s14, 5
      %p166 = por %p164, %p165
      %p167 = scmp.ne.s32.totalorder %s159, %s162
      %p168 = scmp.eq.s32.totalorder %s14, 0
      %p169 = por %p167, %p168
      %p170 = scmp.ne.s32.totalorder %s159, %s162
      %p171 = scmp.eq.s32.totalorder %s19, 5
      %p172 = por %p170, %p171
      %p173 = scmp.ne.s32.totalorder %s162, %s163
      %p174 = scmp.eq.s32.totalorder %s19, 0
      %p175 = por %p173, %p174
      %p176 = scmp.ne.s32.totalorder %s162, %s163
      %p177 = scmp.eq.s32.totalorder %s20, 5
      %p178 = por %p176, %p177
      %p180 = scmp.ne.s32.totalorder %s163, %s179
      %p181 = scmp.eq.s32.totalorder %s20, 0
      %p182 = por %p180, %p181
      %p183 = scmp.le.s32.totalorder 1, %s14
      %p184 = scmp.lt.s32.totalorder %s14, 7
      %p185 = pnand %p183, %p184
      %p186 = pneg %p185
      // Predicated region
      $region9: #{_lambda_.7} parent=5 // pred_check
        _
      $region10: #{_lambda_.7} parent=5 // pred_check_branch
        %188 = sbr.rel (%p185) target = $region12
      $region11: #{_lambda_.7} parent=5 // pred_region
        %s189 = ssub.s32 %s14, 1
      $region12: #{_lambda_.7} parent=5 // pred_fallthru
        _
      %p190 = scmp.lt.s32.totalorder %s14, 6
      // Predicated region
      $region13: #{_lambda_.7} parent=5 // pred_check
        %p191 = pneg %p190
      $region14: #{_lambda_.7} parent=5 // pred_check_branch
        %193 = sbr.rel (%p191) target = $region16
      $region15: #{_lambda_.7} parent=5 // pred_region
        // Predicated region
        $region17: #{_lambda_.7} parent=15 // pred_check
          %p194 = pneg %p57
        $region18: #{_lambda_.7} parent=15 // pred_check_branch
          %196 = sbr.rel (%p194) target = $region20
        $region19: #{_lambda_.7} parent=15 // pred_region
          %s197 = smul.u32 32, %s23
          %p198 = scmp.lt.s32.totalorder %s21, 2
          %s199 = scalar_select %p198, %s21, 2
          %p200 = scmp.lt.s32.totalorder %s22, 1
          %s201 = scalar_select %p200, %s22, 1
          %p202 = scmp.lt.s32.totalorder %s197, 31
          %s203 = scalar_select %p202, %s197, 31
          %s204 = smul.addr %s203, 3
          %s205 = smul.addr %s201, 96
          %s206 = sadd.s32 %s204, %s205
          %s207 = smul.addr %s199, 192
          %s208 = sadd.s32 %s206, %s207
          %s209 = smul.addr %s208, 4
          %s210 = scalar_lea.vmem %s0, %s209
          %s211 = smul.u32 32, %s23
        $region20: #{_lambda_.7} parent=15 // pred_fallthru
          _
        // Predicated region
        $region21: #{_lambda_.7} parent=15 // pred_check
          %p212 = pneg %p83
        $region22: #{_lambda_.7} parent=15 // pred_check_branch
          %214 = sbr.rel (%p212) target = $region24
        $region23: #{_lambda_.7} parent=15 // pred_region
          %p215 = scmp.lt.s32.totalorder %s21, 2
          %s216 = scalar_select %p215, %s21, 2
          %s217 = smul.addr %s216, 36
          %s218 = smul.addr %s217, 4
          %s219 = scalar_lea.vmem %s1, %s218
        $region24: #{_lambda_.7} parent=15 // pred_fallthru
          _
      $region16: #{_lambda_.7} parent=5 // pred_fallthru
        _
      %p220 = scmp.le.s32.totalorder 1, %s14
      %p221 = scmp.lt.s32.totalorder %s14, 7
      %p222 = pnand %p220, %p221
      %p223 = pneg %p222
      // Predicated region
      $region25: #{_lambda_.7} parent=5 // pred_check
        _
      $region26: #{_lambda_.7} parent=5 // pred_check_branch
        %225 = sbr.rel (%p222) target = $region28
      $region27: #{_lambda_.7} parent=5 // pred_region
        %s226 = ssub.s32 %s14, 1
        %s227 = smul.u32 32, %s26
        %p228 = scmp.lt.s32.totalorder %s24, 2
        %s229 = scalar_select %p228, %s24, 2
        %p230 = scmp.lt.s32.totalorder %s25, 1
        %s231 = scalar_select %p230, %s25, 1
        %p232 = scmp.lt.s32.totalorder %s227, 31
        %s233 = scalar_select %p232, %s227, 31
        %s234 = smul.addr %s233, 3
        %s235 = smul.addr %s231, 96
        %s236 = sadd.s32 %s234, %s235
        %s237 = smul.addr %s229, 192
        %s238 = sadd.s32 %s236, %s237
        %s239 = smul.addr %s238, 4
        %s240 = scalar_lea.vmem %s0, %s239
        %p241 = pneg %p63
        %p242 = pneg %p60
        %p243 = scmp.lt.s32.totalorder %s24, 2
        %s244 = scalar_select %p243, %s24, 2
        %s245 = smul.addr %s244, 36
        %s246 = smul.addr %s245, 4
        %s247 = scalar_lea.vmem %s1, %s246
        %p248 = pneg %p89
        %p249 = pneg %p86
        %p250 = pneg %p119
        %p251 = pneg %p116
        %s252 = smul.u32 32, %s26
        %p253 = scmp.lt.s32.totalorder %s24, 2
        %s254 = scalar_select %p253, %s24, 2
        %p255 = scmp.lt.s32.totalorder %s25, 1
        %s256 = scalar_select %p255, %s25, 1
        %p257 = scmp.lt.s32.totalorder %s252, 31
        %s258 = scalar_select %p257, %s252, 31
        %s259 = smul.addr %s256, 32
        %s260 = sadd.s32 %s258, %s259
        %s261 = smul.addr %s254, 64
        %s262 = sadd.s32 %s260, %s261
        %s263 = smul.addr %s262, 4
        %s264 = scalar_lea.vmem %s2, %s263
        %p265 = pneg %p147
        %p266 = pneg %p144
        %p267 = scmp.lt.s32.totalorder %s24, 2
        %s268 = scalar_select %p267, %s24, 2
        %p269 = scmp.lt.s32.totalorder %s25, 1
        %s270 = scalar_select %p269, %s25, 1
        %s271 = smul.addr %s268, 2
        %s272 = sadd.s32 %s270, %s271
        %s273 = scalar_lea.vmem %s3, %s272
        %p274 = pneg %p175
        %p275 = pneg %p172
        %s276 = sand.u32 %s162, 1
        %s277 = scalar_lea.sflag [#allocation3], %s276
        %s278 = sand.u32 %s162, 1
        %s279 = scalar_lea.vmem [#allocation2], %s278
        %s280 = smul.u32 32, %s26
        %p281 = scmp.lt.s32.totalorder %s24, 2
        %s282 = scalar_select %p281, %s24, 2
        %p283 = scmp.lt.s32.totalorder %s25, 1
        %s284 = scalar_select %p283, %s25, 1
        %p285 = scmp.lt.s32.totalorder %s280, 31
        %s286 = scalar_select %p285, %s280, 31
        %s287 = smul.addr %s286, 3
        %s288 = smul.addr %s284, 96
        %s289 = sadd.s32 %s287, %s288
        %s290 = smul.addr %s282, 192
        %s291 = sadd.s32 %s289, %s290
        %s292 = smul.addr %s291, 4
        %s293 = scalar_lea.vmem %s0, %s292
        %s294 = smul.u32 32, %s26
        %p295 = scmp.lt.s32.totalorder %s24, 2
        %s296 = scalar_select %p295, %s24, 2
        %s297 = smul.addr %s296, 36
        %s298 = smul.addr %s297, 4
        %s299 = scalar_lea.vmem %s1, %s298
        %s300 = smul.u32 32, %s26
        %p301 = scmp.lt.s32.totalorder %s24, 2
        %s302 = scalar_select %p301, %s24, 2
        %p303 = scmp.lt.s32.totalorder %s25, 1
        %s304 = scalar_select %p303, %s25, 1
        %p305 = scmp.lt.s32.totalorder %s300, 31
        %s306 = scalar_select %p305, %s300, 31
        %s307 = smul.addr %s304, 32
        %s308 = sadd.s32 %s306, %s307
        %s309 = smul.addr %s302, 64
        %s310 = sadd.s32 %s308, %s309
        %s311 = smul.addr %s310, 4
        %s312 = scalar_lea.vmem %s2, %s311
        %s313 = smul.u32 32, %s26
        %p314 = scmp.lt.s32.totalorder %s24, 2
        %s315 = scalar_select %p314, %s24, 2
        %p316 = scmp.lt.s32.totalorder %s25, 1
        %s317 = scalar_select %p316, %s25, 1
        %s318 = smul.addr %s315, 2
        %s319 = sadd.s32 %s317, %s318
        %s320 = scalar_lea.vmem %s3, %s319
        %v322 = vld [vmem:[%s293] sm:$0xff]
        %v323 = vld [vmem:[%s293 + $0x8] sm:$0xf]
        %v324 = vld [vmem:[%s293 + $0xc] sm:$0xff]
        %v325 = vld [vmem:[%s293 + $0x14] sm:$0xf]
        %v326 = vld [vmem:[%s293 + $0x18] sm:$0xff]
        %v327 = vld [vmem:[%s293 + $0x20] sm:$0xf]
        %v328 = vld [vmem:[%s293 + $0x24] sm:$0xff]
        %v329 = vld [vmem:[%s293 + $0x2c] sm:$0xf]
        %v330 = vld [vmem:[%s293 + $0x30] sm:$0xff]
        %v331 = vld [vmem:[%s293 + $0x38] sm:$0xf]
        %v332 = vld [vmem:[%s293 + $0x3c] sm:$0xff]
        %v333 = vld [vmem:[%s293 + $0x44] sm:$0xf]
        %v334 = vld [vmem:[%s293 + $0x48] sm:$0xff]
        %v335 = vld [vmem:[%s293 + $0x50] sm:$0xf]
        %v336 = vld [vmem:[%s293 + $0x54] sm:$0xff]
        %v337 = vld [vmem:[%s293 + $0x5c] sm:$0xf]
        %v338 = vld [vmem:[%s293 + $0x60] sm:$0xff]
        %v339 = vld [vmem:[%s293 + $0x68] sm:$0xf]
        %v340 = vld [vmem:[%s293 + $0x6c] sm:$0xff]
        %v341 = vld [vmem:[%s293 + $0x74] sm:$0xf]
        %v342 = vld [vmem:[%s293 + $0x78] sm:$0xff]
        %v343 = vld [vmem:[%s293 + $0x80] sm:$0xf]
        %v344 = vld [vmem:[%s293 + $0x84] sm:$0xff]
        %v345 = vld [vmem:[%s293 + $0x8c] sm:$0xf]
        %v346 = vld [vmem:[%s293 + $0x90] sm:$0xff]
        %v347 = vld [vmem:[%s293 + $0x98] sm:$0xf]
        %v348 = vld [vmem:[%s293 + $0x9c] sm:$0xff]
        %v349 = vld [vmem:[%s293 + $0xa4] sm:$0xf]
        %v350 = vld [vmem:[%s293 + $0xa8] sm:$0xff]
        %v351 = vld [vmem:[%s293 + $0xb0] sm:$0xf]
        %v352 = vld [vmem:[%s293 + $0xb4] sm:$0xff]
        %v353 = vld [vmem:[%s293 + $0xbc] sm:$0xf]
        %v354 = vld [vmem:[%s293 + $0xc0] sm:$0xff]
        %v355 = vld [vmem:[%s293 + $0xc8] sm:$0xf]
        %v356 = vld [vmem:[%s293 + $0xcc] sm:$0xff]
        %v357 = vld [vmem:[%s293 + $0xd4] sm:$0xf]
        %v358 = vld [vmem:[%s293 + $0xd8] sm:$0xff]
        %v359 = vld [vmem:[%s293 + $0xe0] sm:$0xf]
        %v360 = vld [vmem:[%s293 + $0xe4] sm:$0xff]
        %v361 = vld [vmem:[%s293 + $0xec] sm:$0xf]
        %v362 = vld [vmem:[%s293 + $0xf0] sm:$0xff]
        %v363 = vld [vmem:[%s293 + $0xf8] sm:$0xf]
        %v364 = vld [vmem:[%s293 + $0xfc] sm:$0xff]
        %v365 = vld [vmem:[%s293 + $0x104] sm:$0xf]
        %v366 = vld [vmem:[%s293 + $0x108] sm:$0xff]
        %v367 = vld [vmem:[%s293 + $0x110] sm:$0xf]
        %v368 = vld [vmem:[%s293 + $0x114] sm:$0xff]
        %v369 = vld [vmem:[%s293 + $0x11c] sm:$0xf]
        %v370 = vld [vmem:[%s293 + $0x120] sm:$0xff]
        %v371 = vld [vmem:[%s293 + $0x128] sm:$0xf]
        %v372 = vld [vmem:[%s293 + $0x12c] sm:$0xff]
        %v373 = vld [vmem:[%s293 + $0x134] sm:$0xf]
        %v374 = vld [vmem:[%s293 + $0x138] sm:$0xff]
        %v375 = vld [vmem:[%s293 + $0x140] sm:$0xf]
        %v376 = vld [vmem:[%s293 + $0x144] sm:$0xff]
        %v377 = vld [vmem:[%s293 + $0x14c] sm:$0xf]
        %v378 = vld [vmem:[%s293 + $0x150] sm:$0xff]
        %v379 = vld [vmem:[%s293 + $0x158] sm:$0xf]
        %v380 = vld [vmem:[%s293 + $0x15c] sm:$0xff]
        %v381 = vld [vmem:[%s293 + $0x164] sm:$0xf]
        %v382 = vld [vmem:[%s293 + $0x168] sm:$0xff]
        %v383 = vld [vmem:[%s293 + $0x170] sm:$0xf]
        %v384 = vld [vmem:[%s293 + $0x174] sm:$0xff]
        %v385 = vld [vmem:[%s293 + $0x17c] sm:$0xf]
        %v386 = vld [vmem:[%s299] sm:$0xf]
        %v387 = vld [vmem:[%s299 + $0x4] sm:$0xf]
        %v388 = vld [vmem:[%s299 + $0x8] sm:$0xf]
        %v389 = vld [vmem:[%s299 + $0xc] sm:$0xf]
        %v390 = vld [vmem:[%s299 + $0x10] sm:$0xf]
        %v391 = vld [vmem:[%s299 + $0x14] sm:$0xf]
        %v392 = vld [vmem:[%s299 + $0x18] sm:$0xf]
        %v393 = vld [vmem:[%s299 + $0x1c] sm:$0xf]
        %v394 = vld [vmem:[%s299 + $0x20] sm:$0xf]
        %v395 = vld [vmem:[%s299 + $0x24] sm:$0xf]
        %v396 = vld [vmem:[%s299 + $0x28] sm:$0xf]
        %v397 = vld [vmem:[%s299 + $0x2c] sm:$0xf]
        %v398 = vld [vmem:[%s299 + $0x30] sm:$0xf]
        %v399 = vld [vmem:[%s299 + $0x34] sm:$0xf]
        %v400 = vld [vmem:[%s299 + $0x38] sm:$0xf]
        %v401 = vld [vmem:[%s299 + $0x3c] sm:$0xf]
        %v402 = vld [vmem:[%s299 + $0x40] sm:$0xf]
        %v403 = vld [vmem:[%s299 + $0x44] sm:$0xf]
        %v404 = vld [vmem:[%s299 + $0x48] sm:$0xf]
        %v405 = vld [vmem:[%s299 + $0x4c] sm:$0xf]
        %v406 = vld [vmem:[%s299 + $0x50] sm:$0xf]
        %v407 = vld [vmem:[%s299 + $0x54] sm:$0xf]
        %v408 = vld [vmem:[%s299 + $0x58] sm:$0xf]
        %v409 = vld [vmem:[%s299 + $0x5c] sm:$0xf]
        %v410 = vld [vmem:[%s299 + $0x60] sm:$0xf]
        %v411 = vld [vmem:[%s299 + $0x64] sm:$0xf]
        %v412 = vld [vmem:[%s299 + $0x68] sm:$0xf]
        %v413 = vld [vmem:[%s299 + $0x6c] sm:$0xf]
        %v414 = vld [vmem:[%s299 + $0x70] sm:$0xf]
        %v415 = vld [vmem:[%s299 + $0x74] sm:$0xf]
        %v416 = vld [vmem:[%s299 + $0x78] sm:$0xf]
        %v417 = vld [vmem:[%s299 + $0x7c] sm:$0xf]
        %v418 = vld [vmem:[%s299 + $0x80] sm:$0xf]
        %v419 = vld [vmem:[%s299 + $0x84] sm:$0xf]
        %v420 = vld [vmem:[%s299 + $0x88] sm:$0xf]
        %v421 = vld [vmem:[%s299 + $0x8c] sm:$0xf]
        %v486 = vunpack.c.l.b16 %v322
        %v487 = vunpack.c.h.b16 %v322
        %v488 = vunpack.c.l.b16 %v323
        %v489 = vunpack.c.l.b16 %v324
        %v490 = vunpack.c.h.b16 %v324
        %v491 = vunpack.c.l.b16 %v325
        %v492 = vunpack.c.l.b16 %v326
        %v493 = vunpack.c.h.b16 %v326
        %v494 = vunpack.c.l.b16 %v327
        %v495 = vunpack.c.l.b16 %v328
        %v496 = vunpack.c.h.b16 %v328
        %v497 = vunpack.c.l.b16 %v329
        %v498 = vunpack.c.l.b16 %v330
        %v499 = vunpack.c.h.b16 %v330
        %v500 = vunpack.c.l.b16 %v331
        %v501 = vunpack.c.l.b16 %v332
        %v502 = vunpack.c.h.b16 %v332
        %v503 = vunpack.c.l.b16 %v333
        %v504 = vunpack.c.l.b16 %v334
        %v505 = vunpack.c.h.b16 %v334
        %v506 = vunpack.c.l.b16 %v335
        %v507 = vunpack.c.l.b16 %v336
        %v508 = vunpack.c.h.b16 %v336
        %v509 = vunpack.c.l.b16 %v337
        %v510 = vunpack.c.l.b16 %v338
        %v511 = vunpack.c.h.b16 %v338
        %v512 = vunpack.c.l.b16 %v339
        %v513 = vunpack.c.l.b16 %v340
        %v514 = vunpack.c.h.b16 %v340
        %v515 = vunpack.c.l.b16 %v341
        %v516 = vunpack.c.l.b16 %v342
        %v517 = vunpack.c.h.b16 %v342
        %v518 = vunpack.c.l.b16 %v343
        %v519 = vunpack.c.l.b16 %v344
        %v520 = vunpack.c.h.b16 %v344
        %v521 = vunpack.c.l.b16 %v345
        %v522 = vunpack.c.l.b16 %v346
        %v523 = vunpack.c.h.b16 %v346
        %v524 = vunpack.c.l.b16 %v347
        %v525 = vunpack.c.l.b16 %v348
        %v526 = vunpack.c.h.b16 %v348
        %v527 = vunpack.c.l.b16 %v349
        %v528 = vunpack.c.l.b16 %v350
        %v529 = vunpack.c.h.b16 %v350
        %v530 = vunpack.c.l.b16 %v351
        %v531 = vunpack.c.l.b16 %v352
        %v532 = vunpack.c.h.b16 %v352
        %v533 = vunpack.c.l.b16 %v353
        %v534 = vunpack.c.l.b16 %v354
        %v535 = vunpack.c.h.b16 %v354
        %v536 = vunpack.c.l.b16 %v355
        %v537 = vunpack.c.l.b16 %v356
        %v538 = vunpack.c.h.b16 %v356
        %v539 = vunpack.c.l.b16 %v357
        %v540 = vunpack.c.l.b16 %v358
        %v541 = vunpack.c.h.b16 %v358
        %v542 = vunpack.c.l.b16 %v359
        %v543 = vunpack.c.l.b16 %v360
        %v544 = vunpack.c.h.b16 %v360
        %v545 = vunpack.c.l.b16 %v361
        %v546 = vunpack.c.l.b16 %v362
        %v547 = vunpack.c.h.b16 %v362
        %v548 = vunpack.c.l.b16 %v363
        %v549 = vunpack.c.l.b16 %v364
        %v550 = vunpack.c.h.b16 %v364
        %v551 = vunpack.c.l.b16 %v365
        %v552 = vunpack.c.l.b16 %v366
        %v553 = vunpack.c.h.b16 %v366
        %v554 = vunpack.c.l.b16 %v367
        %v555 = vunpack.c.l.b16 %v368
        %v556 = vunpack.c.h.b16 %v368
        %v557 = vunpack.c.l.b16 %v369
        %v558 = vunpack.c.l.b16 %v370
        %v559 = vunpack.c.h.b16 %v370
        %v560 = vunpack.c.l.b16 %v371
        %v561 = vunpack.c.l.b16 %v372
        %v562 = vunpack.c.h.b16 %v372
        %v563 = vunpack.c.l.b16 %v373
        %v564 = vunpack.c.l.b16 %v374
        %v565 = vunpack.c.h.b16 %v374
        %v566 = vunpack.c.l.b16 %v375
        %v567 = vunpack.c.l.b16 %v376
        %v568 = vunpack.c.h.b16 %v376
        %v569 = vunpack.c.l.b16 %v377
        %v570 = vunpack.c.l.b16 %v378
        %v571 = vunpack.c.h.b16 %v378
        %v572 = vunpack.c.l.b16 %v379
        %v573 = vunpack.c.l.b16 %v380
        %v574 = vunpack.c.h.b16 %v380
        %v575 = vunpack.c.l.b16 %v381
        %v576 = vunpack.c.l.b16 %v382
        %v577 = vunpack.c.h.b16 %v382
        %v578 = vunpack.c.l.b16 %v383
        %v579 = vunpack.c.l.b16 %v384
        %v580 = vunpack.c.h.b16 %v384
        %v581 = vunpack.c.l.b16 %v385
        %v582 = vpack.c.b16 %v489, %v486
        %v583 = vpack.c.b16 %v490, %v487
        %v584 = vpack.c.b16 %v491, %v488
        %v585 = vpack.c.b16 %v495, %v492
        %v586 = vpack.c.b16 %v496, %v493
        %v587 = vpack.c.b16 %v497, %v494
        %v588 = vpack.c.b16 %v501, %v498
        %v589 = vpack.c.b16 %v502, %v499
        %v590 = vpack.c.b16 %v503, %v500
        %v591 = vpack.c.b16 %v507, %v504
        %v592 = vpack.c.b16 %v508, %v505
        %v593 = vpack.c.b16 %v509, %v506
        %v594 = vpack.c.b16 %v513, %v510
        %v595 = vpack.c.b16 %v514, %v511
        %v596 = vpack.c.b16 %v515, %v512
        %v597 = vpack.c.b16 %v519, %v516
        %v598 = vpack.c.b16 %v520, %v517
        %v599 = vpack.c.b16 %v521, %v518
        %v600 = vpack.c.b16 %v525, %v522
        %v601 = vpack.c.b16 %v526, %v523
        %v602 = vpack.c.b16 %v527, %v524
        %v603 = vpack.c.b16 %v531, %v528
        %v604 = vpack.c.b16 %v532, %v529
        %v605 = vpack.c.b16 %v533, %v530
        %v606 = vpack.c.b16 %v537, %v534
        %v607 = vpack.c.b16 %v538, %v535
        %v608 = vpack.c.b16 %v539, %v536
        %v609 = vpack.c.b16 %v543, %v540
        %v610 = vpack.c.b16 %v544, %v541
        %v611 = vpack.c.b16 %v545, %v542
        %v612 = vpack.c.b16 %v549, %v546
        %v613 = vpack.c.b16 %v550, %v547
        %v614 = vpack.c.b16 %v551, %v548
        %v615 = vpack.c.b16 %v555, %v552
        %v616 = vpack.c.b16 %v556, %v553
        %v617 = vpack.c.b16 %v557, %v554
        %v618 = vpack.c.b16 %v561, %v558
        %v619 = vpack.c.b16 %v562, %v559
        %v620 = vpack.c.b16 %v563, %v560
        %v621 = vpack.c.b16 %v567, %v564
        %v622 = vpack.c.b16 %v568, %v565
        %v623 = vpack.c.b16 %v569, %v566
        %v624 = vpack.c.b16 %v573, %v570
        %v625 = vpack.c.b16 %v574, %v571
        %v626 = vpack.c.b16 %v575, %v572
        %v627 = vpack.c.b16 %v579, %v576
        %v628 = vpack.c.b16 %v580, %v577
        %v629 = vpack.c.b16 %v581, %v578
        %v698 = vunpack.c.l.b16 %v386
        %v699 = vunpack.c.l.b16 %v387
        %v700 = vunpack.c.l.b16 %v388
        %v701 = vunpack.c.l.b16 %v389
        %v702 = vunpack.c.l.b16 %v390
        %v703 = vunpack.c.l.b16 %v391
        %v704 = vunpack.c.l.b16 %v392
        %v705 = vunpack.c.l.b16 %v393
        %v706 = vunpack.c.l.b16 %v394
        %v707 = vunpack.c.l.b16 %v395
        %v708 = vunpack.c.l.b16 %v396
        %v709 = vunpack.c.l.b16 %v397
        %v710 = vunpack.c.l.b16 %v398
        %v711 = vunpack.c.l.b16 %v399
        %v712 = vunpack.c.l.b16 %v400
        %v713 = vunpack.c.l.b16 %v401
        %v714 = vunpack.c.l.b16 %v402
        %v715 = vunpack.c.l.b16 %v403
        %v716 = vunpack.c.l.b16 %v404
        %v717 = vunpack.c.l.b16 %v405
        %v718 = vunpack.c.l.b16 %v406
        %v719 = vunpack.c.l.b16 %v407
        %v720 = vunpack.c.l.b16 %v408
        %v721 = vunpack.c.l.b16 %v409
        %v722 = vunpack.c.l.b16 %v410
        %v723 = vunpack.c.l.b16 %v411
        %v724 = vunpack.c.l.b16 %v412
        %v725 = vunpack.c.l.b16 %v413
        %v726 = vunpack.c.l.b16 %v414
        %v727 = vunpack.c.l.b16 %v415
        %v728 = vunpack.c.l.b16 %v416
        %v729 = vunpack.c.l.b16 %v417
        %v730 = vunpack.c.l.b16 %v418
        %v731 = vunpack.c.l.b16 %v419
        %v732 = vunpack.c.l.b16 %v420
        %v733 = vunpack.c.l.b16 %v421
        %v734 = vpack.c.b16 %v699, %v698
        %v735 = vpack.c.b16 %v701, %v700
        %v736 = vpack.c.b16 %v703, %v702
        %v737 = vpack.c.b16 %v705, %v704
        %v738 = vpack.c.b16 %v707, %v706
        %v739 = vpack.c.b16 %v709, %v708
        %v740 = vpack.c.b16 %v711, %v710
        %v741 = vpack.c.b16 %v713, %v712
        %v742 = vpack.c.b16 %v715, %v714
        %v743 = vpack.c.b16 %v717, %v716
        %v744 = vpack.c.b16 %v719, %v718
        %v745 = vpack.c.b16 %v721, %v720
        %v746 = vpack.c.b16 %v723, %v722
        %v747 = vpack.c.b16 %v725, %v724
        %v748 = vpack.c.b16 %v727, %v726
        %v749 = vpack.c.b16 %v729, %v728
        %v750 = vpack.c.b16 %v731, %v730
        %v751 = vpack.c.b16 %v733, %v732
        %vm770 = vcmask 261120
        %v772 = vsel %vm770, %v584, 0
        %v775 = vsel %vm770, %v587, 0
        %v778 = vsel %vm770, %v590, 0
        %v781 = vsel %vm770, %v593, 0
        %v784 = vsel %vm770, %v596, 0
        %v787 = vsel %vm770, %v599, 0
        %v790 = vsel %vm770, %v602, 0
        %v793 = vsel %vm770, %v605, 0
        %v796 = vsel %vm770, %v608, 0
        %v799 = vsel %vm770, %v611, 0
        %v802 = vsel %vm770, %v614, 0
        %v805 = vsel %vm770, %v617, 0
        %v808 = vsel %vm770, %v620, 0
        %v811 = vsel %vm770, %v623, 0
        %v814 = vsel %vm770, %v626, 0
        %v817 = vsel %vm770, %v629, 0
        %819 = vmatprep.subr.bf16.mxu0 0
        %820 = vmatpush1.bf16.msra.mxu0 %v734
        %821 = vmatprep.subr.bf16.mxu0 0
        %822 = vmatpush1.bf16.msra.mxu0 %v735
        %823 = vmatprep.subr.bf16.mxu0 0
        %824 = vmatpush1.bf16.msra.mxu0 %v736
        %825 = vmatprep.subr.bf16.mxu0 0
        %826 = vmatpush1.bf16.msra.mxu0 %v737
        %827 = vmatprep.subr.bf16.mxu0 0
        %828 = vmatpush1.bf16.msra.mxu0 %v738
        %829 = vmatprep.subr.bf16.mxu0 0
        %830 = vmatpush1.bf16.msra.mxu0 %v739
        %831 = vmatprep.subr.bf16.mxu0 0
        %832 = vmatpush1.bf16.msra.mxu0 %v740
        %833 = vmatprep.subr.bf16.mxu0 0
        %834 = vmatpush1.bf16.msra.mxu0 %v741
        %835 = vmatprep.subr.bf16.mxu0 0
        %836 = vmatpush1.bf16.msra.mxu0 %v742
        %837 = vmatprep.subr.bf16.mxu0 0
        %838 = vmatpush1.bf16.msra.mxu0 %v743
        %839 = vmatprep.subr.bf16.mxu0 0
        %840 = vmatpush1.bf16.msra.mxu0 %v744
        %841 = vmatprep.subr.bf16.mxu0 0
        %842 = vmatpush1.bf16.msra.mxu0 %v745
        %843 = vmatprep.subr.bf16.mxu0 0
        %844 = vmatpush1.bf16.msra.mxu0 %v746
        %845 = vmatprep.subr.bf16.mxu0 0
        %846 = vmatpush1.bf16.msra.mxu0 %v747
        %847 = vmatprep.subr.bf16.mxu0 0
        %848 = vmatpush1.bf16.msra.mxu0 %v748
        %849 = vmatprep.subr.bf16.mxu0 0
        %850 = vmatpush1.bf16.msra.mxu0 %v749
        %851 = vmatprep.mubr.bf16.mxu0 %v583
        %852 = vmatmul.mubr.bf16.gmra.mrb[0].mxu0 %v582
        %v853 = vpop.f32.mrb[0].mxu0
        %v854 = vadd.f32 0.0, %v853
        %v855 = vpop.f32.mrb[0].mxu0
        %v856 = vpop.f32.mrb[0].mxu0
        %v857 = vadd.f32 0.0, %v856
        %v858 = vpop.f32.mrb[0].mxu0
        %859 = vmatprep.mubr.bf16.mxu0 %v586
        %860 = vmatmul.mubr.bf16.gmra.mrb[0].mxu0 %v585
        %v861 = vpop.f32.mrb[0].mxu0
        %v862 = vadd.f32 0.0, %v861
        %v863 = vpop.f32.mrb[0].mxu0
        %v864 = vpop.f32.mrb[0].mxu0
        %v865 = vadd.f32 0.0, %v864
        %v866 = vpop.f32.mrb[0].mxu0
        %867 = vmatprep.mubr.bf16.mxu0 %v589
        %868 = vmatmul.mubr.bf16.gmra.mrb[0].mxu0 %v588
        %v869 = vpop.f32.mrb[0].mxu0
        %v870 = vadd.f32 0.0, %v869
        %v871 = vpop.f32.mrb[0].mxu0
        %v872 = vpop.f32.mrb[0].mxu0
        %v873 = vadd.f32 0.0, %v872
        %v874 = vpop.f32.mrb[0].mxu0
        %875 = vmatprep.mubr.bf16.mxu0 %v592
        %876 = vmatmul.mubr.bf16.gmra.mrb[0].mxu0 %v591
        %v877 = vpop.f32.mrb[0].mxu0
        %v878 = vadd.f32 0.0, %v877
        %v879 = vpop.f32.mrb[0].mxu0
        %v880 = vpop.f32.mrb[0].mxu0
        %v881 = vadd.f32 0.0, %v880
        %v882 = vpop.f32.mrb[0].mxu0
        %883 = vmatprep.mubr.bf16.mxu0 %v595
        %884 = vmatmul.mubr.bf16.gmra.mrb[0].mxu0 %v594
        %v885 = vpop.f32.mrb[0].mxu0
        %v886 = vadd.f32 0.0, %v885
        %v887 = vpop.f32.mrb[0].mxu0
        %v888 = vpop.f32.mrb[0].mxu0
        %v889 = vadd.f32 0.0, %v888
        %v890 = vpop.f32.mrb[0].mxu0
        %891 = vmatprep.mubr.bf16.mxu0 %v598
        %892 = vmatmul.mubr.bf16.gmra.mrb[0].mxu0 %v597
        %v893 = vpop.f32.mrb[0].mxu0
        %v894 = vadd.f32 0.0, %v893
        %v895 = vpop.f32.mrb[0].mxu0
        %v896 = vpop.f32.mrb[0].mxu0
        %v897 = vadd.f32 0.0, %v896
        %v898 = vpop.f32.mrb[0].mxu0
        %899 = vmatprep.mubr.bf16.mxu0 %v601
        %900 = vmatmul.mubr.bf16.gmra.mrb[0].mxu0 %v600
        %v901 = vpop.f32.mrb[0].mxu0
        %v902 = vadd.f32 0.0, %v901
        %v903 = vpop.f32.mrb[0].mxu0
        %v904 = vpop.f32.mrb[0].mxu0
        %v905 = vadd.f32 0.0, %v904
        %v906 = vpop.f32.mrb[0].mxu0
        %907 = vmatprep.mubr.bf16.mxu0 %v604
        %908 = vmatmul.mubr.bf16.gmra.mrb[0].mxu0 %v603
        %v909 = vpop.f32.mrb[0].mxu0
        %v910 = vadd.f32 0.0, %v909
        %v911 = vpop.f32.mrb[0].mxu0
        %v912 = vpop.f32.mrb[0].mxu0
        %v913 = vadd.f32 0.0, %v912
        %v914 = vpop.f32.mrb[0].mxu0
        %915 = vmatprep.mubr.bf16.mxu0 %v607
        %916 = vmatmul.mubr.bf16.gmra.mrb[0].mxu0 %v606
        %v917 = vpop.f32.mrb[0].mxu0
        %v918 = vadd.f32 0.0, %v917
        %v919 = vpop.f32.mrb[0].mxu0
        %v920 = vpop.f32.mrb[0].mxu0
        %v921 = vadd.f32 0.0, %v920
        %v922 = vpop.f32.mrb[0].mxu0
        %923 = vmatprep.mubr.bf16.mxu0 %v610
        %924 = vmatmul.mubr.bf16.gmra.mrb[0].mxu0 %v609
        %v925 = vpop.f32.mrb[0].mxu0
        %v926 = vadd.f32 0.0, %v925
        %v927 = vpop.f32.mrb[0].mxu0
        %v928 = vpop.f32.mrb[0].mxu0
        %v929 = vadd.f32 0.0, %v928
        %v930 = vpop.f32.mrb[0].mxu0
        %931 = vmatprep.mubr.bf16.mxu0 %v613
        %932 = vmatmul.mubr.bf16.gmra.mrb[0].mxu0 %v612
        %v933 = vpop.f32.mrb[0].mxu0
        %v934 = vadd.f32 0.0, %v933
        %v935 = vpop.f32.mrb[0].mxu0
        %v936 = vpop.f32.mrb[0].mxu0
        %v937 = vadd.f32 0.0, %v936
        %v938 = vpop.f32.mrb[0].mxu0
        %939 = vmatprep.mubr.bf16.mxu0 %v616
        %940 = vmatmul.mubr.bf16.gmra.mrb[0].mxu0 %v615
        %v941 = vpop.f32.mrb[0].mxu0
        %v942 = vadd.f32 0.0, %v941
        %v943 = vpop.f32.mrb[0].mxu0
        %v944 = vpop.f32.mrb[0].mxu0
        %v945 = vadd.f32 0.0, %v944
        %v946 = vpop.f32.mrb[0].mxu0
        %947 = vmatprep.mubr.bf16.mxu0 %v619
        %948 = vmatmul.mubr.bf16.gmra.mrb[0].mxu0 %v618
        %v949 = vpop.f32.mrb[0].mxu0
        %v950 = vadd.f32 0.0, %v949
        %v951 = vpop.f32.mrb[0].mxu0
        %v952 = vpop.f32.mrb[0].mxu0
        %v953 = vadd.f32 0.0, %v952
        %v954 = vpop.f32.mrb[0].mxu0
        %955 = vmatprep.mubr.bf16.mxu0 %v622
        %956 = vmatmul.mubr.bf16.gmra.mrb[0].mxu0 %v621
        %v957 = vpop.f32.mrb[0].mxu0
        %v958 = vadd.f32 0.0, %v957
        %v959 = vpop.f32.mrb[0].mxu0
        %v960 = vpop.f32.mrb[0].mxu0
        %v961 = vadd.f32 0.0, %v960
        %v962 = vpop.f32.mrb[0].mxu0
        %963 = vmatprep.mubr.bf16.mxu0 %v625
        %964 = vmatmul.mubr.bf16.gmra.mrb[0].mxu0 %v624
        %v965 = vpop.f32.mrb[0].mxu0
        %v966 = vadd.f32 0.0, %v965
        %v967 = vpop.f32.mrb[0].mxu0
        %v968 = vpop.f32.mrb[0].mxu0
        %v969 = vadd.f32 0.0, %v968
        %v970 = vpop.f32.mrb[0].mxu0
        %971 = vmatprep.mubr.bf16.mxu0 %v628
        %972 = vmatmul.mubr.bf16.gmra.mrb[0].mxu0 %v627
        %v973 = vpop.f32.mrb[0].mxu0
        %v974 = vadd.f32 0.0, %v973
        %v975 = vpop.f32.mrb[0].mxu0
        %v976 = vpop.f32.mrb[0].mxu0
        %v977 = vadd.f32 0.0, %v976
        %v978 = vpop.f32.mrb[0].mxu0
        %979 = vdwg.mxu0
        %980 = vmatprep.subr.bf16.mxu0 0
        %981 = vmatpush1.bf16.msra.mxu0 %v750
        %982 = vmatprep.subr.bf16.mxu0 0
        %983 = vmatpush1.bf16.msra.mxu0 %v751
        %984 = vmatprep.subr.bf16.mxu0 0
        %985 = vmatpush1.bf16.msra.mxu0 0
        %986 = vmatprep.subr.bf16.mxu0 0
        %987 = vmatpush1.bf16.msra.mxu0 0
        %988 = vmatprep.subr.bf16.mxu0 0
        %989 = vmatpush1.bf16.msra.mxu0 0
        %990 = vmatprep.subr.bf16.mxu0 0
        %991 = vmatpush1.bf16.msra.mxu0 0
        %992 = vmatprep.subr.bf16.mxu0 0
        %993 = vmatpush1.bf16.msra.mxu0 0
        %994 = vmatprep.subr.bf16.mxu0 0
        %995 = vmatpush1.bf16.msra.mxu0 0
        %996 = vmatprep.subr.bf16.mxu0 0
        %997 = vmatpush1.bf16.msra.mxu0 0
        %998 = vmatprep.subr.bf16.mxu0 0
        %999 = vmatpush1.bf16.msra.mxu0 0
        %1000 = vmatprep.subr.bf16.mxu0 0
        %1001 = vmatpush1.bf16.msra.mxu0 0
        %1002 = vmatprep.subr.bf16.mxu0 0
        %1003 = vmatpush1.bf16.msra.mxu0 0
        %1004 = vmatprep.subr.bf16.mxu0 0
        %1005 = vmatpush1.bf16.msra.mxu0 0
        %1006 = vmatprep.subr.bf16.mxu0 0
        %1007 = vmatpush1.bf16.msra.mxu0 0
        %1008 = vmatprep.subr.bf16.mxu0 0
        %1009 = vmatpush1.bf16.msra.mxu0 0
        %1010 = vmatprep.subr.bf16.mxu0 0
        %1011 = vmatpush1.bf16.msra.mxu0 0
        %1012 = vmatprep.mubr.bf16.mxu0 0
        %1013 = vmatmul.mubr.bf16.gmra.mrb[0].mxu0 %v772
        %v1014 = vpop.f32.mrb[0].mxu0
        %v1015 = vadd.f32 %v854, %v1014
        %v1016 = vpop.f32.mrb[0].mxu0
        %v1017 = vpop.f32.mrb[0].mxu0
        %v1018 = vadd.f32 %v857, %v1017
        %v1019 = vpop.f32.mrb[0].mxu0
        %1020 = vmatprep.mubr.bf16.mxu0 0
        %1021 = vmatmul.mubr.bf16.gmra.mrb[0].mxu0 %v775
        %v1022 = vpop.f32.mrb[0].mxu0
        %v1023 = vadd.f32 %v862, %v1022
        %v1024 = vpop.f32.mrb[0].mxu0
        %v1025 = vpop.f32.mrb[0].mxu0
        %v1026 = vadd.f32 %v865, %v1025
        %v1027 = vpop.f32.mrb[0].mxu0
        %1028 = vmatprep.mubr.bf16.mxu0 0
        %1029 = vmatmul.mubr.bf16.gmra.mrb[0].mxu0 %v778
        %v1030 = vpop.f32.mrb[0].mxu0
        %v1031 = vadd.f32 %v870, %v1030
        %v1032 = vpop.f32.mrb[0].mxu0
        %v1033 = vpop.f32.mrb[0].mxu0
        %v1034 = vadd.f32 %v873, %v1033
        %v1035 = vpop.f32.mrb[0].mxu0
        %1036 = vmatprep.mubr.bf16.mxu0 0
        %1037 = vmatmul.mubr.bf16.gmra.mrb[0].mxu0 %v781
        %v1038 = vpop.f32.mrb[0].mxu0
        %v1039 = vadd.f32 %v878, %v1038
        %v1040 = vpop.f32.mrb[0].mxu0
        %v1041 = vpop.f32.mrb[0].mxu0
        %v1042 = vadd.f32 %v881, %v1041
        %v1043 = vpop.f32.mrb[0].mxu0
        %1044 = vmatprep.mubr.bf16.mxu0 0
        %1045 = vmatmul.mubr.bf16.gmra.mrb[0].mxu0 %v784
        %v1046 = vpop.f32.mrb[0].mxu0
        %v1047 = vadd.f32 %v886, %v1046
        %v1048 = vpop.f32.mrb[0].mxu0
        %v1049 = vpop.f32.mrb[0].mxu0
        %v1050 = vadd.f32 %v889, %v1049
        %v1051 = vpop.f32.mrb[0].mxu0
        %1052 = vmatprep.mubr.bf16.mxu0 0
        %1053 = vmatmul.mubr.bf16.gmra.mrb[0].mxu0 %v787
        %v1054 = vpop.f32.mrb[0].mxu0
        %v1055 = vadd.f32 %v894, %v1054
        %v1056 = vpop.f32.mrb[0].mxu0
        %v1057 = vpop.f32.mrb[0].mxu0
        %v1058 = vadd.f32 %v897, %v1057
        %v1059 = vpop.f32.mrb[0].mxu0
        %1060 = vmatprep.mubr.bf16.mxu0 0
        %1061 = vmatmul.mubr.bf16.gmra.mrb[0].mxu0 %v790
        %v1062 = vpop.f32.mrb[0].mxu0
        %v1063 = vadd.f32 %v902, %v1062
        %v1064 = vpop.f32.mrb[0].mxu0
        %v1065 = vpop.f32.mrb[0].mxu0
        %v1066 = vadd.f32 %v905, %v1065
        %v1067 = vpop.f32.mrb[0].mxu0
        %1068 = vmatprep.mubr.bf16.mxu0 0
        %1069 = vmatmul.mubr.bf16.gmra.mrb[0].mxu0 %v793
        %v1070 = vpop.f32.mrb[0].mxu0
        %v1071 = vadd.f32 %v910, %v1070
        %v1072 = vpop.f32.mrb[0].mxu0
        %v1073 = vpop.f32.mrb[0].mxu0
        %v1074 = vadd.f32 %v913, %v1073
        %v1075 = vpop.f32.mrb[0].mxu0
        %1076 = vmatprep.mubr.bf16.mxu0 0
        %1077 = vmatmul.mubr.bf16.gmra.mrb[0].mxu0 %v796
        %v1078 = vpop.f32.mrb[0].mxu0
        %v1079 = vadd.f32 %v918, %v1078
        %v1080 = vpop.f32.mrb[0].mxu0
        %v1081 = vpop.f32.mrb[0].mxu0
        %v1082 = vadd.f32 %v921, %v1081
        %v1083 = vpop.f32.mrb[0].mxu0
        %1084 = vmatprep.mubr.bf16.mxu0 0
        %1085 = vmatmul.mubr.bf16.gmra.mrb[0].mxu0 %v799
        %v1086 = vpop.f32.mrb[0].mxu0
        %v1087 = vadd.f32 %v926, %v1086
        %v1088 = vpop.f32.mrb[0].mxu0
        %v1089 = vpop.f32.mrb[0].mxu0
        %v1090 = vadd.f32 %v929, %v1089
        %v1091 = vpop.f32.mrb[0].mxu0
        %1092 = vmatprep.mubr.bf16.mxu0 0
        %1093 = vmatmul.mubr.bf16.gmra.mrb[0].mxu0 %v802
        %v1094 = vpop.f32.mrb[0].mxu0
        %v1095 = vadd.f32 %v934, %v1094
        %v1096 = vpop.f32.mrb[0].mxu0
        %v1097 = vpop.f32.mrb[0].mxu0
        %v1098 = vadd.f32 %v937, %v1097
        %v1099 = vpop.f32.mrb[0].mxu0
        %1100 = vmatprep.mubr.bf16.mxu0 0
        %1101 = vmatmul.mubr.bf16.gmra.mrb[0].mxu0 %v805
        %v1102 = vpop.f32.mrb[0].mxu0
        %v1103 = vadd.f32 %v942, %v1102
        %v1104 = vpop.f32.mrb[0].mxu0
        %v1105 = vpop.f32.mrb[0].mxu0
        %v1106 = vadd.f32 %v945, %v1105
        %v1107 = vpop.f32.mrb[0].mxu0
        %1108 = vmatprep.mubr.bf16.mxu0 0
        %1109 = vmatmul.mubr.bf16.gmra.mrb[0].mxu0 %v808
        %v1110 = vpop.f32.mrb[0].mxu0
        %v1111 = vadd.f32 %v950, %v1110
        %v1112 = vpop.f32.mrb[0].mxu0
        %v1113 = vpop.f32.mrb[0].mxu0
        %v1114 = vadd.f32 %v953, %v1113
        %v1115 = vpop.f32.mrb[0].mxu0
        %1116 = vmatprep.mubr.bf16.mxu0 0
        %1117 = vmatmul.mubr.bf16.gmra.mrb[0].mxu0 %v811
        %v1118 = vpop.f32.mrb[0].mxu0
        %v1119 = vadd.f32 %v958, %v1118
        %v1120 = vpop.f32.mrb[0].mxu0
        %v1121 = vpop.f32.mrb[0].mxu0
        %v1122 = vadd.f32 %v961, %v1121
        %v1123 = vpop.f32.mrb[0].mxu0
        %1124 = vmatprep.mubr.bf16.mxu0 0
        %1125 = vmatmul.mubr.bf16.gmra.mrb[0].mxu0 %v814
        %v1126 = vpop.f32.mrb[0].mxu0
        %v1127 = vadd.f32 %v966, %v1126
        %v1128 = vpop.f32.mrb[0].mxu0
        %v1129 = vpop.f32.mrb[0].mxu0
        %v1130 = vadd.f32 %v969, %v1129
        %v1131 = vpop.f32.mrb[0].mxu0
        %1132 = vmatprep.mubr.bf16.mxu0 0
        %1133 = vmatmul.mubr.bf16.gmra.mrb[0].mxu0 %v817
        %v1134 = vpop.f32.mrb[0].mxu0
        %v1135 = vadd.f32 %v974, %v1134
        %v1136 = vpop.f32.mrb[0].mxu0
        %v1137 = vpop.f32.mrb[0].mxu0
        %v1138 = vadd.f32 %v977, %v1137
        %v1139 = vpop.f32.mrb[0].mxu0
        %1140 = vdwg.mxu0
        %v1141 = vpack.c.bf16 %v1018, %v1015
        %v1142 = vpack.c.bf16 %v1026, %v1023
        %v1143 = vpack.c.bf16 %v1034, %v1031
        %v1144 = vpack.c.bf16 %v1042, %v1039
        %v1145 = vpack.c.bf16 %v1050, %v1047
        %v1146 = vpack.c.bf16 %v1058, %v1055
        %v1147 = vpack.c.bf16 %v1066, %v1063
        %v1148 = vpack.c.bf16 %v1074, %v1071
        %v1149 = vpack.c.bf16 %v1082, %v1079
        %v1150 = vpack.c.bf16 %v1090, %v1087
        %v1151 = vpack.c.bf16 %v1098, %v1095
        %v1152 = vpack.c.bf16 %v1106, %v1103
        %v1153 = vpack.c.bf16 %v1114, %v1111
        %v1154 = vpack.c.bf16 %v1122, %v1119
        %v1155 = vpack.c.bf16 %v1130, %v1127
        %v1156 = vpack.c.bf16 %v1138, %v1135
        %v1173 = vunpack.c.l.b16 %v1141
        %v1174 = vunpack.c.h.b16 %v1141
        %v1175 = vunpack.c.l.b16 %v1142
        %v1176 = vunpack.c.h.b16 %v1142
        %v1177 = vunpack.c.l.b16 %v1143
        %v1178 = vunpack.c.h.b16 %v1143
        %v1179 = vunpack.c.l.b16 %v1144
        %v1180 = vunpack.c.h.b16 %v1144
        %v1181 = vunpack.c.l.b16 %v1145
        %v1182 = vunpack.c.h.b16 %v1145
        %v1183 = vunpack.c.l.b16 %v1146
        %v1184 = vunpack.c.h.b16 %v1146
        %v1185 = vunpack.c.l.b16 %v1147
        %v1186 = vunpack.c.h.b16 %v1147
        %v1187 = vunpack.c.l.b16 %v1148
        %v1188 = vunpack.c.h.b16 %v1148
        %v1189 = vunpack.c.l.b16 %v1149
        %v1190 = vunpack.c.h.b16 %v1149
        %v1191 = vunpack.c.l.b16 %v1150
        %v1192 = vunpack.c.h.b16 %v1150
        %v1193 = vunpack.c.l.b16 %v1151
        %v1194 = vunpack.c.h.b16 %v1151
        %v1195 = vunpack.c.l.b16 %v1152
        %v1196 = vunpack.c.h.b16 %v1152
        %v1197 = vunpack.c.l.b16 %v1153
        %v1198 = vunpack.c.h.b16 %v1153
        %v1199 = vunpack.c.l.b16 %v1154
        %v1200 = vunpack.c.h.b16 %v1154
        %v1201 = vunpack.c.l.b16 %v1155
        %v1202 = vunpack.c.h.b16 %v1155
        %v1203 = vunpack.c.l.b16 %v1156
        %v1204 = vunpack.c.h.b16 %v1156
        %v1205 = vpack.c.b16 %v1173, %v1173
        %v1206 = vpack.c.b16 %v1174, %v1174
        %v1207 = vpack.c.b16 %v1175, %v1175
        %v1208 = vpack.c.b16 %v1176, %v1176
        %v1209 = vpack.c.b16 %v1177, %v1177
        %v1210 = vpack.c.b16 %v1178, %v1178
        %v1211 = vpack.c.b16 %v1179, %v1179
        %v1212 = vpack.c.b16 %v1180, %v1180
        %v1213 = vpack.c.b16 %v1181, %v1181
        %v1214 = vpack.c.b16 %v1182, %v1182
        %v1215 = vpack.c.b16 %v1183, %v1183
        %v1216 = vpack.c.b16 %v1184, %v1184
        %v1217 = vpack.c.b16 %v1185, %v1185
        %v1218 = vpack.c.b16 %v1186, %v1186
        %v1219 = vpack.c.b16 %v1187, %v1187
        %v1220 = vpack.c.b16 %v1188, %v1188
        %v1221 = vpack.c.b16 %v1189, %v1189
        %v1222 = vpack.c.b16 %v1190, %v1190
        %v1223 = vpack.c.b16 %v1191, %v1191
        %v1224 = vpack.c.b16 %v1192, %v1192
        %v1225 = vpack.c.b16 %v1193, %v1193
        %v1226 = vpack.c.b16 %v1194, %v1194
        %v1227 = vpack.c.b16 %v1195, %v1195
        %v1228 = vpack.c.b16 %v1196, %v1196
        %v1229 = vpack.c.b16 %v1197, %v1197
        %v1230 = vpack.c.b16 %v1198, %v1198
        %v1231 = vpack.c.b16 %v1199, %v1199
        %v1232 = vpack.c.b16 %v1200, %v1200
        %v1233 = vpack.c.b16 %v1201, %v1201
        %v1234 = vpack.c.b16 %v1202, %v1202
        %v1235 = vpack.c.b16 %v1203, %v1203
        %v1236 = vpack.c.b16 %v1204, %v1204
        %vm1269 = vcmask 257024
        %1270 = vst.msk [vmem:[%s312] sm:$0xf] %vm1269, %v1205
        %1271 = vst.msk [vmem:[%s312 + $0x4] sm:$0xf] %vm1269, %v1206
        %1272 = vst.msk [vmem:[%s312 + $0x8] sm:$0xf] %vm1269, %v1207
        %1273 = vst.msk [vmem:[%s312 + $0xc] sm:$0xf] %vm1269, %v1208
        %1274 = vst.msk [vmem:[%s312 + $0x10] sm:$0xf] %vm1269, %v1209
        %1275 = vst.msk [vmem:[%s312 + $0x14] sm:$0xf] %vm1269, %v1210
        %1276 = vst.msk [vmem:[%s312 + $0x18] sm:$0xf] %vm1269, %v1211
        %1277 = vst.msk [vmem:[%s312 + $0x1c] sm:$0xf] %vm1269, %v1212
        %1278 = vst.msk [vmem:[%s312 + $0x20] sm:$0xf] %vm1269, %v1213
        %1279 = vst.msk [vmem:[%s312 + $0x24] sm:$0xf] %vm1269, %v1214
        %1280 = vst.msk [vmem:[%s312 + $0x28] sm:$0xf] %vm1269, %v1215
        %1281 = vst.msk [vmem:[%s312 + $0x2c] sm:$0xf] %vm1269, %v1216
        %1282 = vst.msk [vmem:[%s312 + $0x30] sm:$0xf] %vm1269, %v1217
        %1283 = vst.msk [vmem:[%s312 + $0x34] sm:$0xf] %vm1269, %v1218
        %1284 = vst.msk [vmem:[%s312 + $0x38] sm:$0xf] %vm1269, %v1219
        %1285 = vst.msk [vmem:[%s312 + $0x3c] sm:$0xf] %vm1269, %v1220
        %1286 = vst.msk [vmem:[%s312 + $0x40] sm:$0xf] %vm1269, %v1221
        %1287 = vst.msk [vmem:[%s312 + $0x44] sm:$0xf] %vm1269, %v1222
        %1288 = vst.msk [vmem:[%s312 + $0x48] sm:$0xf] %vm1269, %v1223
        %1289 = vst.msk [vmem:[%s312 + $0x4c] sm:$0xf] %vm1269, %v1224
        %1290 = vst.msk [vmem:[%s312 + $0x50] sm:$0xf] %vm1269, %v1225
        %1291 = vst.msk [vmem:[%s312 + $0x54] sm:$0xf] %vm1269, %v1226
        %1292 = vst.msk [vmem:[%s312 + $0x58] sm:$0xf] %vm1269, %v1227
        %1293 = vst.msk [vmem:[%s312 + $0x5c] sm:$0xf] %vm1269, %v1228
        %1294 = vst.msk [vmem:[%s312 + $0x60] sm:$0xf] %vm1269, %v1229
        %1295 = vst.msk [vmem:[%s312 + $0x64] sm:$0xf] %vm1269, %v1230
        %1296 = vst.msk [vmem:[%s312 + $0x68] sm:$0xf] %vm1269, %v1231
        %1297 = vst.msk [vmem:[%s312 + $0x6c] sm:$0xf] %vm1269, %v1232
        %1298 = vst.msk [vmem:[%s312 + $0x70] sm:$0xf] %vm1269, %v1233
        %1299 = vst.msk [vmem:[%s312 + $0x74] sm:$0xf] %vm1269, %v1234
        %1300 = vst.msk [vmem:[%s312 + $0x78] sm:$0xf] %vm1269, %v1235
        %1301 = vst.msk [vmem:[%s312 + $0x7c] sm:$0xf] %vm1269, %v1236
        %v1302 = vsel %vm770, %v1015, 0.0
        %v1303 = vsel %vm770, %v1018, 0.0
        %v1304 = vadd.f32 %v1302, %v1303
        %v1305 = vsel %vm770, %v1023, 0.0
        %v1306 = vadd.f32 %v1304, %v1305
        %v1307 = vsel %vm770, %v1026, 0.0
        %v1308 = vadd.f32 %v1306, %v1307
        %v1309 = vsel %vm770, %v1031, 0.0
        %v1310 = vadd.f32 %v1308, %v1309
        %v1311 = vsel %vm770, %v1034, 0.0
        %v1312 = vadd.f32 %v1310, %v1311
        %v1313 = vsel %vm770, %v1039, 0.0
        %v1314 = vadd.f32 %v1312, %v1313
        %v1315 = vsel %vm770, %v1042, 0.0
        %v1316 = vadd.f32 %v1314, %v1315
        %v1317 = vsel %vm770, %v1047, 0.0
        %v1318 = vadd.f32 %v1316, %v1317
        %v1319 = vsel %vm770, %v1050, 0.0
        %v1320 = vadd.f32 %v1318, %v1319
        %v1321 = vsel %vm770, %v1055, 0.0
        %v1322 = vadd.f32 %v1320, %v1321
        %v1323 = vsel %vm770, %v1058, 0.0
        %v1324 = vadd.f32 %v1322, %v1323
        %v1325 = vsel %vm770, %v1063, 0.0
        %v1326 = vadd.f32 %v1324, %v1325
        %v1327 = vsel %vm770, %v1066, 0.0
        %v1328 = vadd.f32 %v1326, %v1327
        %v1329 = vsel %vm770, %v1071, 0.0
        %v1330 = vadd.f32 %v1328, %v1329
        %v1331 = vsel %vm770, %v1074, 0.0
        %v1332 = vadd.f32 %v1330, %v1331
        %v1333 = vsel %vm770, %v1079, 0.0
        %v1334 = vadd.f32 %v1332, %v1333
        %v1335 = vsel %vm770, %v1082, 0.0
        %v1336 = vadd.f32 %v1334, %v1335
        %v1337 = vsel %vm770, %v1087, 0.0
        %v1338 = vadd.f32 %v1336, %v1337
        %v1339 = vsel %vm770, %v1090, 0.0
        %v1340 = vadd.f32 %v1338, %v1339
        %v1341 = vsel %vm770, %v1095, 0.0
        %v1342 = vadd.f32 %v1340, %v1341
        %v1343 = vsel %vm770, %v1098, 0.0
        %v1344 = vadd.f32 %v1342, %v1343
        %v1345 = vsel %vm770, %v1103, 0.0
        %v1346 = vadd.f32 %v1344, %v1345
        %v1347 = vsel %vm770, %v1106, 0.0
        %v1348 = vadd.f32 %v1346, %v1347
        %v1349 = vsel %vm770, %v1111, 0.0
        %v1350 = vadd.f32 %v1348, %v1349
        %v1351 = vsel %vm770, %v1114, 0.0
        %v1352 = vadd.f32 %v1350, %v1351
        %v1353 = vsel %vm770, %v1119, 0.0
        %v1354 = vadd.f32 %v1352, %v1353
        %v1355 = vsel %vm770, %v1122, 0.0
        %v1356 = vadd.f32 %v1354, %v1355
        %v1357 = vsel %vm770, %v1127, 0.0
        %v1358 = vadd.f32 %v1356, %v1357
        %v1359 = vsel %vm770, %v1130, 0.0
        %v1360 = vadd.f32 %v1358, %v1359
        %v1361 = vsel %vm770, %v1135, 0.0
        %v1362 = vadd.f32 %v1360, %v1361
        %v1363 = vsel %vm770, %v1138, 0.0
        %v1364 = vadd.f32 %v1362, %v1363
        %v1365 = vrot.slane %v1364, 4
        %v1366 = vadd.f32 %v1364, %v1365
        %v1367 = vrot.slane %v1366, 2
        %v1368 = vadd.f32 %v1366, %v1367
        %v1369 = vrot.slane %v1368, 1
        %v1370 = vadd.f32 %v1368, %v1369
        %v1371 = vmul.f32 %v1015, %v1015
        %v1372 = vmul.f32 %v1018, %v1018
        %v1373 = vmul.f32 %v1023, %v1023
        %v1374 = vmul.f32 %v1026, %v1026
        %v1375 = vmul.f32 %v1031, %v1031
        %v1376 = vmul.f32 %v1034, %v1034
        %v1377 = vmul.f32 %v1039, %v1039
        %v1378 = vmul.f32 %v1042, %v1042
        %v1379 = vmul.f32 %v1047, %v1047
        %v1380 = vmul.f32 %v1050, %v1050
        %v1381 = vmul.f32 %v1055, %v1055
        %v1382 = vmul.f32 %v1058, %v1058
        %v1383 = vmul.f32 %v1063, %v1063
        %v1384 = vmul.f32 %v1066, %v1066
        %v1385 = vmul.f32 %v1071, %v1071
        %v1386 = vmul.f32 %v1074, %v1074
        %v1387 = vmul.f32 %v1079, %v1079
        %v1388 = vmul.f32 %v1082, %v1082
        %v1389 = vmul.f32 %v1087, %v1087
        %v1390 = vmul.f32 %v1090, %v1090
        %v1391 = vmul.f32 %v1095, %v1095
        %v1392 = vmul.f32 %v1098, %v1098
        %v1393 = vmul.f32 %v1103, %v1103
        %v1394 = vmul.f32 %v1106, %v1106
        %v1395 = vmul.f32 %v1111, %v1111
        %v1396 = vmul.f32 %v1114, %v1114
        %v1397 = vmul.f32 %v1119, %v1119
        %v1398 = vmul.f32 %v1122, %v1122
        %v1399 = vmul.f32 %v1127, %v1127
        %v1400 = vmul.f32 %v1130, %v1130
        %v1401 = vmul.f32 %v1135, %v1135
        %v1402 = vmul.f32 %v1138, %v1138
        %v1403 = vsel %vm770, %v1371, 0.0
        %v1404 = vsel %vm770, %v1372, 0.0
        %v1405 = vadd.f32 %v1403, %v1404
        %v1406 = vsel %vm770, %v1373, 0.0
        %v1407 = vadd.f32 %v1405, %v1406
        %v1408 = vsel %vm770, %v1374, 0.0
        %v1409 = vadd.f32 %v1407, %v1408
        %v1410 = vsel %vm770, %v1375, 0.0
        %v1411 = vadd.f32 %v1409, %v1410
        %v1412 = vsel %vm770, %v1376, 0.0
        %v1413 = vadd.f32 %v1411, %v1412
        %v1414 = vsel %vm770, %v1377, 0.0
        %v1415 = vadd.f32 %v1413, %v1414
        %v1416 = vsel %vm770, %v1378, 0.0
        %v1417 = vadd.f32 %v1415, %v1416
        %v1418 = vsel %vm770, %v1379, 0.0
        %v1419 = vadd.f32 %v1417, %v1418
        %v1420 = vsel %vm770, %v1380, 0.0
        %v1421 = vadd.f32 %v1419, %v1420
        %v1422 = vsel %vm770, %v1381, 0.0
        %v1423 = vadd.f32 %v1421, %v1422
        %v1424 = vsel %vm770, %v1382, 0.0
        %v1425 = vadd.f32 %v1423, %v1424
        %v1426 = vsel %vm770, %v1383, 0.0
        %v1427 = vadd.f32 %v1425, %v1426
        %v1428 = vsel %vm770, %v1384, 0.0
        %v1429 = vadd.f32 %v1427, %v1428
        %v1430 = vsel %vm770, %v1385, 0.0
        %v1431 = vadd.f32 %v1429, %v1430
        %v1432 = vsel %vm770, %v1386, 0.0
        %v1433 = vadd.f32 %v1431, %v1432
        %v1434 = vsel %vm770, %v1387, 0.0
        %v1435 = vadd.f32 %v1433, %v1434
        %v1436 = vsel %vm770, %v1388, 0.0
        %v1437 = vadd.f32 %v1435, %v1436
        %v1438 = vsel %vm770, %v1389, 0.0
        %v1439 = vadd.f32 %v1437, %v1438
        %v1440 = vsel %vm770, %v1390, 0.0
        %v1441 = vadd.f32 %v1439, %v1440
        %v1442 = vsel %vm770, %v1391, 0.0
        %v1443 = vadd.f32 %v1441, %v1442
        %v1444 = vsel %vm770, %v1392, 0.0
        %v1445 = vadd.f32 %v1443, %v1444
        %v1446 = vsel %vm770, %v1393, 0.0
        %v1447 = vadd.f32 %v1445, %v1446
        %v1448 = vsel %vm770, %v1394, 0.0
        %v1449 = vadd.f32 %v1447, %v1448
        %v1450 = vsel %vm770, %v1395, 0.0
        %v1451 = vadd.f32 %v1449, %v1450
        %v1452 = vsel %vm770, %v1396, 0.0
        %v1453 = vadd.f32 %v1451, %v1452
        %v1454 = vsel %vm770, %v1397, 0.0
        %v1455 = vadd.f32 %v1453, %v1454
        %v1456 = vsel %vm770, %v1398, 0.0
        %v1457 = vadd.f32 %v1455, %v1456
        %v1458 = vsel %vm770, %v1399, 0.0
        %v1459 = vadd.f32 %v1457, %v1458
        %v1460 = vsel %vm770, %v1400, 0.0
        %v1461 = vadd.f32 %v1459, %v1460
        %v1462 = vsel %vm770, %v1401, 0.0
        %v1463 = vadd.f32 %v1461, %v1462
        %v1464 = vsel %vm770, %v1402, 0.0
        %v1465 = vadd.f32 %v1463, %v1464
        %v1466 = vrot.slane %v1465, 4
        %v1467 = vadd.f32 %v1465, %v1466
        %v1468 = vrot.slane %v1467, 2
        %v1469 = vadd.f32 %v1467, %v1468
        %v1470 = vrot.slane %v1469, 1
        %v1471 = vadd.f32 %v1469, %v1470
        %p1472 = scmp.eq.s32.totalorder %s26, 0
        // Predicated region
        $region29: #{_lambda_.7} parent=27 // pred_check
          %p1473 = pneg %p1472
        $region30: #{_lambda_.7} parent=27 // pred_check_branch
          %1475 = sbr.rel (%p1473) target = $region32
        $region31: #{_lambda_.7} parent=27 // pred_region
          %vm1476 = vcmask 253952
          %1477 = vst.msk [vmem:[%s320] sm:$0x1] %vm1476, %v1370
          %1478 = vst.msk [vmem:[%s279] sm:$0x1] %vm1476, %v1471
        $region32: #{_lambda_.7} parent=27 // pred_fallthru
          _
        %p1479 = scmp.ne.s32.totalorder %s26, 0
        // Predicated region
        $region33: #{_lambda_.7} parent=27 // pred_check
          %p1480 = pneg %p1479
        $region34: #{_lambda_.7} parent=27 // pred_check_branch
          %1482 = sbr.rel (%p1480) target = $region36
        $region35: #{_lambda_.7} parent=27 // pred_region
          %v1483 = vld [vmem:[%s320] sm:$0x1]
          %v1484 = vadd.f32 %v1483, %v1370
          %vm1485 = vcmask 253952
          %1486 = vst.msk [vmem:[%s320] sm:$0x1] %vm1485, %v1484
          %v1487 = vld [vmem:[%s279] sm:$0x1]
          %v1488 = vadd.f32 %v1487, %v1471
          %1489 = vst.msk [vmem:[%s279] sm:$0x1] %vm1485, %v1488
        $region36: #{_lambda_.7} parent=27 // pred_fallthru
          _
        %s1490 = smul.u32 32, %s26
        %p1491 = scmp.lt.s32.totalorder %s24, 2
        %s1492 = scalar_select %p1491, %s24, 2
        %p1493 = scmp.lt.s32.totalorder %s25, 1
        %s1494 = scalar_select %p1493, %s25, 1
        %p1495 = scmp.lt.s32.totalorder %s1490, 31
        %s1496 = scalar_select %p1495, %s1490, 31
        %s1497 = smul.addr %s1494, 32
        %s1498 = sadd.s32 %s1496, %s1497
        %s1499 = smul.addr %s1492, 64
        %s1500 = sadd.s32 %s1498, %s1499
        %s1501 = smul.addr %s1500, 4
        %s1502 = scalar_lea.vmem %s2, %s1501
        %p1503 = scmp.lt.s32.totalorder %s24, 2
        %s1504 = scalar_select %p1503, %s24, 2
        %p1505 = scmp.lt.s32.totalorder %s25, 1
        %s1506 = scalar_select %p1505, %s25, 1
        %s1507 = smul.addr %s1504, 2
        %s1508 = sadd.s32 %s1506, %s1507
        %s1509 = scalar_lea.vmem %s3, %s1508
        %s1510 = sand.u32 %s162, 1
        %s1511 = scalar_lea.sflag [#allocation3], %s1510
        %s1512 = sand.u32 %s162, 1
        %s1513 = scalar_lea.vmem [#allocation2], %s1512
        // Predicated region
        $region37: #{_lambda_.7} parent=27 // pred_check
          %p1514 = pneg %p116
        $region38: #{_lambda_.7} parent=27 // pred_check_branch
          %1516 = sbr.rel (%p1514) target = $region40
        $region39: #{_lambda_.7} parent=27 // pred_region
          %s1517 = smul.u32 32, %s26
        $region40: #{_lambda_.7} parent=27 // pred_fallthru
          _
        // Predicated region
        $region41: #{_lambda_.7} parent=27 // pred_check
          %p1518 = pneg %p144
        $region42: #{_lambda_.7} parent=27 // pred_check_branch
          %1520 = sbr.rel (%p1518) target = $region44
        $region43: #{_lambda_.7} parent=27 // pred_region
          _
        $region44: #{_lambda_.7} parent=27 // pred_fallthru
          _
        // Predicated region
        $region45: #{_lambda_.7} parent=27 // pred_check
          %p1521 = pneg %p172
        $region46: #{_lambda_.7} parent=27 // pred_check_branch
          %1523 = sbr.rel (%p1521) target = $region48
        $region47: #{_lambda_.7} parent=27 // pred_region
          %s1525 = ssub.s32 16, 16
          %1526 = vsyncadd %s1511, %s1525
          %s1527 = smul.addr %s24, 2
          %s1528 = sadd.s32 %s25, %s1527
          %s1529 = smul.addr %s1528, 16
          %s1530 = scalar_lea.hbm %s4, %s1529
          %s1532 = sshll.u32 %s1513, 4
          %s1533 = int_to_ptr.vmem [resolvable:$true] %s1532
          %1535 = dma.vmem_to_hbm [thread:$0]  %s1533, 16, %s1530, %s1511
        $region48: #{_lambda_.7} parent=27 // pred_fallthru
          _
      $region28: #{_lambda_.7} parent=5 // pred_fallthru
        _
      %p1536 = scmp.le.s32.totalorder 2, %s14
      // Predicated region
      $region49: #{_lambda_.7} parent=5 // pred_check
        %p1537 = pneg %p1536
      $region50: #{_lambda_.7} parent=5 // pred_check_branch
        %1539 = sbr.rel (%p1537) target = $region52
      $region51: #{_lambda_.7} parent=5 // pred_region
        %s1540 = ssub.s32 %s14, 2
        // Predicated region
        $region53: #{_lambda_.7} parent=51 // pred_check
          %p1541 = pneg %p122
        $region54: #{_lambda_.7} parent=51 // pred_check_branch
          %1543 = sbr.rel (%p1541) target = $region56
        $region55: #{_lambda_.7} parent=51 // pred_region
          %s1544 = smul.u32 32, %s29
          %p1545 = scmp.lt.s32.totalorder %s27, 2
          %s1546 = scalar_select %p1545, %s27, 2
          %p1547 = scmp.lt.s32.totalorder %s28, 1
          %s1548 = scalar_select %p1547, %s28, 1
          %p1549 = scmp.lt.s32.totalorder %s1544, 31
          %s1550 = scalar_select %p1549, %s1544, 31
          %s1551 = smul.addr %s1548, 32
          %s1552 = sadd.s32 %s1550, %s1551
          %s1553 = smul.addr %s1546, 64
          %s1554 = sadd.s32 %s1552, %s1553
          %s1555 = smul.addr %s1554, 4
          %s1556 = scalar_lea.vmem %s2, %s1555
        $region56: #{_lambda_.7} parent=51 // pred_fallthru
          _
        // Predicated region
        $region57: #{_lambda_.7} parent=51 // pred_check
          %p1557 = pneg %p150
        $region58: #{_lambda_.7} parent=51 // pred_check_branch
          %1559 = sbr.rel (%p1557) target = $region60
        $region59: #{_lambda_.7} parent=51 // pred_region
          %p1560 = scmp.lt.s32.totalorder %s27, 2
          %s1561 = scalar_select %p1560, %s27, 2
          %p1562 = scmp.lt.s32.totalorder %s28, 1
          %s1563 = scalar_select %p1562, %s28, 1
          %s1564 = smul.addr %s1561, 2
          %s1565 = sadd.s32 %s1563, %s1564
          %s1566 = scalar_lea.vmem %s3, %s1565
        $region60: #{_lambda_.7} parent=51 // pred_fallthru
          _
        // Predicated region
        $region61: #{_lambda_.7} parent=51 // pred_check
          %p1567 = pneg %p178
        $region62: #{_lambda_.7} parent=51 // pred_check_branch
          %1569 = sbr.rel (%p1567) target = $region64
        $region63: #{_lambda_.7} parent=51 // pred_region
          %s1570 = sand.u32 %s163, 1
          %s1571 = scalar_lea.sflag [#allocation3], %s1570
          %s1572 = sand.u32 %s163, 1
          %s1573 = scalar_lea.vmem [#allocation2], %s1572
          %1574 = dma.done %s1571, 16
        $region64: #{_lambda_.7} parent=51 // pred_fallthru
          _
      $region52: #{_lambda_.7} parent=5 // pred_fallthru
        _
    $region6: #{_lambda_.7} parent=1 // loop_footer
      %s18 = sadd.s32 1, %s14
    $region7: #{_lambda_.7} parent=1 // loop_footer_branch
      %13 = sbr.rel target = $region3
    $region8: #{_lambda_.7} parent=1 // loop_exit
      _
    %1575 = vsyncpa [#allocation3], 1
    %s1576 = scalar_lea.sflag [#allocation3], 1
    %1577 = vsyncpa %s1576, 1

// kernel: tile.18
$region0: #{tile.18}
  #allocation0 [shape = 's32[1]{0}', space=sflag, size = 0x4, scoped, tag = 'scoped memory for tile.18']
  %s0 = inlined_call_operand.vmem [shape: f32[32], index: 0, kind: input, shape index: {}]
  %s1 = inlined_call_operand.vmem [shape: f32[4,32], index: 1, kind: output, shape index: {}]
  // Predicated region
  $region2: #{tile.18} parent=0 // pred_check
    _
  $region3: #{tile.18} parent=0 // pred_check_branch
    %3 = sbr.rel (0) target = $region5
  $region4: #{tile.18} parent=0 // pred_region
    _
  $region5: #{tile.18} parent=0 // pred_fallthru
    _
  %v4 = vld [vmem:[%s0] ss:$0 sm:$0xff]
  %5 = vst [vmem:[%s1] sm:$0xf] %v4

// kernel: tile.19
$region0: #{tile.19}
  %s0 = inlined_call_operand.vmem [shape: f32[4,32], index: 0, kind: input, shape index: {}]
  %s1 = inlined_call_operand.vmem [shape: f32[1,128], index: 1, kind: output, shape index: {}]
  $region1: #{tile.19} parent=0
    #allocation0 [shape = 'u8[4096]{0}', space=vmem, size = 0x1000, scoped, tag = 'scoped mem for output reshape']
    #allocation1 [shape = 'u8[4096]{0}', space=vmem, size = 0x1000, scoped, tag = 'scoped mem for input reshape']
    %s3 = sshllo.u32 0, 4
    %v4 = vld [vmem:[%s0] sm:%s3]
    %5 = vst [vmem:[#allocation1] sm:%s3] %v4
    %v6 = vld [vmem:[#allocation1] sm:$0x1]
    %vm7 = vcmask 261120
    %8 = vst.msk [vmem:[#allocation0] sm:$0x1] %vm7, %v6
    %s9 = scalar_lea.vmem [#allocation1], 3
    %v10 = vld [vmem:[%s9] sm:$0x1]
    %11 = vrot.lane.b32.xlu0 %v10, 96
    %v12 = vpop.permute.xlu0 %11
    %vm13 = vcmask 1048320
    %14 = vst.msk [vmem:[#allocation0] sm:$0x1] %vm13, %v12
    %s15 = scalar_lea.vmem [#allocation1], 2
    %v16 = vld [vmem:[%s15] sm:$0x1]
    %17 = vrot.lane.b32.xlu0 %v16, 64
    %v18 = vpop.permute.xlu0 %17
    %vm19 = vcmask 785920
    %20 = vst.msk [vmem:[#allocation0] sm:$0x1] %vm19, %v18
    %s21 = scalar_lea.vmem [#allocation1], 1
    %v22 = vld [vmem:[%s21] sm:$0x1]
    %23 = vrot.lane.b32.xlu0 %v22, 32
    %v24 = vpop.permute.xlu0 %23
    %vm25 = vcmask 523520
    %26 = vst.msk [vmem:[#allocation0] sm:$0x1] %vm25, %v24
    %s28 = sshllo.u32 0, 1
    %v30 = vld [vmem:[#allocation0] sm:%s28]
    %s31 = sshllo.u32 0, 1
    %32 = vst [vmem:[%s1] sm:%s31] %v30

// kernel: _lambda_.8
$region0: #{_lambda_.8}
  #allocation0 [shape = 'u32[]', space=smem, size = 0x4, offset = 0x4, fixed_abs, tag = 'smem constant byte address 0x4 - core index']
  #allocation1 [shape = 'u32[144,128]{1,0:T(1,128)}', space=vmem, size = 0x12000, scoped, tag = 'internal scratch']
  %s0 = inlined_call_operand.vmem [shape: bf16[1,2,256,288], index: 0, kind: input, shape index: {}]
  %s1 = inlined_call_operand.vmem [shape: bf16[1,288,32], index: 1, kind: input, shape index: {}]
  %s2 = inlined_call_operand.vmem [shape: bf16[1,2,256,32], index: 2, kind: output, shape index: {0}]
  %s3 = inlined_call_operand.vmem [shape: f32[1,2,1,32], index: 3, kind: output, shape index: {1}]
  %s4 = inlined_call_operand.vmem [shape: f32[1,2,1,32], index: 4, kind: output, shape index: {2}]
  %5 = xla_tuple %s2, %s3, %s4
  %s6 = sld [smem:[#allocation0]]
  $region65: #{_lambda_.8} parent=0
    _
  %s8 = ssub.s32 1, %s6
  %s9 = scalar_select 0, %s8, %s6
  loop: start=0, step=1, limit=6
  $region2: #{_lambda_.8} parent=0 // loop_pre_header
    _
  $region3: #{_lambda_.8} parent=0 // loop_header
    %s11 = sphi 0, %s15
    %p12 = scmp.ge.s32.totalorder %s11, 6
    %s18 = sphi 0, %s37
    %s19 = sphi 0, %s33
    %s20 = sphi 0, %s29
    %s21 = sphi 0, %s18
    %s22 = sphi 0, %s19
    %s23 = sphi 0, %s20
    %s24 = sphi 0, %s21
    %s25 = sphi 0, %s22
    %s26 = sphi 0, %s23
    %s44 = sphi 0, %s46
    %s47 = sphi 0, %s44
    %s48 = sphi 0, %s47
    %s64 = sphi 0, %s48
    %s70 = sphi 0, %s72
    %s73 = sphi 0, %s70
    %s74 = sphi 0, %s73
    %s90 = sphi 0, %s74
    %s100 = sphi 0, %s102
    %s103 = sphi 0, %s100
    %s104 = sphi 0, %s103
    %s120 = sphi 0, %s104
    %s128 = sphi 0, %s130
    %s131 = sphi 0, %s128
    %s132 = sphi 0, %s131
    %s148 = sphi 0, %s132
    %s156 = sphi 0, %s158
    %s159 = sphi 0, %s156
    %s160 = sphi 0, %s159
    %s176 = sphi 0, %s160
  $region4: #{_lambda_.8} parent=0 // loop_header_branch
    %14 = sbr.rel (%p12) target = $region8
  $region5: #{_lambda_.8} parent=0 // loop_body
    %s16 = ssub.s32 %s11, 1
    %s17 = ssub.s32 %s11, 2
    %s27 = sadd.s32 1, %s20
    %p28 = scmp.ge.s32.totalorder %s27, 2
    %s29 = scalar_select %p28, 0, %s27
    %s30 = sadd.s32 1, %s19
    %s31 = scalar_select %p28, %s30, %s19
    %p32 = scmp.ge.s32.totalorder %s31, 2
    %s33 = scalar_select %p32, 0, %s31
    %s34 = sadd.s32 1, %s18
    %s35 = scalar_select %p32, %s34, %s18
    %p36 = scmp.ge.s32.totalorder %s35, 1
    %s37 = scalar_select %p36, 0, %s35
    %s38 = ssub.s32 %s18, %s37
    %s39 = ssub.s32 %s19, %s33
    %s40 = sor.u32 %s38, %s39
    %s41 = ssub.s32 %s20, %s29
    %s42 = sor.u32 %s40, %s41
    %p43 = scmp.eq.s32.totalorder %s42, 0
    %s45 = sadd.s32 %s44, 1
    %s46 = scalar_select %p43, %s44, %s45
    %p49 = pneg %p43
    %p50 = scmp.eq.s32.totalorder %s11, 3
    %p51 = por %p49, %p50
    %p52 = scmp.ne.s32.totalorder %s44, %s47
    %p53 = scmp.eq.s32.totalorder %s11, 0
    %p54 = por %p52, %p53
    %p55 = scmp.ne.s32.totalorder %s44, %s47
    %p56 = scmp.eq.s32.totalorder %s16, 3
    %p57 = por %p55, %p56
    %p58 = scmp.ne.s32.totalorder %s47, %s48
    %p59 = scmp.eq.s32.totalorder %s16, 0
    %p60 = por %p58, %p59
    %p61 = scmp.ne.s32.totalorder %s47, %s48
    %p62 = scmp.eq.s32.totalorder %s17, 3
    %p63 = por %p61, %p62
    %p65 = scmp.ne.s32.totalorder %s48, %s64
    %p66 = scmp.eq.s32.totalorder %s17, 0
    %p67 = por %p65, %p66
    %s68 = ssub.s32 %s18, %s37
    %p69 = scmp.eq.s32.totalorder %s68, 0
    %s71 = sadd.s32 %s70, 1
    %s72 = scalar_select %p69, %s70, %s71
    %p75 = pneg %p69
    %p76 = scmp.eq.s32.totalorder %s11, 3
    %p77 = por %p75, %p76
    %p78 = scmp.ne.s32.totalorder %s70, %s73
    %p79 = scmp.eq.s32.totalorder %s11, 0
    %p80 = por %p78, %p79
    %p81 = scmp.ne.s32.totalorder %s70, %s73
    %p82 = scmp.eq.s32.totalorder %s16, 3
    %p83 = por %p81, %p82
    %p84 = scmp.ne.s32.totalorder %s73, %s74
    %p85 = scmp.eq.s32.totalorder %s16, 0
    %p86 = por %p84, %p85
    %p87 = scmp.ne.s32.totalorder %s73, %s74
    %p88 = scmp.eq.s32.totalorder %s17, 3
    %p89 = por %p87, %p88
    %p91 = scmp.ne.s32.totalorder %s74, %s90
    %p92 = scmp.eq.s32.totalorder %s17, 0
    %p93 = por %p91, %p92
    %s94 = ssub.s32 %s18, %s37
    %s95 = ssub.s32 %s19, %s33
    %s96 = sor.u32 %s94, %s95
    %s97 = ssub.s32 %s20, %s29
    %s98 = sor.u32 %s96, %s97
    %p99 = scmp.eq.s32.totalorder %s98, 0
    %s101 = sadd.s32 %s100, 1
    %s102 = scalar_select %p99, %s100, %s101
    %p105 = pneg %p99
    %p106 = scmp.eq.s32.totalorder %s11, 3
    %p107 = por %p105, %p106
    %p108 = scmp.ne.s32.totalorder %s100, %s103
    %p109 = scmp.eq.s32.totalorder %s11, 0
    %p110 = por %p108, %p109
    %p111 = scmp.ne.s32.totalorder %s100, %s103
    %p112 = scmp.eq.s32.totalorder %s16, 3
    %p113 = por %p111, %p112
    %p114 = scmp.ne.s32.totalorder %s103, %s104
    %p115 = scmp.eq.s32.totalorder %s16, 0
    %p116 = por %p114, %p115
    %p117 = scmp.ne.s32.totalorder %s103, %s104
    %p118 = scmp.eq.s32.totalorder %s17, 3
    %p119 = por %p117, %p118
    %p121 = scmp.ne.s32.totalorder %s104, %s120
    %p122 = scmp.eq.s32.totalorder %s17, 0
    %p123 = por %p121, %p122
    %s124 = ssub.s32 %s18, %s37
    %s125 = ssub.s32 %s19, %s33
    %s126 = sor.u32 %s124, %s125
    %p127 = scmp.eq.s32.totalorder %s126, 0
    %s129 = sadd.s32 %s128, 1
    %s130 = scalar_select %p127, %s128, %s129
    %p133 = pneg %p127
    %p134 = scmp.eq.s32.totalorder %s11, 3
    %p135 = por %p133, %p134
    %p136 = scmp.ne.s32.totalorder %s128, %s131
    %p137 = scmp.eq.s32.totalorder %s11, 0
    %p138 = por %p136, %p137
    %p139 = scmp.ne.s32.totalorder %s128, %s131
    %p140 = scmp.eq.s32.totalorder %s16, 3
    %p141 = por %p139, %p140
    %p142 = scmp.ne.s32.totalorder %s131, %s132
    %p143 = scmp.eq.s32.totalorder %s16, 0
    %p144 = por %p142, %p143
    %p145 = scmp.ne.s32.totalorder %s131, %s132
    %p146 = scmp.eq.s32.totalorder %s17, 3
    %p147 = por %p145, %p146
    %p149 = scmp.ne.s32.totalorder %s132, %s148
    %p150 = scmp.eq.s32.totalorder %s17, 0
    %p151 = por %p149, %p150
    %s152 = ssub.s32 %s18, %s37
    %s153 = ssub.s32 %s19, %s33
    %s154 = sor.u32 %s152, %s153
    %p155 = scmp.eq.s32.totalorder %s154, 0
    %s157 = sadd.s32 %s156, 1
    %s158 = scalar_select %p155, %s156, %s157
    %p161 = pneg %p155
    %p162 = scmp.eq.s32.totalorder %s11, 3
    %p163 = por %p161, %p162
    %p164 = scmp.ne.s32.totalorder %s156, %s159
    %p165 = scmp.eq.s32.totalorder %s11, 0
    %p166 = por %p164, %p165
    %p167 = scmp.ne.s32.totalorder %s156, %s159
    %p168 = scmp.eq.s32.totalorder %s16, 3
    %p169 = por %p167, %p168
    %p170 = scmp.ne.s32.totalorder %s159, %s160
    %p171 = scmp.eq.s32.totalorder %s16, 0
    %p172 = por %p170, %p171
    %p173 = scmp.ne.s32.totalorder %s159, %s160
    %p174 = scmp.eq.s32.totalorder %s17, 3
    %p175 = por %p173, %p174
    %p177 = scmp.ne.s32.totalorder %s160, %s176
    %p178 = scmp.eq.s32.totalorder %s17, 0
    %p179 = por %p177, %p178
    %p180 = scmp.le.s32.totalorder 1, %s11
    %p181 = scmp.lt.s32.totalorder %s11, 5
    %p182 = pnand %p180, %p181
    %p183 = pneg %p182
    // Predicated region
    $region9: #{_lambda_.8} parent=5 // pred_check
      _
    $region10: #{_lambda_.8} parent=5 // pred_check_branch
      %185 = sbr.rel (%p182) target = $region12
    $region11: #{_lambda_.8} parent=5 // pred_region
      %s186 = ssub.s32 %s11, 1
      // Predicated region
      $region13: #{_lambda_.8} parent=11 // pred_check
        %p187 = pneg %p86
      $region14: #{_lambda_.8} parent=11 // pred_check_branch
        %189 = sbr.rel (%p187) target = $region16
      $region15: #{_lambda_.8} parent=11 // pred_region
        %p190 = scmp.lt.s32.totalorder %s21, 0
        %s191 = scalar_select %p190, %s21, 0
        %s192 = smul.addr %s191, 36
        %s193 = smul.addr %s192, 4
        %s194 = scalar_lea.vmem %s1, %s193
      $region16: #{_lambda_.8} parent=11 // pred_fallthru
        _
    $region12: #{_lambda_.8} parent=5 // pred_fallthru
      _
    %p195 = scmp.lt.s32.totalorder %s11, 4
    // Predicated region
    $region17: #{_lambda_.8} parent=5 // pred_check
      %p196 = pneg %p195
    $region18: #{_lambda_.8} parent=5 // pred_check_branch
      %198 = sbr.rel (%p196) target = $region20
    $region19: #{_lambda_.8} parent=5 // pred_region
      // Predicated region
      $region21: #{_lambda_.8} parent=19 // pred_check
        %p199 = pneg %p54
      $region22: #{_lambda_.8} parent=19 // pred_check_branch
        %201 = sbr.rel (%p199) target = $region24
      $region23: #{_lambda_.8} parent=19 // pred_region
        %s202 = smul.u32 16, %s20
        %p203 = scmp.lt.s32.totalorder %s18, 0
        %s204 = scalar_select %p203, %s18, 0
        %p205 = scmp.lt.s32.totalorder %s19, 1
        %s206 = scalar_select %p205, %s19, 1
        %p207 = scmp.lt.s32.totalorder %s202, 31
        %s208 = scalar_select %p207, %s202, 31
        %s209 = smul.addr %s208, 3
        %s210 = smul.addr %s206, 96
        %s211 = sadd.s32 %s209, %s210
        %s212 = smul.addr %s204, 192
        %s213 = sadd.s32 %s211, %s212
        %s214 = smul.addr %s213, 4
        %s215 = scalar_lea.vmem %s0, %s214
        %s216 = smul.u32 16, %s20
      $region24: #{_lambda_.8} parent=19 // pred_fallthru
        _
    $region20: #{_lambda_.8} parent=5 // pred_fallthru
      _
    %p217 = scmp.le.s32.totalorder 1, %s11
    %p218 = scmp.lt.s32.totalorder %s11, 5
    %p219 = pnand %p217, %p218
    %p220 = pneg %p219
    // Predicated region
    $region25: #{_lambda_.8} parent=5 // pred_check
      _
    $region26: #{_lambda_.8} parent=5 // pred_check_branch
      %222 = sbr.rel (%p219) target = $region28
    $region27: #{_lambda_.8} parent=5 // pred_region
      %s223 = ssub.s32 %s11, 1
      %s224 = smul.u32 16, %s23
      %p225 = scmp.lt.s32.totalorder %s21, 0
      %s226 = scalar_select %p225, %s21, 0
      %p227 = scmp.lt.s32.totalorder %s22, 1
      %s228 = scalar_select %p227, %s22, 1
      %p229 = scmp.lt.s32.totalorder %s224, 31
      %s230 = scalar_select %p229, %s224, 31
      %s231 = smul.addr %s230, 3
      %s232 = smul.addr %s228, 96
      %s233 = sadd.s32 %s231, %s232
      %s234 = smul.addr %s226, 192
      %s235 = sadd.s32 %s233, %s234
      %s236 = smul.addr %s235, 4
      %s237 = scalar_lea.vmem %s0, %s236
      %p238 = pneg %p60
      %p239 = pneg %p57
      %p240 = scmp.lt.s32.totalorder %s21, 0
      %s241 = scalar_select %p240, %s21, 0
      %s242 = smul.addr %s241, 36
      %s243 = smul.addr %s242, 4
      %s244 = scalar_lea.vmem %s1, %s243
      %p245 = pneg %p86
      %p246 = pneg %p83
      %p247 = pneg %p116
      %p248 = pneg %p113
      %s249 = smul.u32 16, %s23
      %p250 = scmp.lt.s32.totalorder %s21, 0
      %s251 = scalar_select %p250, %s21, 0
      %p252 = scmp.lt.s32.totalorder %s22, 1
      %s253 = scalar_select %p252, %s22, 1
      %p254 = scmp.lt.s32.totalorder %s249, 31
      %s255 = scalar_select %p254, %s249, 31
      %s256 = smul.addr %s253, 32
      %s257 = sadd.s32 %s255, %s256
      %s258 = smul.addr %s251, 64
      %s259 = sadd.s32 %s257, %s258
      %s260 = smul.addr %s259, 4
      %s261 = scalar_lea.vmem %s2, %s260
      %p262 = pneg %p144
      %p263 = pneg %p141
      %p264 = scmp.lt.s32.totalorder %s21, 0
      %s265 = scalar_select %p264, %s21, 0
      %p266 = scmp.lt.s32.totalorder %s22, 1
      %s267 = scalar_select %p266, %s22, 1
      %s268 = smul.addr %s265, 2
      %s269 = sadd.s32 %s267, %s268
      %s270 = scalar_lea.vmem %s3, %s269
      %p271 = pneg %p172
      %p272 = pneg %p169
      %p273 = scmp.lt.s32.totalorder %s21, 0
      %s274 = scalar_select %p273, %s21, 0
      %p275 = scmp.lt.s32.totalorder %s22, 1
      %s276 = scalar_select %p275, %s22, 1
      %s277 = smul.addr %s274, 2
      %s278 = sadd.s32 %s276, %s277
      %s279 = scalar_lea.vmem %s4, %s278
      %s280 = smul.u32 16, %s23
      %p281 = scmp.lt.s32.totalorder %s21, 0
      %s282 = scalar_select %p281, %s21, 0
      %p283 = scmp.lt.s32.totalorder %s22, 1
      %s284 = scalar_select %p283, %s22, 1
      %p285 = scmp.lt.s32.totalorder %s280, 31
      %s286 = scalar_select %p285, %s280, 31
      %s287 = smul.addr %s286, 3
      %s288 = smul.addr %s284, 96
      %s289 = sadd.s32 %s287, %s288
      %s290 = smul.addr %s282, 192
      %s291 = sadd.s32 %s289, %s290
      %s292 = smul.addr %s291, 4
      %s293 = scalar_lea.vmem %s0, %s292
      %s294 = smul.u32 16, %s23
      %p295 = scmp.lt.s32.totalorder %s21, 0
      %s296 = scalar_select %p295, %s21, 0
      %s297 = smul.addr %s296, 36
      %s298 = smul.addr %s297, 4
      %s299 = scalar_lea.vmem %s1, %s298
      %s300 = smul.u32 16, %s23
      %p301 = scmp.lt.s32.totalorder %s21, 0
      %s302 = scalar_select %p301, %s21, 0
      %p303 = scmp.lt.s32.totalorder %s22, 1
      %s304 = scalar_select %p303, %s22, 1
      %p305 = scmp.lt.s32.totalorder %s300, 31
      %s306 = scalar_select %p305, %s300, 31
      %s307 = smul.addr %s304, 32
      %s308 = sadd.s32 %s306, %s307
      %s309 = smul.addr %s302, 64
      %s310 = sadd.s32 %s308, %s309
      %s311 = smul.addr %s310, 4
      %s312 = scalar_lea.vmem %s2, %s311
      %s313 = smul.u32 16, %s23
      %p314 = scmp.lt.s32.totalorder %s21, 0
      %s315 = scalar_select %p314, %s21, 0
      %p316 = scmp.lt.s32.totalorder %s22, 1
      %s317 = scalar_select %p316, %s22, 1
      %s318 = smul.addr %s315, 2
      %s319 = sadd.s32 %s317, %s318
      %s320 = scalar_lea.vmem %s3, %s319
      %p321 = scmp.lt.s32.totalorder %s21, 0
      %s322 = scalar_select %p321, %s21, 0
      %p323 = scmp.lt.s32.totalorder %s22, 1
      %s324 = scalar_select %p323, %s22, 1
      %s325 = smul.addr %s322, 2
      %s326 = sadd.s32 %s324, %s325
      %s327 = scalar_lea.vmem %s4, %s326
      %v329 = vld [vmem:[%s293] sm:$0xff]
      %v330 = vld [vmem:[%s293 + $0x8] sm:$0xf]
      %v331 = vld [vmem:[%s293 + $0xc] sm:$0xff]
      %v332 = vld [vmem:[%s293 + $0x14] sm:$0xf]
      %v333 = vld [vmem:[%s293 + $0x18] sm:$0xff]
      %v334 = vld [vmem:[%s293 + $0x20] sm:$0xf]
      %v335 = vld [vmem:[%s293 + $0x24] sm:$0xff]
      %v336 = vld [vmem:[%s293 + $0x2c] sm:$0xf]
      %v337 = vld [vmem:[%s293 + $0x30] sm:$0xff]
      %v338 = vld [vmem:[%s293 + $0x38] sm:$0xf]
      %v339 = vld [vmem:[%s293 + $0x3c] sm:$0xff]
      %v340 = vld [vmem:[%s293 + $0x44] sm:$0xf]
      %v341 = vld [vmem:[%s293 + $0x48] sm:$0xff]
      %v342 = vld [vmem:[%s293 + $0x50] sm:$0xf]
      %v343 = vld [vmem:[%s293 + $0x54] sm:$0xff]
      %v344 = vld [vmem:[%s293 + $0x5c] sm:$0xf]
      %v345 = vld [vmem:[%s293 + $0x60] sm:$0xff]
      %v346 = vld [vmem:[%s293 + $0x68] sm:$0xf]
      %v347 = vld [vmem:[%s293 + $0x6c] sm:$0xff]
      %v348 = vld [vmem:[%s293 + $0x74] sm:$0xf]
      %v349 = vld [vmem:[%s293 + $0x78] sm:$0xff]
      %v350 = vld [vmem:[%s293 + $0x80] sm:$0xf]
      %v351 = vld [vmem:[%s293 + $0x84] sm:$0xff]
      %v352 = vld [vmem:[%s293 + $0x8c] sm:$0xf]
      %v353 = vld [vmem:[%s293 + $0x90] sm:$0xff]
      %v354 = vld [vmem:[%s293 + $0x98] sm:$0xf]
      %v355 = vld [vmem:[%s293 + $0x9c] sm:$0xff]
      %v356 = vld [vmem:[%s293 + $0xa4] sm:$0xf]
      %v357 = vld [vmem:[%s293 + $0xa8] sm:$0xff]
      %v358 = vld [vmem:[%s293 + $0xb0] sm:$0xf]
      %v359 = vld [vmem:[%s293 + $0xb4] sm:$0xff]
      %v360 = vld [vmem:[%s293 + $0xbc] sm:$0xf]
      %v361 = vld [vmem:[%s299] sm:$0xf]
      %v362 = vld [vmem:[%s299 + $0x4] sm:$0xf]
      %v363 = vld [vmem:[%s299 + $0x8] sm:$0xf]
      %v364 = vld [vmem:[%s299 + $0xc] sm:$0xf]
      %v365 = vld [vmem:[%s299 + $0x10] sm:$0xf]
      %v366 = vld [vmem:[%s299 + $0x14] sm:$0xf]
      %v367 = vld [vmem:[%s299 + $0x18] sm:$0xf]
      %v368 = vld [vmem:[%s299 + $0x1c] sm:$0xf]
      %v369 = vld [vmem:[%s299 + $0x20] sm:$0xf]
      %v370 = vld [vmem:[%s299 + $0x24] sm:$0xf]
      %v371 = vld [vmem:[%s299 + $0x28] sm:$0xf]
      %v372 = vld [vmem:[%s299 + $0x2c] sm:$0xf]
      %v373 = vld [vmem:[%s299 + $0x30] sm:$0xf]
      %v374 = vld [vmem:[%s299 + $0x34] sm:$0xf]
      %v375 = vld [vmem:[%s299 + $0x38] sm:$0xf]
      %v376 = vld [vmem:[%s299 + $0x3c] sm:$0xf]
      %v377 = vld [vmem:[%s299 + $0x40] sm:$0xf]
      %v378 = vld [vmem:[%s299 + $0x44] sm:$0xf]
      %v379 = vld [vmem:[%s299 + $0x48] sm:$0xf]
      %v380 = vld [vmem:[%s299 + $0x4c] sm:$0xf]
      %v381 = vld [vmem:[%s299 + $0x50] sm:$0xf]
      %v382 = vld [vmem:[%s299 + $0x54] sm:$0xf]
      %v383 = vld [vmem:[%s299 + $0x58] sm:$0xf]
      %v384 = vld [vmem:[%s299 + $0x5c] sm:$0xf]
      %v385 = vld [vmem:[%s299 + $0x60] sm:$0xf]
      %v386 = vld [vmem:[%s299 + $0x64] sm:$0xf]
      %v387 = vld [vmem:[%s299 + $0x68] sm:$0xf]
      %v388 = vld [vmem:[%s299 + $0x6c] sm:$0xf]
      %v389 = vld [vmem:[%s299 + $0x70] sm:$0xf]
      %v390 = vld [vmem:[%s299 + $0x74] sm:$0xf]
      %v391 = vld [vmem:[%s299 + $0x78] sm:$0xf]
      %v392 = vld [vmem:[%s299 + $0x7c] sm:$0xf]
      %v393 = vld [vmem:[%s299 + $0x80] sm:$0xf]
      %v394 = vld [vmem:[%s299 + $0x84] sm:$0xf]
      %v395 = vld [vmem:[%s299 + $0x88] sm:$0xf]
      %v396 = vld [vmem:[%s299 + $0x8c] sm:$0xf]
      %v429 = vunpack.c.l.b16 %v329
      %v430 = vunpack.c.h.b16 %v329
      %v431 = vunpack.c.l.b16 %v330
      %v432 = vunpack.c.l.b16 %v331
      %v433 = vunpack.c.h.b16 %v331
      %v434 = vunpack.c.l.b16 %v332
      %v435 = vunpack.c.l.b16 %v333
      %v436 = vunpack.c.h.b16 %v333
      %v437 = vunpack.c.l.b16 %v334
      %v438 = vunpack.c.l.b16 %v335
      %v439 = vunpack.c.h.b16 %v335
      %v440 = vunpack.c.l.b16 %v336
      %v441 = vunpack.c.l.b16 %v337
      %v442 = vunpack.c.h.b16 %v337
      %v443 = vunpack.c.l.b16 %v338
      %v444 = vunpack.c.l.b16 %v339
      %v445 = vunpack.c.h.b16 %v339
      %v446 = vunpack.c.l.b16 %v340
      %v447 = vunpack.c.l.b16 %v341
      %v448 = vunpack.c.h.b16 %v341
      %v449 = vunpack.c.l.b16 %v342
      %v450 = vunpack.c.l.b16 %v343
      %v451 = vunpack.c.h.b16 %v343
      %v452 = vunpack.c.l.b16 %v344
      %v453 = vunpack.c.l.b16 %v345
      %v454 = vunpack.c.h.b16 %v345
      %v455 = vunpack.c.l.b16 %v346
      %v456 = vunpack.c.l.b16 %v347
      %v457 = vunpack.c.h.b16 %v347
      %v458 = vunpack.c.l.b16 %v348
      %v459 = vunpack.c.l.b16 %v349
      %v460 = vunpack.c.h.b16 %v349
      %v461 = vunpack.c.l.b16 %v350
      %v462 = vunpack.c.l.b16 %v351
      %v463 = vunpack.c.h.b16 %v351
      %v464 = vunpack.c.l.b16 %v352
      %v465 = vunpack.c.l.b16 %v353
      %v466 = vunpack.c.h.b16 %v353
      %v467 = vunpack.c.l.b16 %v354
      %v468 = vunpack.c.l.b16 %v355
      %v469 = vunpack.c.h.b16 %v355
      %v470 = vunpack.c.l.b16 %v356
      %v471 = vunpack.c.l.b16 %v357
      %v472 = vunpack.c.h.b16 %v357
      %v473 = vunpack.c.l.b16 %v358
      %v474 = vunpack.c.l.b16 %v359
      %v475 = vunpack.c.h.b16 %v359
      %v476 = vunpack.c.l.b16 %v360
      %v477 = vpack.c.b16 %v432, %v429
      %v478 = vpack.c.b16 %v433, %v430
      %v479 = vpack.c.b16 %v434, %v431
      %v480 = vpack.c.b16 %v438, %v435
      %v481 = vpack.c.b16 %v439, %v436
      %v482 = vpack.c.b16 %v440, %v437
      %v483 = vpack.c.b16 %v444, %v441
      %v484 = vpack.c.b16 %v445, %v442
      %v485 = vpack.c.b16 %v446, %v443
      %v486 = vpack.c.b16 %v450, %v447
      %v487 = vpack.c.b16 %v451, %v448
      %v488 = vpack.c.b16 %v452, %v449
      %v489 = vpack.c.b16 %v456, %v453
      %v490 = vpack.c.b16 %v457, %v454
      %v491 = vpack.c.b16 %v458, %v455
      %v492 = vpack.c.b16 %v462, %v459
      %v493 = vpack.c.b16 %v463, %v460
      %v494 = vpack.c.b16 %v464, %v461
      %v495 = vpack.c.b16 %v468, %v465
      %v496 = vpack.c.b16 %v469, %v466
      %v497 = vpack.c.b16 %v470, %v467
      %v498 = vpack.c.b16 %v474, %v471
      %v499 = vpack.c.b16 %v475, %v472
      %v500 = vpack.c.b16 %v476, %v473
      %v553 = vunpack.c.l.b16 %v361
      %v554 = vunpack.c.l.b16 %v362
      %v555 = vunpack.c.l.b16 %v363
      %v556 = vunpack.c.l.b16 %v364
      %v557 = vunpack.c.l.b16 %v365
      %v558 = vunpack.c.l.b16 %v366
      %v559 = vunpack.c.l.b16 %v367
      %v560 = vunpack.c.l.b16 %v368
      %v561 = vunpack.c.l.b16 %v369
      %v562 = vunpack.c.l.b16 %v370
      %v563 = vunpack.c.l.b16 %v371
      %v564 = vunpack.c.l.b16 %v372
      %v565 = vunpack.c.l.b16 %v373
      %v566 = vunpack.c.l.b16 %v374
      %v567 = vunpack.c.l.b16 %v375
      %v568 = vunpack.c.l.b16 %v376
      %v569 = vunpack.c.l.b16 %v377
      %v570 = vunpack.c.l.b16 %v378
      %v571 = vunpack.c.l.b16 %v379
      %v572 = vunpack.c.l.b16 %v380
      %v573 = vunpack.c.l.b16 %v381
      %v574 = vunpack.c.l.b16 %v382
      %v575 = vunpack.c.l.b16 %v383
      %v576 = vunpack.c.l.b16 %v384
      %v577 = vunpack.c.l.b16 %v385
      %v578 = vunpack.c.l.b16 %v386
      %v579 = vunpack.c.l.b16 %v387
      %v580 = vunpack.c.l.b16 %v388
      %v581 = vunpack.c.l.b16 %v389
      %v582 = vunpack.c.l.b16 %v390
      %v583 = vunpack.c.l.b16 %v391
      %v584 = vunpack.c.l.b16 %v392
      %v585 = vunpack.c.l.b16 %v393
      %v586 = vunpack.c.l.b16 %v394
      %v587 = vunpack.c.l.b16 %v395
      %v588 = vunpack.c.l.b16 %v396
      %v589 = vpack.c.b16 %v554, %v553
      %v590 = vpack.c.b16 %v556, %v555
      %v591 = vpack.c.b16 %v558, %v557
      %v592 = vpack.c.b16 %v560, %v559
      %v593 = vpack.c.b16 %v562, %v561
      %v594 = vpack.c.b16 %v564, %v563
      %v595 = vpack.c.b16 %v566, %v565
      %v596 = vpack.c.b16 %v568, %v567
      %v597 = vpack.c.b16 %v570, %v569
      %v598 = vpack.c.b16 %v572, %v571
      %v599 = vpack.c.b16 %v574, %v573
      %v600 = vpack.c.b16 %v576, %v575
      %v601 = vpack.c.b16 %v578, %v577
      %v602 = vpack.c.b16 %v580, %v579
      %v603 = vpack.c.b16 %v582, %v581
      %v604 = vpack.c.b16 %v584, %v583
      %v605 = vpack.c.b16 %v586, %v585
      %v606 = vpack.c.b16 %v588, %v587
      %vm625 = vcmask 261120
      %v627 = vsel %vm625, %v479, 0
      %v630 = vsel %vm625, %v482, 0
      %v633 = vsel %vm625, %v485, 0
      %v636 = vsel %vm625, %v488, 0
      %v639 = vsel %vm625, %v491, 0
      %v642 = vsel %vm625, %v494, 0
      %v645 = vsel %vm625, %v497, 0
      %v648 = vsel %vm625, %v500, 0
      %650 = vmatprep.subr.bf16.mxu0 0
      %651 = vmatpush1.bf16.msra.mxu0 %v589
      %652 = vmatprep.subr.bf16.mxu0 0
      %653 = vmatpush1.bf16.msra.mxu0 %v590
      %654 = vmatprep.subr.bf16.mxu0 0
      %655 = vmatpush1.bf16.msra.mxu0 %v591
      %656 = vmatprep.subr.bf16.mxu0 0
      %657 = vmatpush1.bf16.msra.mxu0 %v592
      %658 = vmatprep.subr.bf16.mxu0 0
      %659 = vmatpush1.bf16.msra.mxu0 %v593
      %660 = vmatprep.subr.bf16.mxu0 0
      %661 = vmatpush1.bf16.msra.mxu0 %v594
      %662 = vmatprep.subr.bf16.mxu0 0
      %663 = vmatpush1.bf16.msra.mxu0 %v595
      %664 = vmatprep.subr.bf16.mxu0 0
      %665 = vmatpush1.bf16.msra.mxu0 %v596
      %666 = vmatprep.subr.bf16.mxu0 0
      %667 = vmatpush1.bf16.msra.mxu0 %v597
      %668 = vmatprep.subr.bf16.mxu0 0
      %669 = vmatpush1.bf16.msra.mxu0 %v598
      %670 = vmatprep.subr.bf16.mxu0 0
      %671 = vmatpush1.bf16.msra.mxu0 %v599
      %672 = vmatprep.subr.bf16.mxu0 0
      %673 = vmatpush1.bf16.msra.mxu0 %v600
      %674 = vmatprep.subr.bf16.mxu0 0
      %675 = vmatpush1.bf16.msra.mxu0 %v601
      %676 = vmatprep.subr.bf16.mxu0 0
      %677 = vmatpush1.bf16.msra.mxu0 %v602
      %678 = vmatprep.subr.bf16.mxu0 0
      %679 = vmatpush1.bf16.msra.mxu0 %v603
      %680 = vmatprep.subr.bf16.mxu0 0
      %681 = vmatpush1.bf16.msra.mxu0 %v604
      %682 = vmatprep.mubr.bf16.mxu0 %v478
      %683 = vmatmul.mubr.bf16.gmra.mrb[0].mxu0 %v477
      %v684 = vpop.f32.mrb[0].mxu0
      %v685 = vadd.f32 0.0, %v684
      %v686 = vpop.f32.mrb[0].mxu0
      %v687 = vpop.f32.mrb[0].mxu0
      %v688 = vadd.f32 0.0, %v687
      %v689 = vpop.f32.mrb[0].mxu0
      %690 = vmatprep.mubr.bf16.mxu0 %v481
      %691 = vmatmul.mubr.bf16.gmra.mrb[0].mxu0 %v480
      %v692 = vpop.f32.mrb[0].mxu0
      %v693 = vadd.f32 0.0, %v692
      %v694 = vpop.f32.mrb[0].mxu0
      %v695 = vpop.f32.mrb[0].mxu0
      %v696 = vadd.f32 0.0, %v695
      %v697 = vpop.f32.mrb[0].mxu0
      %698 = vmatprep.mubr.bf16.mxu0 %v484
      %699 = vmatmul.mubr.bf16.gmra.mrb[0].mxu0 %v483
      %v700 = vpop.f32.mrb[0].mxu0
      %v701 = vadd.f32 0.0, %v700
      %v702 = vpop.f32.mrb[0].mxu0
      %v703 = vpop.f32.mrb[0].mxu0
      %v704 = vadd.f32 0.0, %v703
      %v705 = vpop.f32.mrb[0].mxu0
      %706 = vmatprep.mubr.bf16.mxu0 %v487
      %707 = vmatmul.mubr.bf16.gmra.mrb[0].mxu0 %v486
      %v708 = vpop.f32.mrb[0].mxu0
      %v709 = vadd.f32 0.0, %v708
      %v710 = vpop.f32.mrb[0].mxu0
      %v711 = vpop.f32.mrb[0].mxu0
      %v712 = vadd.f32 0.0, %v711
      %v713 = vpop.f32.mrb[0].mxu0
      %714 = vmatprep.mubr.bf16.mxu0 %v490
      %715 = vmatmul.mubr.bf16.gmra.mrb[0].mxu0 %v489
      %v716 = vpop.f32.mrb[0].mxu0
      %v717 = vadd.f32 0.0, %v716
      %v718 = vpop.f32.mrb[0].mxu0
      %v719 = vpop.f32.mrb[0].mxu0
      %v720 = vadd.f32 0.0, %v719
      %v721 = vpop.f32.mrb[0].mxu0
      %722 = vmatprep.mubr.bf16.mxu0 %v493
      %723 = vmatmul.mubr.bf16.gmra.mrb[0].mxu0 %v492
      %v724 = vpop.f32.mrb[0].mxu0
      %v725 = vadd.f32 0.0, %v724
      %v726 = vpop.f32.mrb[0].mxu0
      %v727 = vpop.f32.mrb[0].mxu0
      %v728 = vadd.f32 0.0, %v727
      %v729 = vpop.f32.mrb[0].mxu0
      %730 = vmatprep.mubr.bf16.mxu0 %v496
      %731 = vmatmul.mubr.bf16.gmra.mrb[0].mxu0 %v495
      %v732 = vpop.f32.mrb[0].mxu0
      %v733 = vadd.f32 0.0, %v732
      %v734 = vpop.f32.mrb[0].mxu0
      %v735 = vpop.f32.mrb[0].mxu0
      %v736 = vadd.f32 0.0, %v735
      %v737 = vpop.f32.mrb[0].mxu0
      %738 = vmatprep.mubr.bf16.mxu0 %v499
      %739 = vmatmul.mubr.bf16.gmra.mrb[0].mxu0 %v498
      %v740 = vpop.f32.mrb[0].mxu0
      %v741 = vadd.f32 0.0, %v740
      %v742 = vpop.f32.mrb[0].mxu0
      %v743 = vpop.f32.mrb[0].mxu0
      %v744 = vadd.f32 0.0, %v743
      %v745 = vpop.f32.mrb[0].mxu0
      %746 = vdwg.mxu0
      %747 = vmatprep.subr.bf16.mxu0 0
      %748 = vmatpush1.bf16.msra.mxu0 %v605
      %749 = vmatprep.subr.bf16.mxu0 0
      %750 = vmatpush1.bf16.msra.mxu0 %v606
      %751 = vmatprep.subr.bf16.mxu0 0
      %752 = vmatpush1.bf16.msra.mxu0 0
      %753 = vmatprep.subr.bf16.mxu0 0
      %754 = vmatpush1.bf16.msra.mxu0 0
      %755 = vmatprep.subr.bf16.mxu0 0
      %756 = vmatpush1.bf16.msra.mxu0 0
      %757 = vmatprep.subr.bf16.mxu0 0
      %758 = vmatpush1.bf16.msra.mxu0 0
      %759 = vmatprep.subr.bf16.mxu0 0
      %760 = vmatpush1.bf16.msra.mxu0 0
      %761 = vmatprep.subr.bf16.mxu0 0
      %762 = vmatpush1.bf16.msra.mxu0 0
      %763 = vmatprep.subr.bf16.mxu0 0
      %764 = vmatpush1.bf16.msra.mxu0 0
      %765 = vmatprep.subr.bf16.mxu0 0
      %766 = vmatpush1.bf16.msra.mxu0 0
      %767 = vmatprep.subr.bf16.mxu0 0
      %768 = vmatpush1.bf16.msra.mxu0 0
      %769 = vmatprep.subr.bf16.mxu0 0
      %770 = vmatpush1.bf16.msra.mxu0 0
      %771 = vmatprep.subr.bf16.mxu0 0
      %772 = vmatpush1.bf16.msra.mxu0 0
      %773 = vmatprep.subr.bf16.mxu0 0
      %774 = vmatpush1.bf16.msra.mxu0 0
      %775 = vmatprep.subr.bf16.mxu0 0
      %776 = vmatpush1.bf16.msra.mxu0 0
      %777 = vmatprep.subr.bf16.mxu0 0
      %778 = vmatpush1.bf16.msra.mxu0 0
      %779 = vmatprep.mubr.bf16.mxu0 0
      %780 = vmatmul.mubr.bf16.gmra.mrb[0].mxu0 %v627
      %v781 = vpop.f32.mrb[0].mxu0
      %v782 = vadd.f32 %v685, %v781
      %v783 = vpop.f32.mrb[0].mxu0
      %v784 = vpop.f32.mrb[0].mxu0
      %v785 = vadd.f32 %v688, %v784
      %v786 = vpop.f32.mrb[0].mxu0
      %787 = vmatprep.mubr.bf16.mxu0 0
      %788 = vmatmul.mubr.bf16.gmra.mrb[0].mxu0 %v630
      %v789 = vpop.f32.mrb[0].mxu0
      %v790 = vadd.f32 %v693, %v789
      %v791 = vpop.f32.mrb[0].mxu0
      %v792 = vpop.f32.mrb[0].mxu0
      %v793 = vadd.f32 %v696, %v792
      %v794 = vpop.f32.mrb[0].mxu0
      %795 = vmatprep.mubr.bf16.mxu0 0
      %796 = vmatmul.mubr.bf16.gmra.mrb[0].mxu0 %v633
      %v797 = vpop.f32.mrb[0].mxu0
      %v798 = vadd.f32 %v701, %v797
      %v799 = vpop.f32.mrb[0].mxu0
      %v800 = vpop.f32.mrb[0].mxu0
      %v801 = vadd.f32 %v704, %v800
      %v802 = vpop.f32.mrb[0].mxu0
      %803 = vmatprep.mubr.bf16.mxu0 0
      %804 = vmatmul.mubr.bf16.gmra.mrb[0].mxu0 %v636
      %v805 = vpop.f32.mrb[0].mxu0
      %v806 = vadd.f32 %v709, %v805
      %v807 = vpop.f32.mrb[0].mxu0
      %v808 = vpop.f32.mrb[0].mxu0
      %v809 = vadd.f32 %v712, %v808
      %v810 = vpop.f32.mrb[0].mxu0
      %811 = vmatprep.mubr.bf16.mxu0 0
      %812 = vmatmul.mubr.bf16.gmra.mrb[0].mxu0 %v639
      %v813 = vpop.f32.mrb[0].mxu0
      %v814 = vadd.f32 %v717, %v813
      %v815 = vpop.f32.mrb[0].mxu0
      %v816 = vpop.f32.mrb[0].mxu0
      %v817 = vadd.f32 %v720, %v816
      %v818 = vpop.f32.mrb[0].mxu0
      %819 = vmatprep.mubr.bf16.mxu0 0
      %820 = vmatmul.mubr.bf16.gmra.mrb[0].mxu0 %v642
      %v821 = vpop.f32.mrb[0].mxu0
      %v822 = vadd.f32 %v725, %v821
      %v823 = vpop.f32.mrb[0].mxu0
      %v824 = vpop.f32.mrb[0].mxu0
      %v825 = vadd.f32 %v728, %v824
      %v826 = vpop.f32.mrb[0].mxu0
      %827 = vmatprep.mubr.bf16.mxu0 0
      %828 = vmatmul.mubr.bf16.gmra.mrb[0].mxu0 %v645
      %v829 = vpop.f32.mrb[0].mxu0
      %v830 = vadd.f32 %v733, %v829
      %v831 = vpop.f32.mrb[0].mxu0
      %v832 = vpop.f32.mrb[0].mxu0
      %v833 = vadd.f32 %v736, %v832
      %v834 = vpop.f32.mrb[0].mxu0
      %835 = vmatprep.mubr.bf16.mxu0 0
      %836 = vmatmul.mubr.bf16.gmra.mrb[0].mxu0 %v648
      %v837 = vpop.f32.mrb[0].mxu0
      %v838 = vadd.f32 %v741, %v837
      %v839 = vpop.f32.mrb[0].mxu0
      %v840 = vpop.f32.mrb[0].mxu0
      %v841 = vadd.f32 %v744, %v840
      %v842 = vpop.f32.mrb[0].mxu0
      %843 = vdwg.mxu0
      %v844 = vpack.c.bf16 %v785, %v782
      %v845 = vpack.c.bf16 %v793, %v790
      %v846 = vpack.c.bf16 %v801, %v798
      %v847 = vpack.c.bf16 %v809, %v806
      %v848 = vpack.c.bf16 %v817, %v814
      %v849 = vpack.c.bf16 %v825, %v822
      %v850 = vpack.c.bf16 %v833, %v830
      %v851 = vpack.c.bf16 %v841, %v838
      %v860 = vunpack.c.l.b16 %v844
      %v861 = vunpack.c.h.b16 %v844
      %v862 = vunpack.c.l.b16 %v845
      %v863 = vunpack.c.h.b16 %v845
      %v864 = vunpack.c.l.b16 %v846
      %v865 = vunpack.c.h.b16 %v846
      %v866 = vunpack.c.l.b16 %v847
      %v867 = vunpack.c.h.b16 %v847
      %v868 = vunpack.c.l.b16 %v848
      %v869 = vunpack.c.h.b16 %v848
      %v870 = vunpack.c.l.b16 %v849
      %v871 = vunpack.c.h.b16 %v849
      %v872 = vunpack.c.l.b16 %v850
      %v873 = vunpack.c.h.b16 %v850
      %v874 = vunpack.c.l.b16 %v851
      %v875 = vunpack.c.h.b16 %v851
      %v876 = vpack.c.b16 %v860, %v860
      %v877 = vpack.c.b16 %v861, %v861
      %v878 = vpack.c.b16 %v862, %v862
      %v879 = vpack.c.b16 %v863, %v863
      %v880 = vpack.c.b16 %v864, %v864
      %v881 = vpack.c.b16 %v865, %v865
      %v882 = vpack.c.b16 %v866, %v866
      %v883 = vpack.c.b16 %v867, %v867
      %v884 = vpack.c.b16 %v868, %v868
      %v885 = vpack.c.b16 %v869, %v869
      %v886 = vpack.c.b16 %v870, %v870
      %v887 = vpack.c.b16 %v871, %v871
      %v888 = vpack.c.b16 %v872, %v872
      %v889 = vpack.c.b16 %v873, %v873
      %v890 = vpack.c.b16 %v874, %v874
      %v891 = vpack.c.b16 %v875, %v875
      %vm908 = vcmask 257024
      %909 = vst.msk [vmem:[%s312] sm:$0xf] %vm908, %v876
      %910 = vst.msk [vmem:[%s312 + $0x4] sm:$0xf] %vm908, %v877
      %911 = vst.msk [vmem:[%s312 + $0x8] sm:$0xf] %vm908, %v878
      %912 = vst.msk [vmem:[%s312 + $0xc] sm:$0xf] %vm908, %v879
      %913 = vst.msk [vmem:[%s312 + $0x10] sm:$0xf] %vm908, %v880
      %914 = vst.msk [vmem:[%s312 + $0x14] sm:$0xf] %vm908, %v881
      %915 = vst.msk [vmem:[%s312 + $0x18] sm:$0xf] %vm908, %v882
      %916 = vst.msk [vmem:[%s312 + $0x1c] sm:$0xf] %vm908, %v883
      %917 = vst.msk [vmem:[%s312 + $0x20] sm:$0xf] %vm908, %v884
      %918 = vst.msk [vmem:[%s312 + $0x24] sm:$0xf] %vm908, %v885
      %919 = vst.msk [vmem:[%s312 + $0x28] sm:$0xf] %vm908, %v886
      %920 = vst.msk [vmem:[%s312 + $0x2c] sm:$0xf] %vm908, %v887
      %921 = vst.msk [vmem:[%s312 + $0x30] sm:$0xf] %vm908, %v888
      %922 = vst.msk [vmem:[%s312 + $0x34] sm:$0xf] %vm908, %v889
      %923 = vst.msk [vmem:[%s312 + $0x38] sm:$0xf] %vm908, %v890
      %924 = vst.msk [vmem:[%s312 + $0x3c] sm:$0xf] %vm908, %v891
      %v925 = vsel %vm625, %v782, 0.0
      %v926 = vsel %vm625, %v785, 0.0
      %v927 = vadd.f32 %v925, %v926
      %v928 = vsel %vm625, %v790, 0.0
      %v929 = vadd.f32 %v927, %v928
      %v930 = vsel %vm625, %v793, 0.0
      %v931 = vadd.f32 %v929, %v930
      %v932 = vsel %vm625, %v798, 0.0
      %v933 = vadd.f32 %v931, %v932
      %v934 = vsel %vm625, %v801, 0.0
      %v935 = vadd.f32 %v933, %v934
      %v936 = vsel %vm625, %v806, 0.0
      %v937 = vadd.f32 %v935, %v936
      %v938 = vsel %vm625, %v809, 0.0
      %v939 = vadd.f32 %v937, %v938
      %v940 = vsel %vm625, %v814, 0.0
      %v941 = vadd.f32 %v939, %v940
      %v942 = vsel %vm625, %v817, 0.0
      %v943 = vadd.f32 %v941, %v942
      %v944 = vsel %vm625, %v822, 0.0
      %v945 = vadd.f32 %v943, %v944
      %v946 = vsel %vm625, %v825, 0.0
      %v947 = vadd.f32 %v945, %v946
      %v948 = vsel %vm625, %v830, 0.0
      %v949 = vadd.f32 %v947, %v948
      %v950 = vsel %vm625, %v833, 0.0
      %v951 = vadd.f32 %v949, %v950
      %v952 = vsel %vm625, %v838, 0.0
      %v953 = vadd.f32 %v951, %v952
      %v954 = vsel %vm625, %v841, 0.0
      %v955 = vadd.f32 %v953, %v954
      %v956 = vrot.slane %v955, 4
      %v957 = vadd.f32 %v955, %v956
      %v958 = vrot.slane %v957, 2
      %v959 = vadd.f32 %v957, %v958
      %v960 = vrot.slane %v959, 1
      %v961 = vadd.f32 %v959, %v960
      %v962 = vmul.f32 %v782, %v782
      %v963 = vmul.f32 %v785, %v785
      %v964 = vmul.f32 %v790, %v790
      %v965 = vmul.f32 %v793, %v793
      %v966 = vmul.f32 %v798, %v798
      %v967 = vmul.f32 %v801, %v801
      %v968 = vmul.f32 %v806, %v806
      %v969 = vmul.f32 %v809, %v809
      %v970 = vmul.f32 %v814, %v814
      %v971 = vmul.f32 %v817, %v817
      %v972 = vmul.f32 %v822, %v822
      %v973 = vmul.f32 %v825, %v825
      %v974 = vmul.f32 %v830, %v830
      %v975 = vmul.f32 %v833, %v833
      %v976 = vmul.f32 %v838, %v838
      %v977 = vmul.f32 %v841, %v841
      %v978 = vsel %vm625, %v962, 0.0
      %v979 = vsel %vm625, %v963, 0.0
      %v980 = vadd.f32 %v978, %v979
      %v981 = vsel %vm625, %v964, 0.0
      %v982 = vadd.f32 %v980, %v981
      %v983 = vsel %vm625, %v965, 0.0
      %v984 = vadd.f32 %v982, %v983
      %v985 = vsel %vm625, %v966, 0.0
      %v986 = vadd.f32 %v984, %v985
      %v987 = vsel %vm625, %v967, 0.0
      %v988 = vadd.f32 %v986, %v987
      %v989 = vsel %vm625, %v968, 0.0
      %v990 = vadd.f32 %v988, %v989
      %v991 = vsel %vm625, %v969, 0.0
      %v992 = vadd.f32 %v990, %v991
      %v993 = vsel %vm625, %v970, 0.0
      %v994 = vadd.f32 %v992, %v993
      %v995 = vsel %vm625, %v971, 0.0
      %v996 = vadd.f32 %v994, %v995
      %v997 = vsel %vm625, %v972, 0.0
      %v998 = vadd.f32 %v996, %v997
      %v999 = vsel %vm625, %v973, 0.0
      %v1000 = vadd.f32 %v998, %v999
      %v1001 = vsel %vm625, %v974, 0.0
      %v1002 = vadd.f32 %v1000, %v1001
      %v1003 = vsel %vm625, %v975, 0.0
      %v1004 = vadd.f32 %v1002, %v1003
      %v1005 = vsel %vm625, %v976, 0.0
      %v1006 = vadd.f32 %v1004, %v1005
      %v1007 = vsel %vm625, %v977, 0.0
      %v1008 = vadd.f32 %v1006, %v1007
      %v1009 = vrot.slane %v1008, 4
      %v1010 = vadd.f32 %v1008, %v1009
      %v1011 = vrot.slane %v1010, 2
      %v1012 = vadd.f32 %v1010, %v1011
      %v1013 = vrot.slane %v1012, 1
      %v1014 = vadd.f32 %v1012, %v1013
      %p1015 = scmp.eq.s32.totalorder %s23, 0
      // Predicated region
      $region29: #{_lambda_.8} parent=27 // pred_check
        %p1016 = pneg %p1015
      $region30: #{_lambda_.8} parent=27 // pred_check_branch
        %1018 = sbr.rel (%p1016) target = $region32
      $region31: #{_lambda_.8} parent=27 // pred_region
        %vm1019 = vcmask 253952
        %1020 = vst.msk [vmem:[%s320] sm:$0x1] %vm1019, %v961
        %1021 = vst.msk [vmem:[%s327] sm:$0x1] %vm1019, %v1014
      $region32: #{_lambda_.8} parent=27 // pred_fallthru
        _
      %p1022 = scmp.ne.s32.totalorder %s23, 0
      // Predicated region
      $region33: #{_lambda_.8} parent=27 // pred_check
        %p1023 = pneg %p1022
      $region34: #{_lambda_.8} parent=27 // pred_check_branch
        %1025 = sbr.rel (%p1023) target = $region36
      $region35: #{_lambda_.8} parent=27 // pred_region
        %v1026 = vld [vmem:[%s320] sm:$0x1]
        %v1027 = vadd.f32 %v1026, %v961
        %vm1028 = vcmask 253952
        %1029 = vst.msk [vmem:[%s320] sm:$0x1] %vm1028, %v1027
        %v1030 = vld [vmem:[%s327] sm:$0x1]
        %v1031 = vadd.f32 %v1030, %v1014
        %1032 = vst.msk [vmem:[%s327] sm:$0x1] %vm1028, %v1031
      $region36: #{_lambda_.8} parent=27 // pred_fallthru
        _
      %s1033 = smul.u32 16, %s23
      %p1034 = scmp.lt.s32.totalorder %s21, 0
      %s1035 = scalar_select %p1034, %s21, 0
      %p1036 = scmp.lt.s32.totalorder %s22, 1
      %s1037 = scalar_select %p1036, %s22, 1
      %p1038 = scmp.lt.s32.totalorder %s1033, 31
      %s1039 = scalar_select %p1038, %s1033, 31
      %s1040 = smul.addr %s1037, 32
      %s1041 = sadd.s32 %s1039, %s1040
      %s1042 = smul.addr %s1035, 64
      %s1043 = sadd.s32 %s1041, %s1042
      %s1044 = smul.addr %s1043, 4
      %s1045 = scalar_lea.vmem %s2, %s1044
      %p1046 = scmp.lt.s32.totalorder %s21, 0
      %s1047 = scalar_select %p1046, %s21, 0
      %p1048 = scmp.lt.s32.totalorder %s22, 1
      %s1049 = scalar_select %p1048, %s22, 1
      %s1050 = smul.addr %s1047, 2
      %s1051 = sadd.s32 %s1049, %s1050
      %s1052 = scalar_lea.vmem %s3, %s1051
      %p1053 = scmp.lt.s32.totalorder %s21, 0
      %s1054 = scalar_select %p1053, %s21, 0
      %p1055 = scmp.lt.s32.totalorder %s22, 1
      %s1056 = scalar_select %p1055, %s22, 1
      %s1057 = smul.addr %s1054, 2
      %s1058 = sadd.s32 %s1056, %s1057
      %s1059 = scalar_lea.vmem %s4, %s1058
      // Predicated region
      $region37: #{_lambda_.8} parent=27 // pred_check
        %p1060 = pneg %p113
      $region38: #{_lambda_.8} parent=27 // pred_check_branch
        %1062 = sbr.rel (%p1060) target = $region40
      $region39: #{_lambda_.8} parent=27 // pred_region
        %s1063 = smul.u32 16, %s23
      $region40: #{_lambda_.8} parent=27 // pred_fallthru
        _
      // Predicated region
      $region41: #{_lambda_.8} parent=27 // pred_check
        %p1064 = pneg %p141
      $region42: #{_lambda_.8} parent=27 // pred_check_branch
        %1066 = sbr.rel (%p1064) target = $region44
      $region43: #{_lambda_.8} parent=27 // pred_region
        _
      $region44: #{_lambda_.8} parent=27 // pred_fallthru
        _
      // Predicated region
      $region45: #{_lambda_.8} parent=27 // pred_check
        %p1067 = pneg %p169
      $region46: #{_lambda_.8} parent=27 // pred_check_branch
        %1069 = sbr.rel (%p1067) target = $region48
      $region47: #{_lambda_.8} parent=27 // pred_region
        _
      $region48: #{_lambda_.8} parent=27 // pred_fallthru
        _
    $region28: #{_lambda_.8} parent=5 // pred_fallthru
      _
    %p1070 = scmp.le.s32.totalorder 2, %s11
    // Predicated region
    $region49: #{_lambda_.8} parent=5 // pred_check
      %p1071 = pneg %p1070
    $region50: #{_lambda_.8} parent=5 // pred_check_branch
      %1073 = sbr.rel (%p1071) target = $region52
    $region51: #{_lambda_.8} parent=5 // pred_region
      %s1074 = ssub.s32 %s11, 2
      // Predicated region
      $region53: #{_lambda_.8} parent=51 // pred_check
        %p1075 = pneg %p119
      $region54: #{_lambda_.8} parent=51 // pred_check_branch
        %1077 = sbr.rel (%p1075) target = $region56
      $region55: #{_lambda_.8} parent=51 // pred_region
        %s1078 = smul.u32 16, %s26
        %p1079 = scmp.lt.s32.totalorder %s24, 0
        %s1080 = scalar_select %p1079, %s24, 0
        %p1081 = scmp.lt.s32.totalorder %s25, 1
        %s1082 = scalar_select %p1081, %s25, 1
        %p1083 = scmp.lt.s32.totalorder %s1078, 31
        %s1084 = scalar_select %p1083, %s1078, 31
        %s1085 = smul.addr %s1082, 32
        %s1086 = sadd.s32 %s1084, %s1085
        %s1087 = smul.addr %s1080, 64
        %s1088 = sadd.s32 %s1086, %s1087
        %s1089 = smul.addr %s1088, 4
        %s1090 = scalar_lea.vmem %s2, %s1089
      $region56: #{_lambda_.8} parent=51 // pred_fallthru
        _
      // Predicated region
      $region57: #{_lambda_.8} parent=51 // pred_check
        %p1091 = pneg %p147
      $region58: #{_lambda_.8} parent=51 // pred_check_branch
        %1093 = sbr.rel (%p1091) target = $region60
      $region59: #{_lambda_.8} parent=51 // pred_region
        %p1094 = scmp.lt.s32.totalorder %s24, 0
        %s1095 = scalar_select %p1094, %s24, 0
        %p1096 = scmp.lt.s32.totalorder %s25, 1
        %s1097 = scalar_select %p1096, %s25, 1
        %s1098 = smul.addr %s1095, 2
        %s1099 = sadd.s32 %s1097, %s1098
        %s1100 = scalar_lea.vmem %s3, %s1099
      $region60: #{_lambda_.8} parent=51 // pred_fallthru
        _
      // Predicated region
      $region61: #{_lambda_.8} parent=51 // pred_check
        %p1101 = pneg %p175
      $region62: #{_lambda_.8} parent=51 // pred_check_branch
        %1103 = sbr.rel (%p1101) target = $region64
      $region63: #{_lambda_.8} parent=51 // pred_region
        %p1104 = scmp.lt.s32.totalorder %s24, 0
        %s1105 = scalar_select %p1104, %s24, 0
        %p1106 = scmp.lt.s32.totalorder %s25, 1
        %s1107 = scalar_select %p1106, %s25, 1
        %s1108 = smul.addr %s1105, 2
        %s1109 = sadd.s32 %s1107, %s1108
        %s1110 = scalar_lea.vmem %s4, %s1109
      $region64: #{_lambda_.8} parent=51 // pred_fallthru
        _
    $region52: #{_lambda_.8} parent=5 // pred_fallthru
      _
  $region6: #{_lambda_.8} parent=0 // loop_footer
    %s15 = sadd.s32 1, %s11
  $region7: #{_lambda_.8} parent=0 // loop_footer_branch
    %10 = sbr.rel target = $region3
  $region8: #{_lambda_.8} parent=0 // loop_exit
    _

// kernel: _lambda_.9
$region0: #{_lambda_.9}
  #allocation0 [shape = 'u32[]', space=smem, size = 0x4, offset = 0x4, fixed_abs, tag = 'smem constant byte address 0x4 - core index']
  #allocation1 [shape = 'u32[144,128]{1,0:T(1,128)}', space=vmem, size = 0x12000, scoped, tag = 'internal scratch']
  %s0 = inlined_call_operand.vmem [shape: bf16[128,128], index: 0, kind: input, shape index: {}]
  %s1 = inlined_call_operand.vmem [shape: f32[1,128], index: 1, kind: input, shape index: {}]
  %s2 = inlined_call_operand.vmem [shape: f32[1,128], index: 2, kind: input, shape index: {}]
  %s3 = inlined_call_operand.vmem [shape: f32[128,128], index: 3, kind: output, shape index: {}]
  %s4 = sld [smem:[#allocation0]]
  $region22: #{_lambda_.9} parent=0
    _
  %s6 = ssub.s32 1, %s4
  %s7 = scalar_select 0, %s6, %s4
  // Predicated region
  $region2: #{_lambda_.9} parent=0 // pred_check
    _
  $region3: #{_lambda_.9} parent=0 // pred_check_branch
    %9 = sbr.rel (0) target = $region5
  $region4: #{_lambda_.9} parent=0 // pred_region
    _
  $region5: #{_lambda_.9} parent=0 // pred_fallthru
    _
  // Predicated region
  $region6: #{_lambda_.9} parent=0 // pred_check
    _
  $region7: #{_lambda_.9} parent=0 // pred_check_branch
    %11 = sbr.rel (0) target = $region9
  $region8: #{_lambda_.9} parent=0 // pred_region
    _
  $region9: #{_lambda_.9} parent=0 // pred_fallthru
    _
  // Predicated region
  $region10: #{_lambda_.9} parent=0 // pred_check
    _
  $region11: #{_lambda_.9} parent=0 // pred_check_branch
    %13 = sbr.rel (0) target = $region13
  $region12: #{_lambda_.9} parent=0 // pred_region
    _
  $region13: #{_lambda_.9} parent=0 // pred_fallthru
    _
  %v14 = vld [vmem:[%s0] sm:$0xf]
  %v15 = vld [vmem:[%s0 + $0x4] sm:$0xf]
  %v16 = vld [vmem:[%s0 + $0x8] sm:$0xf]
  %v17 = vld [vmem:[%s0 + $0xc] sm:$0xf]
  %v18 = vld [vmem:[%s0 + $0x10] sm:$0xf]
  %v19 = vld [vmem:[%s0 + $0x14] sm:$0xf]
  %v20 = vld [vmem:[%s0 + $0x18] sm:$0xf]
  %v21 = vld [vmem:[%s0 + $0x1c] sm:$0xf]
  %v22 = vld [vmem:[%s0 + $0x20] sm:$0xf]
  %v23 = vld [vmem:[%s0 + $0x24] sm:$0xf]
  %v24 = vld [vmem:[%s0 + $0x28] sm:$0xf]
  %v25 = vld [vmem:[%s0 + $0x2c] sm:$0xf]
  %v26 = vld [vmem:[%s0 + $0x30] sm:$0xf]
  %v27 = vld [vmem:[%s0 + $0x34] sm:$0xf]
  %v28 = vld [vmem:[%s0 + $0x38] sm:$0xf]
  %v29 = vld [vmem:[%s0 + $0x3c] sm:$0xf]
  %v30 = vunpack.c.l.bf16 %v14
  %v31 = vunpack.c.l.bf16 %v15
  %v32 = vunpack.c.l.bf16 %v16
  %v33 = vunpack.c.l.bf16 %v17
  %v34 = vunpack.c.l.bf16 %v18
  %v35 = vunpack.c.l.bf16 %v19
  %v36 = vunpack.c.l.bf16 %v20
  %v37 = vunpack.c.l.bf16 %v21
  %v38 = vunpack.c.l.bf16 %v22
  %v39 = vunpack.c.l.bf16 %v23
  %v40 = vunpack.c.l.bf16 %v24
  %v41 = vunpack.c.l.bf16 %v25
  %v42 = vunpack.c.l.bf16 %v26
  %v43 = vunpack.c.l.bf16 %v27
  %v44 = vunpack.c.l.bf16 %v28
  %v45 = vunpack.c.l.bf16 %v29
  %v46 = vld [vmem:[%s1] sm:$0x1]
  %v48 = vlaneseq
  %v49 = vshrl.u32 %v48, 7
  %v50 = vsub.s32 0, %v49
  %v51 = vrot.slane %v46, %v50
  %v53 = vmul.f32 %v30, %v51
  %v54 = vmul.f32 %v31, %v51
  %v55 = vmul.f32 %v32, %v51
  %v56 = vmul.f32 %v33, %v51
  %v57 = vmul.f32 %v34, %v51
  %v58 = vmul.f32 %v35, %v51
  %v59 = vmul.f32 %v36, %v51
  %v60 = vmul.f32 %v37, %v51
  %v61 = vmul.f32 %v38, %v51
  %v62 = vmul.f32 %v39, %v51
  %v63 = vmul.f32 %v40, %v51
  %v64 = vmul.f32 %v41, %v51
  %v65 = vmul.f32 %v42, %v51
  %v66 = vmul.f32 %v43, %v51
  %v67 = vmul.f32 %v44, %v51
  %v68 = vmul.f32 %v45, %v51
  %v69 = vld [vmem:[%s2] sm:$0x1]
  %v71 = vlaneseq
  %v72 = vshrl.u32 %v71, 7
  %v73 = vsub.s32 0, %v72
  %v74 = vrot.slane %v69, %v73
  %v76 = vadd.f32 %v53, %v74
  %v77 = vadd.f32 %v54, %v74
  %v78 = vadd.f32 %v55, %v74
  %v79 = vadd.f32 %v56, %v74
  %v80 = vadd.f32 %v57, %v74
  %v81 = vadd.f32 %v58, %v74
  %v82 = vadd.f32 %v59, %v74
  %v83 = vadd.f32 %v60, %v74
  %v84 = vadd.f32 %v61, %v74
  %v85 = vadd.f32 %v62, %v74
  %v86 = vadd.f32 %v63, %v74
  %v87 = vadd.f32 %v64, %v74
  %v88 = vadd.f32 %v65, %v74
  %v89 = vadd.f32 %v66, %v74
  %v90 = vadd.f32 %v67, %v74
  %v91 = vadd.f32 %v68, %v74
  %v92 = vmax.f32 %v76, 0.0
  %v93 = vmax.f32 %v77, 0.0
  %v94 = vmax.f32 %v78, 0.0
  %v95 = vmax.f32 %v79, 0.0
  %v96 = vmax.f32 %v80, 0.0
  %v97 = vmax.f32 %v81, 0.0
  %v98 = vmax.f32 %v82, 0.0
  %v99 = vmax.f32 %v83, 0.0
  %v100 = vmax.f32 %v84, 0.0
  %v101 = vmax.f32 %v85, 0.0
  %v102 = vmax.f32 %v86, 0.0
  %v103 = vmax.f32 %v87, 0.0
  %v104 = vmax.f32 %v88, 0.0
  %v105 = vmax.f32 %v89, 0.0
  %v106 = vmax.f32 %v90, 0.0
  %v107 = vmax.f32 %v91, 0.0
  %108 = vst [vmem:[%s3] sm:$0xff] %v92
  %109 = vst [vmem:[%s3 + $0x8] sm:$0xff] %v93
  %110 = vst [vmem:[%s3 + $0x10] sm:$0xff] %v94
  %111 = vst [vmem:[%s3 + $0x18] sm:$0xff] %v95
  %112 = vst [vmem:[%s3 + $0x20] sm:$0xff] %v96
  %113 = vst [vmem:[%s3 + $0x28] sm:$0xff] %v97
  %114 = vst [vmem:[%s3 + $0x30] sm:$0xff] %v98
  %115 = vst [vmem:[%s3 + $0x38] sm:$0xff] %v99
  %116 = vst [vmem:[%s3 + $0x40] sm:$0xff] %v100
  %117 = vst [vmem:[%s3 + $0x48] sm:$0xff] %v101
  %118 = vst [vmem:[%s3 + $0x50] sm:$0xff] %v102
  %119 = vst [vmem:[%s3 + $0x58] sm:$0xff] %v103
  %120 = vst [vmem:[%s3 + $0x60] sm:$0xff] %v104
  %121 = vst [vmem:[%s3 + $0x68] sm:$0xff] %v105
  %122 = vst [vmem:[%s3 + $0x70] sm:$0xff] %v106
  %123 = vst [vmem:[%s3 + $0x78] sm:$0xff] %v107
  // Predicated region
  $region14: #{_lambda_.9} parent=0 // pred_check
    _
  $region15: #{_lambda_.9} parent=0 // pred_check_branch
    %125 = sbr.rel (0) target = $region17
  $region16: #{_lambda_.9} parent=0 // pred_region
    _
  $region17: #{_lambda_.9} parent=0 // pred_fallthru
    _
  // Predicated region
  $region18: #{_lambda_.9} parent=0 // pred_check
    _
  $region19: #{_lambda_.9} parent=0 // pred_check_branch
    %127 = sbr.rel (0) target = $region21
  $region20: #{_lambda_.9} parent=0 // pred_region
    _
  $region21: #{_lambda_.9} parent=0 // pred_fallthru
    _

</llo_original>
